<compile_context>
chip_gen: v7x
topology: tpu7x:2x2x1
jax: 0.10.0
libtpu: 0.0.40
codegen_flags: <defaults>
</compile_context>

<pallas_src>
import functools

import jax
import jax.numpy as jnp
from jax import lax
from jax.experimental import pallas as pl
from jax.experimental.pallas import tpu as pltpu


_EXPANSION = 4
_BN_EPS = 1e-5
_MXU_DTYPE = jnp.bfloat16
_LANE = 128


def _round_up(x, m):
    return (x + m - 1) // m * m


def _vmem_limit_bytes():
    """Generation-aware VMEM budget (v5e/v6e: 128 MiB physical, v7x: 64 MiB)."""
    cap = 64 * 1024 * 1024
    try:
        cap = int(getattr(pltpu.get_tpu_info(), "vmem_capacity_bytes", cap)) or cap
    except Exception:
        pass
    return max(32 * 1024 * 1024, min(3 * cap // 4, 112 * 1024 * 1024))


def _row_chunk(total_rows, row_bytes, budget_bytes):
    return max(1, min(total_rows, budget_bytes // max(1, row_bytes)))


# ----------------------------------------------------------------------------
# Fused Bottleneck kernel (one grid step == one image)
# ----------------------------------------------------------------------------
def _bottleneck_kernel(x_ref, w1_ref, b1_ref, w2_ref, b2_ref, w3_ref, b3_ref,
                       o_ref, xcol, acc, *, cpad, row_chunk1, row_chunk2):
    """conv1(1x1)+bn1+relu -> conv2(3x3, pad=1)+bn2+relu -> conv3(1x1)+bn3
       -> + identity -> relu, entirely in VMEM.

    x_ref : (1, H, W, Cin)     bf16 input; also the residual (Cin == Cexp)
    w1_ref: (Cin, C)           bf16, bn1 scale folded in
    b1_ref: (1, C)             f32 bn1 shift
    w2_ref: (3, 3*cpad, C)     bf16, kw + lane-padded C merged into K, bn2 folded
    b2_ref: (1, C)             f32 bn2 shift
    w3_ref: (C, Cexp)          bf16, bn3 scale folded in
    b3_ref: (1, Cexp)          f32 bn3 shift
    o_ref : (1, H, W, Cexp)    f32 output
    xcol  : (H+2, W, 3*cpad)   bf16 VMEM column-im2col slab of conv1 output
    acc   : (row_chunk2*W, C)  f32 VMEM accumulator for the 3x3 conv
    """
    _, H, W, Cin = x_ref.shape
    _, _, _, Cexp = o_ref.shape
    C = w1_ref.shape[1]
    k2 = 3 * cpad

    # ---- zero halo rows / lane padding of the im2col slab (cheap) ----------
    if cpad != C:
        # Lane-padded layout (C not a multiple of 128): zero the whole slab so
        # the padded K lanes contribute exact zeros (small-C stages only).
        xcol[...] = jnp.zeros(xcol.shape, xcol.dtype)
    else:
        xcol[0:1] = jnp.zeros((1, W, k2), xcol.dtype)
        xcol[H + 1:H + 2] = jnp.zeros((1, W, k2), xcol.dtype)

    # ---- conv1 (1x1) + bn1 + relu, written straight into the im2col slab ---
    w1 = w1_ref[...]
    b1 = b1_ref[...]
    r0 = 0
    while r0 < H:
        rows = min(row_chunk1, H - r0)
        m1 = rows * W
        xr = x_ref[0, r0:r0 + rows].reshape(m1, Cin)
        a1 = jnp.dot(xr, w1, preferred_element_type=jnp.float32) + b1
        a1 = jnp.maximum(a1, 0.0).astype(xcol.dtype).reshape(rows, W, C)
        zc = jnp.zeros((rows, 1, C), xcol.dtype)
        # kw = 1 (center): xcol[1+r, c, cpad:cpad+C] = a1[r, c]
        xcol[1 + r0:1 + r0 + rows, :, cpad:cpad + C] = a1
        # kw = 0 (left tap): xcol[1+r, c, 0:C] = a1[r, c-1]; zero at c == 0
        xcol[1 + r0:1 + r0 + rows, 1:W, 0:C] = a1[:, 0:W - 1, :]
        xcol[1 + r0:1 + r0 + rows, 0:1, 0:C] = zc
        # kw = 2 (right tap): xcol[1+r, c, 2cp:..] = a1[r, c+1]; zero at c == W-1
        xcol[1 + r0:1 + r0 + rows, 0:W - 1, 2 * cpad:2 * cpad + C] = a1[:, 1:W, :]
        xcol[1 + r0:1 + r0 + rows, W - 1:W, 2 * cpad:2 * cpad + C] = zc
        r0 += rows

    # ---- conv2 (3x3) + bn2 + relu  ->  conv3 (1x1) + bn3 + residual + relu --
    # Weight loads hoisted out of the row-chunk loop.
    w2_0 = w2_ref[0]
    w2_1 = w2_ref[1]
    w2_2 = w2_ref[2]
    b2 = b2_ref[...]
    w3 = w3_ref[...]
    b3 = b3_ref[...]

    r0 = 0
    while r0 < H:
        rows = min(row_chunk2, H - r0)
        m2 = rows * W
        # Three K = 3*cpad matmuls (one per kh tap), accumulated in VMEM scratch.
        p0 = xcol[r0 + 0:r0 + 0 + rows].reshape(m2, k2)
        acc[0:m2] = jnp.dot(p0, w2_0, preferred_element_type=jnp.float32)
        p1 = xcol[r0 + 1:r0 + 1 + rows].reshape(m2, k2)
        acc[0:m2] += jnp.dot(p1, w2_1, preferred_element_type=jnp.float32)
        p2 = xcol[r0 + 2:r0 + 2 + rows].reshape(m2, k2)
        acc[0:m2] += jnp.dot(p2, w2_2, preferred_element_type=jnp.float32)
        a2 = jnp.maximum(acc[0:m2] + b2, 0.0).astype(w3.dtype)        # (m2, C) bf16
        # Fused conv3 epilogue: 1x1 matmul + bn3 shift + residual add + ReLU.
        idn = x_ref[0, r0:r0 + rows].reshape(m2, Cexp).astype(jnp.float32)
        y = jnp.dot(a2, w3, preferred_element_type=jnp.float32) + b3 + idn
        y = jnp.maximum(y, 0.0)
        o_ref[0, r0:r0 + rows] = y.reshape(rows, W, Cexp).astype(o_ref.dtype)
        r0 += rows


# ----------------------------------------------------------------------------
# Parameter folding / setup
# ----------------------------------------------------------------------------
def _fold_bn(gamma, beta, mean, var):
    scale = gamma / jnp.sqrt(var + _BN_EPS)
    shift = beta - mean * scale
    return scale, shift


def _fold_params(params):
    """Fold BN scales into conv weight output channels; cast matmul operands to bf16."""
    s1, b1 = _fold_bn(*params["bn1"])
    s2, b2 = _fold_bn(*params["bn2"])
    s3, b3 = _fold_bn(*params["bn3"])
    w1 = (params["w1"] * s1[None, :]).astype(_MXU_DTYPE)                  # (Cin, C)
    w2 = (params["w2"] * s2[None, None, None, :]).astype(_MXU_DTYPE)      # HWIO
    w3 = (params["w3"] * s3[None, :]).astype(_MXU_DTYPE)                  # (C, Cexp)
    return (w1, w2, w3,
            b1.reshape(1, -1).astype(jnp.float32),
            b2.reshape(1, -1).astype(jnp.float32),
            b3.reshape(1, -1).astype(jnp.float32))


def _merge_conv2_weight(w2_hwio, cpad):
    """(3, 3, C, Cout) HWIO -> (3, 3*cpad, Cout): kw and lane-padded C merged
    into the matmul K axis; padded K rows are zero so they contribute nothing."""
    kh, kw, c, cout = w2_hwio.shape
    wpad = jnp.zeros((kh, kw, cpad, cout), w2_hwio.dtype)
    wpad = wpad.at[:, :, :c, :].set(w2_hwio)
    return wpad.reshape(kh, kw * cpad, cout)


def init_bottleneck_params(key, in_channel, out_channel, groups=1, width_per_group=64):
    width = int(out_channel * (width_per_group / 64.0)) * groups
    c_exp = out_channel * _EXPANSION
    ks = jax.random.split(key, 6)

    def bn(k, c):
        kg, kb, km, kv = jax.random.split(k, 4)
        return (jax.random.uniform(kg, (c,), jnp.float32, 0.5, 1.5),   # gamma
                jax.random.normal(kb, (c,), jnp.float32) * 0.1,        # beta
                jax.random.normal(km, (c,), jnp.float32) * 0.1,        # running_mean
                jax.random.uniform(kv, (c,), jnp.float32, 0.5, 1.5))   # running_var

    return {
        # conv weights in matmul-friendly layouts:
        #   1x1 conv -> (Cin, Cout);  3x3 conv -> HWIO (3, 3, Cin, Cout)
        "w1": jax.random.normal(ks[0], (in_channel, width), jnp.float32) * 0.1,
        "w2": jax.random.normal(ks[1], (3, 3, width, width), jnp.float32) * 0.1,
        "w3": jax.random.normal(ks[2], (width, c_exp), jnp.float32) * 0.1,
        "bn1": bn(ks[3], width),
        "bn2": bn(ks[4], width),
        "bn3": bn(ks[5], c_exp),
    }


# ----------------------------------------------------------------------------
# Forward (wrapper)
# ----------------------------------------------------------------------------
def bottleneck_forward(x_nchw, params, stride=1):
    """Forward pass of the Bottleneck block. x: NCHW float32, returns NCHW float32."""
    x = jnp.transpose(x_nchw, (0, 2, 3, 1))              # NCHW -> NHWC
    N, H, W, Cin = x.shape

    w1, w2, w3, b1, b2, b3 = _fold_params(params)
    width, c_exp = w1.shape[1], w3.shape[1]

    # Identity residual path (downsample=None) requires these:
    if stride != 1 or Cin != c_exp:
        raise NotImplementedError(
            "identity path needs stride=1 and in_channel == out_channel*expansion "
            "(downsample branch not implemented)")

    cpad = _round_up(width, _LANE)
    w2m = _merge_conv2_weight(w2, cpad)                   # (3, 3*cpad, width)

    # Row-chunk sizes: conv1 intermediate ~<=1 MiB, 3x3 f32 accumulator
    # ~<=512 KiB, fused conv3 intermediate ~<=2 MiB per chunk.
    rc1 = _row_chunk(H, W * max(Cin, width) * 4, 1 * 1024 * 1024)
    rc2 = _row_chunk(H, W * width * 4, 512 * 1024)
    rc2 = min(rc2, _row_chunk(H, W * c_exp * 4, 2 * 1024 * 1024))

    xb = x.astype(_MXU_DTYPE)                             # streamed once (also residual)

    kernel = functools.partial(_bottleneck_kernel, cpad=cpad,
                               row_chunk1=rc1, row_chunk2=rc2)
    out = pl.pallas_call(
        kernel,
        out_shape=jax.ShapeDtypeStruct((N, H, W, c_exp), jnp.float32),
        grid=(N,),
        in_specs=[
            pl.BlockSpec((1, H, W, Cin), lambda n: (n, 0, 0, 0)),
            pl.BlockSpec((Cin, width), lambda n: (0, 0)),
            pl.BlockSpec((1, width), lambda n: (0, 0)),
            pl.BlockSpec((3, 3 * cpad, width), lambda n: (0, 0, 0)),
            pl.BlockSpec((1, width), lambda n: (0, 0)),
            pl.BlockSpec((width, c_exp), lambda n: (0, 0)),
            pl.BlockSpec((1, c_exp), lambda n: (0, 0)),
        ],
        out_specs=pl.BlockSpec((1, H, W, c_exp), lambda n: (n, 0, 0, 0)),
        scratch_shapes=[
            pltpu.VMEM((H + 2, W, 3 * cpad), _MXU_DTYPE),
            pltpu.VMEM((rc2 * W, width), jnp.float32),
        ],
        compiler_params=pltpu.CompilerParams(
            dimension_semantics=("parallel",),
            vmem_limit_bytes=_vmem_limit_bytes()),
    )(xb, w1, b1, w2m, b2, w3, b3)
    return jnp.transpose(out, (0, 3, 1, 2))               # NHWC -> NCHW


def _reference_forward(x_nchw, params, stride=1):
    """Pure-JAX reference using the same folded bf16 weights / f32 accumulation."""
    x = jnp.transpose(x_nchw, (0, 2, 3, 1))
    w1, w2, w3, b1, b2, b3 = _fold_params(params)
    xb = x.astype(_MXU_DTYPE)
    out1 = jnp.einsum("nhwc,co->nhwo", xb, w1,
                      preferred_element_type=jnp.float32) + b1
    out1 = jnp.maximum(out1, 0.0).astype(_MXU_DTYPE)
    out2 = lax.conv_general_dilated(
        out1, w2, window_strides=(stride, stride), padding=((1, 1), (1, 1)),
        dimension_numbers=("NHWC", "HWIO", "NHWC"),
        preferred_element_type=jnp.float32)
    out2 = jnp.maximum(out2 + b2, 0.0).astype(_MXU_DTYPE)
    y = (jnp.einsum("nhwc,co->nhwo", out2, w3,
                    preferred_element_type=jnp.float32)
         + b3 + xb.astype(jnp.float32))
    return jnp.transpose(jnp.maximum(y, 0.0), (0, 3, 1, 2))


if __name__ == "__main__":
    # Small shapes consistent with the module: identity add requires
    # in_channel == out_channel * expansion (default downsample=None, stride=1).
    N, in_channel, H, W = 2, 64, 16, 16
    out_channel = 16                                     # -> 64 output channels

    x = jax.random.normal(jax.random.PRNGKey(0), (N, in_channel, H, W), jnp.float32)
    params = init_bottleneck_params(jax.random.PRNGKey(1), in_channel, out_channel)

    y = bottleneck_forward(x, params, stride=1)
    y = jax.block_until_ready(y)

    assert y.shape == (N, out_channel * _EXPANSION, H, W), y.shape
    assert bool(jnp.all(y >= 0.0))                       # final ReLU

    y_ref = _reference_forward(x, params, stride=1)
    max_err = float(jnp.max(jnp.abs(y - y_ref)))
    assert max_err < 5e-2, f"max abs error vs reference: {max_err}"

    print("KERNEL_OK")
</pallas_src>

<mosaic_0001>
module attributes {stable_mosaic.version = 11 : i64} {
  func.func @_bottleneck_kernel(%arg0: i32, %arg1: memref<1x16x16x64xbf16, #tpu.memory_space<vmem>>, %arg2: memref<64x16xbf16, #tpu.memory_space<vmem>>, %arg3: memref<1x16xf32, #tpu.memory_space<vmem>>, %arg4: memref<3x384x16xbf16, #tpu.memory_space<vmem>>, %arg5: memref<1x16xf32, #tpu.memory_space<vmem>>, %arg6: memref<16x64xbf16, #tpu.memory_space<vmem>>, %arg7: memref<1x64xf32, #tpu.memory_space<vmem>>, %arg8: memref<1x16x16x64xf32, #tpu.memory_space<vmem>>, %arg9: memref<18x16x384xbf16, #tpu.memory_space<vmem>>, %arg10: memref<256x16xf32, #tpu.memory_space<vmem>>) attributes {dimension_semantics = [#tpu.dimension_semantics<parallel>], iteration_bounds = array<i64: 2>, scalar_prefetch = 0 : i64, scratch_operands = 2 : i64, tpu.core_type = #tpu.core_type<tc>, window_params = [{transform_indices = @transform_0, window_bounds = array<i64: 1, 16, 16, 64>}, {pipeline_mode = #tpu.pipeline_mode<synchronous>, transform_indices = @transform_1, window_bounds = array<i64: 64, 16>}, {pipeline_mode = #tpu.pipeline_mode<synchronous>, transform_indices = @transform_2, window_bounds = array<i64: 1, 16>}, {pipeline_mode = #tpu.pipeline_mode<synchronous>, transform_indices = @transform_3, window_bounds = array<i64: 3, 384, 16>}, {pipeline_mode = #tpu.pipeline_mode<synchronous>, transform_indices = @transform_4, window_bounds = array<i64: 1, 16>}, {pipeline_mode = #tpu.pipeline_mode<synchronous>, transform_indices = @transform_5, window_bounds = array<i64: 16, 64>}, {pipeline_mode = #tpu.pipeline_mode<synchronous>, transform_indices = @transform_6, window_bounds = array<i64: 1, 64>}, {transform_indices = @transform_7, window_bounds = array<i64: 1, 16, 16, 64>}]} {
    %cst = arith.constant 0.000000e+00 : bf16
    %0 = vector.broadcast %cst : bf16 to vector<18x16x384xbf16>
    %c0 = arith.constant 0 : index
    %c0_0 = arith.constant 0 : index
    %c0_1 = arith.constant 0 : index
    %1 = vector.load %arg9[%c0, %c0_0, %c0_1] : memref<18x16x384xbf16, #tpu.memory_space<vmem>>, vector<18x16x384xbf16>
    tpu.vector_store %arg9[%c0, %c0_0, %c0_1], %0 {strides = array<i32>} : memref<18x16x384xbf16, #tpu.memory_space<vmem>>, vector<18x16x384xbf16>,
    %c0_2 = arith.constant 0 : index
    %c0_3 = arith.constant 0 : index
    %2 = vector.load %arg2[%c0_2, %c0_3] : memref<64x16xbf16, #tpu.memory_space<vmem>>, vector<64x16xbf16>
    %c0_4 = arith.constant 0 : index
    %c0_5 = arith.constant 0 : index
    %3 = vector.load %arg3[%c0_4, %c0_5] : memref<1x16xf32, #tpu.memory_space<vmem>>, vector<1x16xf32>
    %c0_6 = arith.constant 0 : index
    %c0_7 = arith.constant 0 : index
    %c0_8 = arith.constant 0 : index
    %c0_9 = arith.constant 0 : index
    %4 = vector.load %arg1[%c0_6, %c0_7, %c0_8, %c0_9] : memref<1x16x16x64xbf16, #tpu.memory_space<vmem>>, vector<1x16x16x64xbf16>
    %5 = vector.shape_cast %4 : vector<1x16x16x64xbf16> to vector<16x16x64xbf16>
    %6 = vector.shape_cast %5 : vector<16x16x64xbf16> to vector<256x64xbf16>
    %cst_10 = arith.constant dense<0.000000e+00> : vector<256x16xf32>
    %7 = tpu.matmul %6, %2, %cst_10 {dimension_numbers = #tpu.dot_dimension_numbers<[1], [0], [0], [1], [0, 0, 1, 1], [], []>} : vector<256x64xbf16>, vector<64x16xbf16>, vector<256x16xf32> -> vector<256x16xf32>
    %8 = vector.broadcast %3 : vector<1x16xf32> to vector<256x16xf32>
    %9 = arith.addf %7, %8 : vector<256x16xf32>
    %cst_11 = arith.constant 0.000000e+00 : f32
    %10 = vector.broadcast %cst_11 : f32 to vector<256x16xf32>
    %11 = arith.maximumf %9, %10 : vector<256x16xf32>
    %12 = arith.truncf %11 : vector<256x16xf32> to vector<256x16xbf16>
    %13 = vector.shape_cast %12 : vector<256x16xbf16> to vector<16x16x16xbf16>
    %cst_12 = arith.constant 0.000000e+00 : bf16
    %14 = vector.broadcast %cst_12 : bf16 to vector<16x1x16xbf16>
    %c1 = arith.constant 1 : index
    %c0_13 = arith.constant 0 : index
    %c128 = arith.constant 128 : index
    %15 = vector.load %arg9[%c1, %c0_13, %c128] : memref<18x16x384xbf16, #tpu.memory_space<vmem>>, vector<16x16x16xbf16>
    tpu.vector_store %arg9[%c1, %c0_13, %c128], %13 {strides = array<i32>} : memref<18x16x384xbf16, #tpu.memory_space<vmem>>, vector<16x16x16xbf16>,
    %16 = vector.extract_strided_slice %13 {offsets = [0, 0, 0], sizes = [16, 15, 16], strides = [1, 1, 1]} : vector<16x16x16xbf16> to vector<16x15x16xbf16>
    %c1_14 = arith.constant 1 : index
    %c1_15 = arith.constant 1 : index
    %c0_16 = arith.constant 0 : index
    %17 = vector.load %arg9[%c1_14, %c1_15, %c0_16] : memref<18x16x384xbf16, #tpu.memory_space<vmem>>, vector<16x15x16xbf16>
    tpu.vector_store %arg9[%c1_14, %c1_15, %c0_16], %16 {strides = array<i32>} : memref<18x16x384xbf16, #tpu.memory_space<vmem>>, vector<16x15x16xbf16>,
    %c1_17 = arith.constant 1 : index
    %c0_18 = arith.constant 0 : index
    %c0_19 = arith.constant 0 : index
    %18 = vector.load %arg9[%c1_17, %c0_18, %c0_19] : memref<18x16x384xbf16, #tpu.memory_space<vmem>>, vector<16x1x16xbf16>
    tpu.vector_store %arg9[%c1_17, %c0_18, %c0_19], %14 {strides = array<i32>} : memref<18x16x384xbf16, #tpu.memory_space<vmem>>, vector<16x1x16xbf16>,
    %19 = vector.extract_strided_slice %13 {offsets = [0, 1, 0], sizes = [16, 15, 16], strides = [1, 1, 1]} : vector<16x16x16xbf16> to vector<16x15x16xbf16>
    %c1_20 = arith.constant 1 : index
    %c0_21 = arith.constant 0 : index
    %c256 = arith.constant 256 : index
    %20 = vector.load %arg9[%c1_20, %c0_21, %c256] : memref<18x16x384xbf16, #tpu.memory_space<vmem>>, vector<16x15x16xbf16>
    tpu.vector_store %arg9[%c1_20, %c0_21, %c256], %19 {strides = array<i32>} : memref<18x16x384xbf16, #tpu.memory_space<vmem>>, vector<16x15x16xbf16>,
    %c1_22 = arith.constant 1 : index
    %c15 = arith.constant 15 : index
    %c256_23 = arith.constant 256 : index
    %21 = vector.load %arg9[%c1_22, %c15, %c256_23] : memref<18x16x384xbf16, #tpu.memory_space<vmem>>, vector<16x1x16xbf16>
    tpu.vector_store %arg9[%c1_22, %c15, %c256_23], %14 {strides = array<i32>} : memref<18x16x384xbf16, #tpu.memory_space<vmem>>, vector<16x1x16xbf16>,
    %c0_24 = arith.constant 0 : index
    %c0_25 = arith.constant 0 : index
    %c0_26 = arith.constant 0 : index
    %22 = vector.load %arg4[%c0_24, %c0_25, %c0_26] : memref<3x384x16xbf16, #tpu.memory_space<vmem>>, vector<1x384x16xbf16>
    %23 = vector.shape_cast %22 : vector<1x384x16xbf16> to vector<384x16xbf16>
    %c1_27 = arith.constant 1 : index
    %c0_28 = arith.constant 0 : index
    %c0_29 = arith.constant 0 : index
    %24 = vector.load %arg4[%c1_27, %c0_28, %c0_29] : memref<3x384x16xbf16, #tpu.memory_space<vmem>>, vector<1x384x16xbf16>
    %25 = vector.shape_cast %24 : vector<1x384x16xbf16> to vector<384x16xbf16>
    %c2 = arith.constant 2 : index
    %c0_30 = arith.constant 0 : index
    %c0_31 = arith.constant 0 : index
    %26 = vector.load %arg4[%c2, %c0_30, %c0_31] : memref<3x384x16xbf16, #tpu.memory_space<vmem>>, vector<1x384x16xbf16>
    %27 = vector.shape_cast %26 : vector<1x384x16xbf16> to vector<384x16xbf16>
    %c0_32 = arith.constant 0 : index
    %c0_33 = arith.constant 0 : index
    %28 = vector.load %arg5[%c0_32, %c0_33] : memref<1x16xf32, #tpu.memory_space<vmem>>, vector<1x16xf32>
    %c0_34 = arith.constant 0 : index
    %c0_35 = arith.constant 0 : index
    %29 = vector.load %arg6[%c0_34, %c0_35] : memref<16x64xbf16, #tpu.memory_space<vmem>>, vector<16x64xbf16>
    %c0_36 = arith.constant 0 : index
    %c0_37 = arith.constant 0 : index
    %30 = vector.load %arg7[%c0_36, %c0_37] : memref<1x64xf32, #tpu.memory_space<vmem>>, vector<1x64xf32>
    %c0_38 = arith.constant 0 : index
    %c0_39 = arith.constant 0 : index
    %c0_40 = arith.constant 0 : index
    %31 = vector.load %arg9[%c0_38, %c0_39, %c0_40] : memref<18x16x384xbf16, #tpu.memory_space<vmem>>, vector<16x16x384xbf16>
    %32 = vector.shape_cast %31 : vector<16x16x384xbf16> to vector<256x384xbf16>
    %cst_41 = arith.constant dense<0.000000e+00> : vector<256x16xf32>
    %33 = tpu.matmul %32, %23, %cst_41 {dimension_numbers = #tpu.dot_dimension_numbers<[1], [0], [0], [1], [0, 0, 1, 1], [], []>} : vector<256x384xbf16>, vector<384x16xbf16>, vector<256x16xf32> -> vector<256x16xf32>
    %c0_42 = arith.constant 0 : index
    %c0_43 = arith.constant 0 : index
    %34 = vector.load %arg10[%c0_42, %c0_43] : memref<256x16xf32, #tpu.memory_space<vmem>>, vector<256x16xf32>
    tpu.vector_store %arg10[%c0_42, %c0_43], %33 {strides = array<i32>} : memref<256x16xf32, #tpu.memory_space<vmem>>, vector<256x16xf32>,
    %c1_44 = arith.constant 1 : index
    %c0_45 = arith.constant 0 : index
    %c0_46 = arith.constant 0 : index
    %35 = vector.load %arg9[%c1_44, %c0_45, %c0_46] : memref<18x16x384xbf16, #tpu.memory_space<vmem>>, vector<16x16x384xbf16>
    %36 = vector.shape_cast %35 : vector<16x16x384xbf16> to vector<256x384xbf16>
    %c0_47 = arith.constant 0 : index
    %c0_48 = arith.constant 0 : index
    %37 = vector.load %arg10[%c0_47, %c0_48] : memref<256x16xf32, #tpu.memory_space<vmem>>, vector<256x16xf32>
    %cst_49 = arith.constant dense<0.000000e+00> : vector<256x16xf32>
    %38 = tpu.matmul %36, %25, %cst_49 {dimension_numbers = #tpu.dot_dimension_numbers<[1], [0], [0], [1], [0, 0, 1, 1], [], []>} : vector<256x384xbf16>, vector<384x16xbf16>, vector<256x16xf32> -> vector<256x16xf32>
    %39 = arith.addf %37, %38 : vector<256x16xf32>
    %c0_50 = arith.constant 0 : index
    %c0_51 = arith.constant 0 : index
    %40 = vector.load %arg10[%c0_50, %c0_51] : memref<256x16xf32, #tpu.memory_space<vmem>>, vector<256x16xf32>
    tpu.vector_store %arg10[%c0_50, %c0_51], %39 {strides = array<i32>} : memref<256x16xf32, #tpu.memory_space<vmem>>, vector<256x16xf32>,
    %c2_52 = arith.constant 2 : index
    %c0_53 = arith.constant 0 : index
    %c0_54 = arith.constant 0 : index
    %41 = vector.load %arg9[%c2_52, %c0_53, %c0_54] : memref<18x16x384xbf16, #tpu.memory_space<vmem>>, vector<16x16x384xbf16>
    %42 = vector.shape_cast %41 : vector<16x16x384xbf16> to vector<256x384xbf16>
    %c0_55 = arith.constant 0 : index
    %c0_56 = arith.constant 0 : index
    %43 = vector.load %arg10[%c0_55, %c0_56] : memref<256x16xf32, #tpu.memory_space<vmem>>, vector<256x16xf32>
    %cst_57 = arith.constant dense<0.000000e+00> : vector<256x16xf32>
    %44 = tpu.matmul %42, %27, %cst_57 {dimension_numbers = #tpu.dot_dimension_numbers<[1], [0], [0], [1], [0, 0, 1, 1], [], []>} : vector<256x384xbf16>, vector<384x16xbf16>, vector<256x16xf32> -> vector<256x16xf32>
    %45 = arith.addf %43, %44 : vector<256x16xf32>
    %c0_58 = arith.constant 0 : index
    %c0_59 = arith.constant 0 : index
    %46 = vector.load %arg10[%c0_58, %c0_59] : memref<256x16xf32, #tpu.memory_space<vmem>>, vector<256x16xf32>
    tpu.vector_store %arg10[%c0_58, %c0_59], %45 {strides = array<i32>} : memref<256x16xf32, #tpu.memory_space<vmem>>, vector<256x16xf32>,
    %c0_60 = arith.constant 0 : index
    %c0_61 = arith.constant 0 : index
    %47 = vector.load %arg10[%c0_60, %c0_61] : memref<256x16xf32, #tpu.memory_space<vmem>>, vector<256x16xf32>
    %48 = vector.broadcast %28 : vector<1x16xf32> to vector<256x16xf32>
    %49 = arith.addf %47, %48 : vector<256x16xf32>
    %cst_62 = arith.constant 0.000000e+00 : f32
    %50 = vector.broadcast %cst_62 : f32 to vector<256x16xf32>
    %51 = arith.maximumf %49, %50 : vector<256x16xf32>
    %52 = arith.truncf %51 : vector<256x16xf32> to vector<256x16xbf16>
    %c0_63 = arith.constant 0 : index
    %c0_64 = arith.constant 0 : index
    %c0_65 = arith.constant 0 : index
    %c0_66 = arith.constant 0 : index
    %53 = vector.load %arg1[%c0_63, %c0_64, %c0_65, %c0_66] : memref<1x16x16x64xbf16, #tpu.memory_space<vmem>>, vector<1x16x16x64xbf16>
    %54 = vector.shape_cast %53 : vector<1x16x16x64xbf16> to vector<16x16x64xbf16>
    %55 = vector.shape_cast %54 : vector<16x16x64xbf16> to vector<256x64xbf16>
    %56 = arith.extf %55 : vector<256x64xbf16> to vector<256x64xf32>
    %cst_67 = arith.constant dense<0.000000e+00> : vector<256x64xf32>
    %57 = tpu.matmul %52, %29, %cst_67 {dimension_numbers = #tpu.dot_dimension_numbers<[1], [0], [0], [1], [0, 0, 1, 1], [], []>} : vector<256x16xbf16>, vector<16x64xbf16>, vector<256x64xf32> -> vector<256x64xf32>
    %58 = vector.broadcast %30 : vector<1x64xf32> to vector<256x64xf32>
    %59 = arith.addf %57, %58 : vector<256x64xf32>
    %60 = arith.addf %59, %56 : vector<256x64xf32>
    %cst_68 = arith.constant 0.000000e+00 : f32
    %61 = vector.broadcast %cst_68 : f32 to vector<256x64xf32>
    %62 = arith.maximumf %60, %61 : vector<256x64xf32>
    %63 = vector.shape_cast %62 : vector<256x64xf32> to vector<16x16x64xf32>
    %c0_69 = arith.constant 0 : index
    %c0_70 = arith.constant 0 : index
    %c0_71 = arith.constant 0 : index
    %c0_72 = arith.constant 0 : index
    %64 = vector.load %arg8[%c0_69, %c0_70, %c0_71, %c0_72] : memref<1x16x16x64xf32, #tpu.memory_space<vmem>>, vector<1x16x16x64xf32>
    %65 = vector.shape_cast %64 : vector<1x16x16x64xf32> to vector<16x16x64xf32>
    %66 = vector.shape_cast %63 : vector<16x16x64xf32> to vector<1x16x16x64xf32>
    tpu.vector_store %arg8[%c0_69, %c0_70, %c0_71, %c0_72], %66 {strides = array<i32>} : memref<1x16x16x64xf32, #tpu.memory_space<vmem>>, vector<1x16x16x64xf32>,
    return
  }
  func.func @transform_0(%arg0: i32) -> (i32, i32, i32, i32) {
    %c0_i32 = arith.constant 0 : i32
    %c0_i32_0 = arith.constant 0 : i32
    %c0_i32_1 = arith.constant 0 : i32
    %c0_i32_2 = arith.constant 0 : i32
    return %arg0, %c0_i32, %c0_i32_0, %c0_i32_1 : i32, i32, i32, i32
  }
  func.func @transform_1(%arg0: i32) -> (i32, i32) {
    %c0_i32 = arith.constant 0 : i32
    %c0_i32_0 = arith.constant 0 : i32
    %c0_i32_1 = arith.constant 0 : i32
    return %c0_i32, %c0_i32_0 : i32, i32
  }
  func.func @transform_2(%arg0: i32) -> (i32, i32) {
    %c0_i32 = arith.constant 0 : i32
    %c0_i32_0 = arith.constant 0 : i32
    %c0_i32_1 = arith.constant 0 : i32
    return %c0_i32, %c0_i32_0 : i32, i32
  }
  func.func @transform_3(%arg0: i32) -> (i32, i32, i32) {
    %c0_i32 = arith.constant 0 : i32
    %c0_i32_0 = arith.constant 0 : i32
    %c0_i32_1 = arith.constant 0 : i32
    %c0_i32_2 = arith.constant 0 : i32
    return %c0_i32, %c0_i32_0, %c0_i32_1 : i32, i32, i32
  }
  func.func @transform_4(%arg0: i32) -> (i32, i32) {
    %c0_i32 = arith.constant 0 : i32
    %c0_i32_0 = arith.constant 0 : i32
    %c0_i32_1 = arith.constant 0 : i32
    return %c0_i32, %c0_i32_0 : i32, i32
  }
  func.func @transform_5(%arg0: i32) -> (i32, i32) {
    %c0_i32 = arith.constant 0 : i32
    %c0_i32_0 = arith.constant 0 : i32
    %c0_i32_1 = arith.constant 0 : i32
    return %c0_i32, %c0_i32_0 : i32, i32
  }
  func.func @transform_6(%arg0: i32) -> (i32, i32) {
    %c0_i32 = arith.constant 0 : i32
    %c0_i32_0 = arith.constant 0 : i32
    %c0_i32_1 = arith.constant 0 : i32
    return %c0_i32, %c0_i32_0 : i32, i32
  }
  func.func @transform_7(%arg0: i32) -> (i32, i32, i32, i32) {
    %c0_i32 = arith.constant 0 : i32
    %c0_i32_0 = arith.constant 0 : i32
    %c0_i32_1 = arith.constant 0 : i32
    %c0_i32_2 = arith.constant 0 : i32
    return %arg0, %c0_i32, %c0_i32_0, %c0_i32_1 : i32, i32, i32, i32
  }
}

</mosaic_0001>

<llo_original>
// kernel: tpu_custom_call.1
$region0: #{tpu_custom_call.1}
  #allocation0 [shape = 'u32[]', space=smem, size = 0x4, offset = 0x4, fixed_abs, tag = 'smem constant byte address 0x4 - core index']
  #allocation1 [shape = 'u32[144,128]{1,0:T(1,128)}', space=vmem, size = 0x12000, scoped, tag = 'internal scratch']
  #allocation2 [shape = 'bf16[18,16,384]{2,1,0:T(16,128)(2,1)}', space=vmem, size = 0x36000, scoped, tag = 'scratch operand']
  #allocation3 [shape = 'f32[256,16]{1,0:T(8,128)}', space=vmem, size = 0x20000, scoped, tag = 'scratch operand']
  %s0 = inlined_call_operand.vmem [shape: bf16[2,16,16,64], index: 0, kind: input, shape index: {}]
  %s1 = inlined_call_operand.vmem [shape: bf16[64,16], index: 1, kind: input, shape index: {}]
  %s2 = inlined_call_operand.vmem [shape: f32[1,16], index: 2, kind: input, shape index: {}]
  %s3 = inlined_call_operand.vmem [shape: bf16[3,384,16], index: 3, kind: input, shape index: {}]
  %s4 = inlined_call_operand.vmem [shape: f32[1,16], index: 4, kind: input, shape index: {}]
  %s5 = inlined_call_operand.vmem [shape: bf16[16,64], index: 5, kind: input, shape index: {}]
  %s6 = inlined_call_operand.vmem [shape: f32[1,64], index: 6, kind: input, shape index: {}]
  %s7 = inlined_call_operand.hbm [shape: f32[2,16,16,64], index: 7, kind: output, shape index: {}]
  %s8 = sld [smem:[#allocation0]]
  $region61: #{tpu_custom_call.1} parent=0
    _
  %s10 = ssub.s32 1, %s8
  %s11 = scalar_select 0, %s10, %s8
  $region1: #{tpu_custom_call.1} parent=0
    #allocation4 [shape = 'u8[262144]{0}', space=vmem, size = 0x40000, scoped, tag = 'output window, operand 0']
    #allocation5 [shape = 's32[2]{0}', space=sflag, size = 0x8, scoped, tag = 'scoped memory for tpu_custom_call.1']
    %12 = vsyncpa [#allocation5], 0
    %s13 = scalar_lea.sflag [#allocation5], 1
    %14 = vsyncpa %s13, 0
    loop: start=0, step=1, limit=4
    $region2: #{tpu_custom_call.1} parent=1 // loop_pre_header
      _
    $region3: #{tpu_custom_call.1} parent=1 // loop_header
      %s16 = sphi 0, %s20
      %p17 = scmp.ge.s32.totalorder %s16, 4
      %s26 = sphi 0, %s28
      %s29 = sphi 0, %s26
      %s30 = sphi 0, %s29
      %s46 = sphi 0, %s30
      %s50 = sphi 0, %s50
      %s52 = sphi 0, %s50
      %s53 = sphi 0, %s52
      %s67 = sphi 0, %s53
      %s71 = sphi 0, %s71
      %s73 = sphi 0, %s71
      %s74 = sphi 0, %s73
      %s88 = sphi 0, %s74
      %s92 = sphi 0, %s92
      %s94 = sphi 0, %s92
      %s95 = sphi 0, %s94
      %s109 = sphi 0, %s95
      %s113 = sphi 0, %s113
      %s115 = sphi 0, %s113
      %s116 = sphi 0, %s115
      %s130 = sphi 0, %s116
      %s134 = sphi 0, %s134
      %s136 = sphi 0, %s134
      %s137 = sphi 0, %s136
      %s151 = sphi 0, %s137
      %s155 = sphi 0, %s155
      %s157 = sphi 0, %s155
      %s158 = sphi 0, %s157
      %s172 = sphi 0, %s158
      %s178 = sphi 0, %s180
      %s181 = sphi 0, %s178
      %s182 = sphi 0, %s181
      %s198 = sphi 0, %s182
    $region4: #{tpu_custom_call.1} parent=1 // loop_header_branch
      %19 = sbr.rel (%p17) target = $region8
    $region5: #{tpu_custom_call.1} parent=1 // loop_body
      %s21 = ssub.s32 %s16, 1
      %s22 = ssub.s32 %s16, 2
      %s23 = sadd.s32 %s16, 1
      %s24 = ssub.s32 %s16, %s23
      %p25 = scmp.eq.s32.totalorder %s24, 0
      %s27 = sadd.s32 %s26, 1
      %s28 = scalar_select %p25, %s26, %s27
      %p31 = pneg %p25
      %p32 = scmp.eq.s32.totalorder %s16, 1
      %p33 = por %p31, %p32
      %p34 = scmp.ne.s32.totalorder %s26, %s29
      %p35 = scmp.eq.s32.totalorder %s16, 0
      %p36 = por %p34, %p35
      %p37 = scmp.ne.s32.totalorder %s26, %s29
      %p38 = scmp.eq.s32.totalorder %s21, 1
      %p39 = por %p37, %p38
      %p40 = scmp.ne.s32.totalorder %s29, %s30
      %p41 = scmp.eq.s32.totalorder %s21, 0
      %p42 = por %p40, %p41
      %p43 = scmp.ne.s32.totalorder %s29, %s30
      %p44 = scmp.eq.s32.totalorder %s22, 1
      %p45 = por %p43, %p44
      %p47 = scmp.ne.s32.totalorder %s30, %s46
      %p48 = scmp.eq.s32.totalorder %s22, 0
      %p49 = por %p47, %p48
      %s51 = sadd.s32 %s50, 1
      %p54 = scmp.eq.s32.totalorder %s16, 1
      %p55 = scmp.ne.s32.totalorder %s50, %s52
      %p56 = scmp.eq.s32.totalorder %s16, 0
      %p57 = por %p55, %p56
      %p58 = scmp.ne.s32.totalorder %s50, %s52
      %p59 = scmp.eq.s32.totalorder %s21, 1
      %p60 = por %p58, %p59
      %p61 = scmp.ne.s32.totalorder %s52, %s53
      %p62 = scmp.eq.s32.totalorder %s21, 0
      %p63 = por %p61, %p62
      %p64 = scmp.ne.s32.totalorder %s52, %s53
      %p65 = scmp.eq.s32.totalorder %s22, 1
      %p66 = por %p64, %p65
      %p68 = scmp.ne.s32.totalorder %s53, %s67
      %p69 = scmp.eq.s32.totalorder %s22, 0
      %p70 = por %p68, %p69
      %s72 = sadd.s32 %s71, 1
      %p75 = scmp.eq.s32.totalorder %s16, 1
      %p76 = scmp.ne.s32.totalorder %s71, %s73
      %p77 = scmp.eq.s32.totalorder %s16, 0
      %p78 = por %p76, %p77
      %p79 = scmp.ne.s32.totalorder %s71, %s73
      %p80 = scmp.eq.s32.totalorder %s21, 1
      %p81 = por %p79, %p80
      %p82 = scmp.ne.s32.totalorder %s73, %s74
      %p83 = scmp.eq.s32.totalorder %s21, 0
      %p84 = por %p82, %p83
      %p85 = scmp.ne.s32.totalorder %s73, %s74
      %p86 = scmp.eq.s32.totalorder %s22, 1
      %p87 = por %p85, %p86
      %p89 = scmp.ne.s32.totalorder %s74, %s88
      %p90 = scmp.eq.s32.totalorder %s22, 0
      %p91 = por %p89, %p90
      %s93 = sadd.s32 %s92, 1
      %p96 = scmp.eq.s32.totalorder %s16, 1
      %p97 = scmp.ne.s32.totalorder %s92, %s94
      %p98 = scmp.eq.s32.totalorder %s16, 0
      %p99 = por %p97, %p98
      %p100 = scmp.ne.s32.totalorder %s92, %s94
      %p101 = scmp.eq.s32.totalorder %s21, 1
      %p102 = por %p100, %p101
      %p103 = scmp.ne.s32.totalorder %s94, %s95
      %p104 = scmp.eq.s32.totalorder %s21, 0
      %p105 = por %p103, %p104
      %p106 = scmp.ne.s32.totalorder %s94, %s95
      %p107 = scmp.eq.s32.totalorder %s22, 1
      %p108 = por %p106, %p107
      %p110 = scmp.ne.s32.totalorder %s95, %s109
      %p111 = scmp.eq.s32.totalorder %s22, 0
      %p112 = por %p110, %p111
      %s114 = sadd.s32 %s113, 1
      %p117 = scmp.eq.s32.totalorder %s16, 1
      %p118 = scmp.ne.s32.totalorder %s113, %s115
      %p119 = scmp.eq.s32.totalorder %s16, 0
      %p120 = por %p118, %p119
      %p121 = scmp.ne.s32.totalorder %s113, %s115
      %p122 = scmp.eq.s32.totalorder %s21, 1
      %p123 = por %p121, %p122
      %p124 = scmp.ne.s32.totalorder %s115, %s116
      %p125 = scmp.eq.s32.totalorder %s21, 0
      %p126 = por %p124, %p125
      %p127 = scmp.ne.s32.totalorder %s115, %s116
      %p128 = scmp.eq.s32.totalorder %s22, 1
      %p129 = por %p127, %p128
      %p131 = scmp.ne.s32.totalorder %s116, %s130
      %p132 = scmp.eq.s32.totalorder %s22, 0
      %p133 = por %p131, %p132
      %s135 = sadd.s32 %s134, 1
      %p138 = scmp.eq.s32.totalorder %s16, 1
      %p139 = scmp.ne.s32.totalorder %s134, %s136
      %p140 = scmp.eq.s32.totalorder %s16, 0
      %p141 = por %p139, %p140
      %p142 = scmp.ne.s32.totalorder %s134, %s136
      %p143 = scmp.eq.s32.totalorder %s21, 1
      %p144 = por %p142, %p143
      %p145 = scmp.ne.s32.totalorder %s136, %s137
      %p146 = scmp.eq.s32.totalorder %s21, 0
      %p147 = por %p145, %p146
      %p148 = scmp.ne.s32.totalorder %s136, %s137
      %p149 = scmp.eq.s32.totalorder %s22, 1
      %p150 = por %p148, %p149
      %p152 = scmp.ne.s32.totalorder %s137, %s151
      %p153 = scmp.eq.s32.totalorder %s22, 0
      %p154 = por %p152, %p153
      %s156 = sadd.s32 %s155, 1
      %p159 = scmp.eq.s32.totalorder %s16, 1
      %p160 = scmp.ne.s32.totalorder %s155, %s157
      %p161 = scmp.eq.s32.totalorder %s16, 0
      %p162 = por %p160, %p161
      %p163 = scmp.ne.s32.totalorder %s155, %s157
      %p164 = scmp.eq.s32.totalorder %s21, 1
      %p165 = por %p163, %p164
      %p166 = scmp.ne.s32.totalorder %s157, %s158
      %p167 = scmp.eq.s32.totalorder %s21, 0
      %p168 = por %p166, %p167
      %p169 = scmp.ne.s32.totalorder %s157, %s158
      %p170 = scmp.eq.s32.totalorder %s22, 1
      %p171 = por %p169, %p170
      %p173 = scmp.ne.s32.totalorder %s158, %s172
      %p174 = scmp.eq.s32.totalorder %s22, 0
      %p175 = por %p173, %p174
      %s176 = ssub.s32 %s16, %s23
      %p177 = scmp.eq.s32.totalorder %s176, 0
      %s179 = sadd.s32 %s178, 1
      %s180 = scalar_select %p177, %s178, %s179
      %p183 = pneg %p177
      %p184 = scmp.eq.s32.totalorder %s16, 1
      %p185 = por %p183, %p184
      %p186 = scmp.ne.s32.totalorder %s178, %s181
      %p187 = scmp.eq.s32.totalorder %s16, 0
      %p188 = por %p186, %p187
      %p189 = scmp.ne.s32.totalorder %s178, %s181
      %p190 = scmp.eq.s32.totalorder %s21, 1
      %p191 = por %p189, %p190
      %p192 = scmp.ne.s32.totalorder %s181, %s182
      %p193 = scmp.eq.s32.totalorder %s21, 0
      %p194 = por %p192, %p193
      %p195 = scmp.ne.s32.totalorder %s181, %s182
      %p196 = scmp.eq.s32.totalorder %s22, 1
      %p197 = por %p195, %p196
      %p199 = scmp.ne.s32.totalorder %s182, %s198
      %p200 = scmp.eq.s32.totalorder %s22, 0
      %p201 = por %p199, %p200
      %p202 = scmp.le.s32.totalorder 1, %s16
      %p203 = scmp.lt.s32.totalorder %s16, 3
      %p204 = pnand %p202, %p203
      %p205 = pneg %p204
      // Predicated region
      $region9: #{tpu_custom_call.1} parent=5 // pred_check
        _
      $region10: #{tpu_custom_call.1} parent=5 // pred_check_branch
        %207 = sbr.rel (%p204) target = $region12
      $region11: #{tpu_custom_call.1} parent=5 // pred_region
        %s208 = ssub.s32 %s16, 1
        // Predicated region
        $region13: #{tpu_custom_call.1} parent=11 // pred_check
          %p209 = pneg %p63
        $region14: #{tpu_custom_call.1} parent=11 // pred_check_branch
          %211 = sbr.rel (%p209) target = $region16
        $region15: #{tpu_custom_call.1} parent=11 // pred_region
          _
        $region16: #{tpu_custom_call.1} parent=11 // pred_fallthru
          _
        // Predicated region
        $region17: #{tpu_custom_call.1} parent=11 // pred_check
          %p212 = pneg %p84
        $region18: #{tpu_custom_call.1} parent=11 // pred_check_branch
          %214 = sbr.rel (%p212) target = $region20
        $region19: #{tpu_custom_call.1} parent=11 // pred_region
          _
        $region20: #{tpu_custom_call.1} parent=11 // pred_fallthru
          _
        // Predicated region
        $region21: #{tpu_custom_call.1} parent=11 // pred_check
          %p215 = pneg %p105
        $region22: #{tpu_custom_call.1} parent=11 // pred_check_branch
          %217 = sbr.rel (%p215) target = $region24
        $region23: #{tpu_custom_call.1} parent=11 // pred_region
          _
        $region24: #{tpu_custom_call.1} parent=11 // pred_fallthru
          _
        // Predicated region
        $region25: #{tpu_custom_call.1} parent=11 // pred_check
          %p218 = pneg %p126
        $region26: #{tpu_custom_call.1} parent=11 // pred_check_branch
          %220 = sbr.rel (%p218) target = $region28
        $region27: #{tpu_custom_call.1} parent=11 // pred_region
          _
        $region28: #{tpu_custom_call.1} parent=11 // pred_fallthru
          _
        // Predicated region
        $region29: #{tpu_custom_call.1} parent=11 // pred_check
          %p221 = pneg %p147
        $region30: #{tpu_custom_call.1} parent=11 // pred_check_branch
          %223 = sbr.rel (%p221) target = $region32
        $region31: #{tpu_custom_call.1} parent=11 // pred_region
          _
        $region32: #{tpu_custom_call.1} parent=11 // pred_fallthru
          _
        // Predicated region
        $region33: #{tpu_custom_call.1} parent=11 // pred_check
          %p224 = pneg %p168
        $region34: #{tpu_custom_call.1} parent=11 // pred_check_branch
          %226 = sbr.rel (%p224) target = $region36
        $region35: #{tpu_custom_call.1} parent=11 // pred_region
          _
        $region36: #{tpu_custom_call.1} parent=11 // pred_fallthru
          _
      $region12: #{tpu_custom_call.1} parent=5 // pred_fallthru
        _
      %p227 = scmp.lt.s32.totalorder %s16, 2
      // Predicated region
      $region37: #{tpu_custom_call.1} parent=5 // pred_check
        %p228 = pneg %p227
      $region38: #{tpu_custom_call.1} parent=5 // pred_check_branch
        %230 = sbr.rel (%p228) target = $region40
      $region39: #{tpu_custom_call.1} parent=5 // pred_region
        // Predicated region
        $region41: #{tpu_custom_call.1} parent=39 // pred_check
          %p231 = pneg %p36
        $region42: #{tpu_custom_call.1} parent=39 // pred_check_branch
          %233 = sbr.rel (%p231) target = $region44
        $region43: #{tpu_custom_call.1} parent=39 // pred_region
          %p234 = scmp.lt.s32.totalorder %s16, 1
          %s235 = scalar_select %p234, %s16, 1
          %s236 = smul.addr %s235, 32
          %s237 = smul.addr %s236, 4
          %s238 = scalar_lea.vmem %s0, %s237
        $region44: #{tpu_custom_call.1} parent=39 // pred_fallthru
          _
      $region40: #{tpu_custom_call.1} parent=5 // pred_fallthru
        _
      %p239 = scmp.le.s32.totalorder 1, %s16
      %p240 = scmp.lt.s32.totalorder %s16, 3
      %p241 = pnand %p239, %p240
      %p242 = pneg %p241
      // Predicated region
      $region45: #{tpu_custom_call.1} parent=5 // pred_check
        _
      $region46: #{tpu_custom_call.1} parent=5 // pred_check_branch
        %244 = sbr.rel (%p241) target = $region48
      $region47: #{tpu_custom_call.1} parent=5 // pred_region
        %s245 = ssub.s32 %s16, 1
        %p246 = scmp.lt.s32.totalorder %s21, 1
        %s247 = scalar_select %p246, %s21, 1
        %s248 = smul.addr %s247, 32
        %s249 = smul.addr %s248, 4
        %s250 = scalar_lea.vmem %s0, %s249
        %p251 = pneg %p42
        %p252 = pneg %p39
        %p253 = pneg %p63
        %p254 = pneg %p60
        %p255 = pneg %p84
        %p256 = pneg %p81
        %p257 = pneg %p105
        %p258 = pneg %p102
        %p259 = pneg %p126
        %p260 = pneg %p123
        %p261 = pneg %p147
        %p262 = pneg %p144
        %p263 = pneg %p168
        %p264 = pneg %p165
        %p265 = pneg %p194
        %p266 = pneg %p191
        %s267 = sand.u32 %s181, 1
        %s268 = scalar_lea.sflag [#allocation5], %s267
        %s269 = sand.u32 %s181, 1
        %s270 = smul.addr %s269, 256
        %s271 = scalar_lea.vmem [#allocation4], %s270
        %p272 = scmp.lt.s32.totalorder %s21, 1
        %s273 = scalar_select %p272, %s21, 1
        %s274 = smul.addr %s273, 32
        %s275 = smul.addr %s274, 4
        %s276 = scalar_lea.vmem %s0, %s275
        %278 = vst [vmem:[#allocation2] sm:$0xff] 0
        %279 = vst [vmem:[#allocation2 + $0x8] sm:$0xff] 0
        %280 = vst [vmem:[#allocation2 + $0x10] sm:$0xff] 0
        %281 = vst [vmem:[#allocation2 + $0x18] sm:$0xff] 0
        %282 = vst [vmem:[#allocation2 + $0x20] sm:$0xff] 0
        %283 = vst [vmem:[#allocation2 + $0x28] sm:$0xff] 0
        %284 = vst [vmem:[#allocation2 + $0x30] sm:$0xff] 0
        %285 = vst [vmem:[#allocation2 + $0x38] sm:$0xff] 0
        %286 = vst [vmem:[#allocation2 + $0x40] sm:$0xff] 0
        %287 = vst [vmem:[#allocation2 + $0x48] sm:$0xff] 0
        %288 = vst [vmem:[#allocation2 + $0x50] sm:$0xff] 0
        %289 = vst [vmem:[#allocation2 + $0x58] sm:$0xff] 0
        %290 = vst [vmem:[#allocation2 + $0x60] sm:$0xff] 0
        %291 = vst [vmem:[#allocation2 + $0x68] sm:$0xff] 0
        %292 = vst [vmem:[#allocation2 + $0x70] sm:$0xff] 0
        %293 = vst [vmem:[#allocation2 + $0x78] sm:$0xff] 0
        %294 = vst [vmem:[#allocation2 + $0x80] sm:$0xff] 0
        %295 = vst [vmem:[#allocation2 + $0x88] sm:$0xff] 0
        %296 = vst [vmem:[#allocation2 + $0x90] sm:$0xff] 0
        %297 = vst [vmem:[#allocation2 + $0x98] sm:$0xff] 0
        %298 = vst [vmem:[#allocation2 + $0xa0] sm:$0xff] 0
        %299 = vst [vmem:[#allocation2 + $0xa8] sm:$0xff] 0
        %300 = vst [vmem:[#allocation2 + $0xb0] sm:$0xff] 0
        %301 = vst [vmem:[#allocation2 + $0xb8] sm:$0xff] 0
        %302 = vst [vmem:[#allocation2 + $0xc0] sm:$0xff] 0
        %303 = vst [vmem:[#allocation2 + $0xc8] sm:$0xff] 0
        %304 = vst [vmem:[#allocation2 + $0xd0] sm:$0xff] 0
        %305 = vst [vmem:[#allocation2 + $0xd8] sm:$0xff] 0
        %306 = vst [vmem:[#allocation2 + $0xe0] sm:$0xff] 0
        %307 = vst [vmem:[#allocation2 + $0xe8] sm:$0xff] 0
        %308 = vst [vmem:[#allocation2 + $0xf0] sm:$0xff] 0
        %309 = vst [vmem:[#allocation2 + $0xf8] sm:$0xff] 0
        %310 = vst [vmem:[#allocation2 + $0x100] sm:$0xff] 0
        %311 = vst [vmem:[#allocation2 + $0x108] sm:$0xff] 0
        %312 = vst [vmem:[#allocation2 + $0x110] sm:$0xff] 0
        %313 = vst [vmem:[#allocation2 + $0x118] sm:$0xff] 0
        %314 = vst [vmem:[#allocation2 + $0x120] sm:$0xff] 0
        %315 = vst [vmem:[#allocation2 + $0x128] sm:$0xff] 0
        %316 = vst [vmem:[#allocation2 + $0x130] sm:$0xff] 0
        %317 = vst [vmem:[#allocation2 + $0x138] sm:$0xff] 0
        %318 = vst [vmem:[#allocation2 + $0x140] sm:$0xff] 0
        %319 = vst [vmem:[#allocation2 + $0x148] sm:$0xff] 0
        %320 = vst [vmem:[#allocation2 + $0x150] sm:$0xff] 0
        %321 = vst [vmem:[#allocation2 + $0x158] sm:$0xff] 0
        %322 = vst [vmem:[#allocation2 + $0x160] sm:$0xff] 0
        %323 = vst [vmem:[#allocation2 + $0x168] sm:$0xff] 0
        %324 = vst [vmem:[#allocation2 + $0x170] sm:$0xff] 0
        %325 = vst [vmem:[#allocation2 + $0x178] sm:$0xff] 0
        %326 = vst [vmem:[#allocation2 + $0x180] sm:$0xff] 0
        %327 = vst [vmem:[#allocation2 + $0x188] sm:$0xff] 0
        %328 = vst [vmem:[#allocation2 + $0x190] sm:$0xff] 0
        %329 = vst [vmem:[#allocation2 + $0x198] sm:$0xff] 0
        %330 = vst [vmem:[#allocation2 + $0x1a0] sm:$0xff] 0
        %331 = vst [vmem:[#allocation2 + $0x1a8] sm:$0xff] 0
        %v332 = vld [vmem:[%s1] sm:$0xf]
        %v333 = vld [vmem:[%s1 + $0x4] sm:$0xf]
        %v334 = vld [vmem:[%s1 + $0x8] sm:$0xf]
        %v335 = vld [vmem:[%s1 + $0xc] sm:$0xf]
        %v336 = vld [vmem:[%s1 + $0x10] sm:$0xf]
        %v337 = vld [vmem:[%s1 + $0x14] sm:$0xf]
        %v338 = vld [vmem:[%s1 + $0x18] sm:$0xf]
        %v339 = vld [vmem:[%s1 + $0x1c] sm:$0xf]
        %v340 = vld [vmem:[%s2] sm:$0x1]
        %v341 = vld [vmem:[%s276] sm:$0xf]
        %v342 = vld [vmem:[%s276 + $0x4] sm:$0xf]
        %v343 = vld [vmem:[%s276 + $0x8] sm:$0xf]
        %v344 = vld [vmem:[%s276 + $0xc] sm:$0xf]
        %v345 = vld [vmem:[%s276 + $0x10] sm:$0xf]
        %v346 = vld [vmem:[%s276 + $0x14] sm:$0xf]
        %v347 = vld [vmem:[%s276 + $0x18] sm:$0xf]
        %v348 = vld [vmem:[%s276 + $0x1c] sm:$0xf]
        %v349 = vld [vmem:[%s276 + $0x20] sm:$0xf]
        %v350 = vld [vmem:[%s276 + $0x24] sm:$0xf]
        %v351 = vld [vmem:[%s276 + $0x28] sm:$0xf]
        %v352 = vld [vmem:[%s276 + $0x2c] sm:$0xf]
        %v353 = vld [vmem:[%s276 + $0x30] sm:$0xf]
        %v354 = vld [vmem:[%s276 + $0x34] sm:$0xf]
        %v355 = vld [vmem:[%s276 + $0x38] sm:$0xf]
        %v356 = vld [vmem:[%s276 + $0x3c] sm:$0xf]
        %v357 = vld [vmem:[%s276 + $0x40] sm:$0xf]
        %v358 = vld [vmem:[%s276 + $0x44] sm:$0xf]
        %v359 = vld [vmem:[%s276 + $0x48] sm:$0xf]
        %v360 = vld [vmem:[%s276 + $0x4c] sm:$0xf]
        %v361 = vld [vmem:[%s276 + $0x50] sm:$0xf]
        %v362 = vld [vmem:[%s276 + $0x54] sm:$0xf]
        %v363 = vld [vmem:[%s276 + $0x58] sm:$0xf]
        %v364 = vld [vmem:[%s276 + $0x5c] sm:$0xf]
        %v365 = vld [vmem:[%s276 + $0x60] sm:$0xf]
        %v366 = vld [vmem:[%s276 + $0x64] sm:$0xf]
        %v367 = vld [vmem:[%s276 + $0x68] sm:$0xf]
        %v368 = vld [vmem:[%s276 + $0x6c] sm:$0xf]
        %v369 = vld [vmem:[%s276 + $0x70] sm:$0xf]
        %v370 = vld [vmem:[%s276 + $0x74] sm:$0xf]
        %v371 = vld [vmem:[%s276 + $0x78] sm:$0xf]
        %v372 = vld [vmem:[%s276 + $0x7c] sm:$0xf]
        %v374 = vlaneseq
        %v375 = vshrl.u32 %v374, 7
        %v376 = vsub.s32 0, %v375
        %v377 = vrot.slane %v340, %v376
        %v411 = vunpack.c.l.b16 %v341
        %v412 = vunpack.c.l.b16 %v342
        %v413 = vunpack.c.l.b16 %v343
        %v414 = vunpack.c.l.b16 %v344
        %v415 = vunpack.c.l.b16 %v345
        %v416 = vunpack.c.l.b16 %v346
        %v417 = vunpack.c.l.b16 %v347
        %v418 = vunpack.c.l.b16 %v348
        %v419 = vunpack.c.l.b16 %v349
        %v420 = vunpack.c.l.b16 %v350
        %v421 = vunpack.c.l.b16 %v351
        %v422 = vunpack.c.l.b16 %v352
        %v423 = vunpack.c.l.b16 %v353
        %v424 = vunpack.c.l.b16 %v354
        %v425 = vunpack.c.l.b16 %v355
        %v426 = vunpack.c.l.b16 %v356
        %v427 = vunpack.c.l.b16 %v357
        %v428 = vunpack.c.l.b16 %v358
        %v429 = vunpack.c.l.b16 %v359
        %v430 = vunpack.c.l.b16 %v360
        %v431 = vunpack.c.l.b16 %v361
        %v432 = vunpack.c.l.b16 %v362
        %v433 = vunpack.c.l.b16 %v363
        %v434 = vunpack.c.l.b16 %v364
        %v435 = vunpack.c.l.b16 %v365
        %v436 = vunpack.c.l.b16 %v366
        %v437 = vunpack.c.l.b16 %v367
        %v438 = vunpack.c.l.b16 %v368
        %v439 = vunpack.c.l.b16 %v369
        %v440 = vunpack.c.l.b16 %v370
        %v441 = vunpack.c.l.b16 %v371
        %v442 = vunpack.c.l.b16 %v372
        %v443 = vpack.c.b16 %v412, %v411
        %v444 = vpack.c.b16 %v414, %v413
        %v445 = vpack.c.b16 %v416, %v415
        %v446 = vpack.c.b16 %v418, %v417
        %v447 = vpack.c.b16 %v420, %v419
        %v448 = vpack.c.b16 %v422, %v421
        %v449 = vpack.c.b16 %v424, %v423
        %v450 = vpack.c.b16 %v426, %v425
        %v451 = vpack.c.b16 %v428, %v427
        %v452 = vpack.c.b16 %v430, %v429
        %v453 = vpack.c.b16 %v432, %v431
        %v454 = vpack.c.b16 %v434, %v433
        %v455 = vpack.c.b16 %v436, %v435
        %v456 = vpack.c.b16 %v438, %v437
        %v457 = vpack.c.b16 %v440, %v439
        %v458 = vpack.c.b16 %v442, %v441
        %v467 = vunpack.c.l.b16 %v332
        %v468 = vunpack.c.l.b16 %v333
        %v469 = vunpack.c.l.b16 %v334
        %v470 = vunpack.c.l.b16 %v335
        %v471 = vunpack.c.l.b16 %v336
        %v472 = vunpack.c.l.b16 %v337
        %v473 = vunpack.c.l.b16 %v338
        %v474 = vunpack.c.l.b16 %v339
        %v475 = vpack.c.b16 %v468, %v467
        %v476 = vpack.c.b16 %v470, %v469
        %v477 = vpack.c.b16 %v472, %v471
        %v478 = vpack.c.b16 %v474, %v473
        %vm483 = vcmask 523264
        %v485 = vsel %vm483, %v443, 0
        %v488 = vsel %vm483, %v444, 0
        %v491 = vsel %vm483, %v445, 0
        %v494 = vsel %vm483, %v446, 0
        %v497 = vsel %vm483, %v447, 0
        %v500 = vsel %vm483, %v448, 0
        %v503 = vsel %vm483, %v449, 0
        %v506 = vsel %vm483, %v450, 0
        %v509 = vsel %vm483, %v451, 0
        %v512 = vsel %vm483, %v452, 0
        %v515 = vsel %vm483, %v453, 0
        %v518 = vsel %vm483, %v454, 0
        %v521 = vsel %vm483, %v455, 0
        %v524 = vsel %vm483, %v456, 0
        %v527 = vsel %vm483, %v457, 0
        %v530 = vsel %vm483, %v458, 0
        %532 = vmatprep.subr.bf16.mxu0 0
        %533 = vmatpush1.bf16.msra.mxu0 %v475
        %534 = vmatprep.subr.bf16.mxu0 0
        %535 = vmatpush1.bf16.msra.mxu0 %v476
        %536 = vmatprep.subr.bf16.mxu0 0
        %537 = vmatpush1.bf16.msra.mxu0 %v477
        %538 = vmatprep.subr.bf16.mxu0 0
        %539 = vmatpush1.bf16.msra.mxu0 %v478
        %540 = vmatprep.subr.bf16.mxu0 0
        %541 = vmatpush1.bf16.msra.mxu0 0
        %542 = vmatprep.subr.bf16.mxu0 0
        %543 = vmatpush1.bf16.msra.mxu0 0
        %544 = vmatprep.subr.bf16.mxu0 0
        %545 = vmatpush1.bf16.msra.mxu0 0
        %546 = vmatprep.subr.bf16.mxu0 0
        %547 = vmatpush1.bf16.msra.mxu0 0
        %548 = vmatprep.subr.bf16.mxu0 0
        %549 = vmatpush1.bf16.msra.mxu0 0
        %550 = vmatprep.subr.bf16.mxu0 0
        %551 = vmatpush1.bf16.msra.mxu0 0
        %552 = vmatprep.subr.bf16.mxu0 0
        %553 = vmatpush1.bf16.msra.mxu0 0
        %554 = vmatprep.subr.bf16.mxu0 0
        %555 = vmatpush1.bf16.msra.mxu0 0
        %556 = vmatprep.subr.bf16.mxu0 0
        %557 = vmatpush1.bf16.msra.mxu0 0
        %558 = vmatprep.subr.bf16.mxu0 0
        %559 = vmatpush1.bf16.msra.mxu0 0
        %560 = vmatprep.subr.bf16.mxu0 0
        %561 = vmatpush1.bf16.msra.mxu0 0
        %562 = vmatprep.subr.bf16.mxu0 0
        %563 = vmatpush1.bf16.msra.mxu0 0
        %564 = vmatprep.mubr.bf16.mxu0 0
        %565 = vmatmul.mubr.bf16.gmra.mrb[0].mxu0 %v485
        %v566 = vpop.f32.mrb[0].mxu0
        %v567 = vadd.f32 %v377, %v566
        %v568 = vpop.f32.mrb[0].mxu0
        %v569 = vpop.f32.mrb[0].mxu0
        %v570 = vadd.f32 %v377, %v569
        %v571 = vpop.f32.mrb[0].mxu0
        %572 = vmatprep.mubr.bf16.mxu0 0
        %573 = vmatmul.mubr.bf16.gmra.mrb[0].mxu0 %v488
        %v574 = vpop.f32.mrb[0].mxu0
        %v575 = vadd.f32 %v377, %v574
        %v576 = vpop.f32.mrb[0].mxu0
        %v577 = vpop.f32.mrb[0].mxu0
        %v578 = vadd.f32 %v377, %v577
        %v579 = vpop.f32.mrb[0].mxu0
        %580 = vmatprep.mubr.bf16.mxu0 0
        %581 = vmatmul.mubr.bf16.gmra.mrb[0].mxu0 %v491
        %v582 = vpop.f32.mrb[0].mxu0
        %v583 = vadd.f32 %v377, %v582
        %v584 = vpop.f32.mrb[0].mxu0
        %v585 = vpop.f32.mrb[0].mxu0
        %v586 = vadd.f32 %v377, %v585
        %v587 = vpop.f32.mrb[0].mxu0
        %588 = vmatprep.mubr.bf16.mxu0 0
        %589 = vmatmul.mubr.bf16.gmra.mrb[0].mxu0 %v494
        %v590 = vpop.f32.mrb[0].mxu0
        %v591 = vadd.f32 %v377, %v590
        %v592 = vpop.f32.mrb[0].mxu0
        %v593 = vpop.f32.mrb[0].mxu0
        %v594 = vadd.f32 %v377, %v593
        %v595 = vpop.f32.mrb[0].mxu0
        %596 = vmatprep.mubr.bf16.mxu0 0
        %597 = vmatmul.mubr.bf16.gmra.mrb[0].mxu0 %v497
        %v598 = vpop.f32.mrb[0].mxu0
        %v599 = vadd.f32 %v377, %v598
        %v600 = vpop.f32.mrb[0].mxu0
        %v601 = vpop.f32.mrb[0].mxu0
        %v602 = vadd.f32 %v377, %v601
        %v603 = vpop.f32.mrb[0].mxu0
        %604 = vmatprep.mubr.bf16.mxu0 0
        %605 = vmatmul.mubr.bf16.gmra.mrb[0].mxu0 %v500
        %v606 = vpop.f32.mrb[0].mxu0
        %v607 = vadd.f32 %v377, %v606
        %v608 = vpop.f32.mrb[0].mxu0
        %v609 = vpop.f32.mrb[0].mxu0
        %v610 = vadd.f32 %v377, %v609
        %v611 = vpop.f32.mrb[0].mxu0
        %612 = vmatprep.mubr.bf16.mxu0 0
        %613 = vmatmul.mubr.bf16.gmra.mrb[0].mxu0 %v503
        %v614 = vpop.f32.mrb[0].mxu0
        %v615 = vadd.f32 %v377, %v614
        %v616 = vpop.f32.mrb[0].mxu0
        %v617 = vpop.f32.mrb[0].mxu0
        %v618 = vadd.f32 %v377, %v617
        %v619 = vpop.f32.mrb[0].mxu0
        %620 = vmatprep.mubr.bf16.mxu0 0
        %621 = vmatmul.mubr.bf16.gmra.mrb[0].mxu0 %v506
        %v622 = vpop.f32.mrb[0].mxu0
        %v623 = vadd.f32 %v377, %v622
        %v624 = vpop.f32.mrb[0].mxu0
        %v625 = vpop.f32.mrb[0].mxu0
        %v626 = vadd.f32 %v377, %v625
        %v627 = vpop.f32.mrb[0].mxu0
        %628 = vmatprep.mubr.bf16.mxu0 0
        %629 = vmatmul.mubr.bf16.gmra.mrb[0].mxu0 %v509
        %v630 = vpop.f32.mrb[0].mxu0
        %v631 = vadd.f32 %v377, %v630
        %v632 = vpop.f32.mrb[0].mxu0
        %v633 = vpop.f32.mrb[0].mxu0
        %v634 = vadd.f32 %v377, %v633
        %v635 = vpop.f32.mrb[0].mxu0
        %636 = vmatprep.mubr.bf16.mxu0 0
        %637 = vmatmul.mubr.bf16.gmra.mrb[0].mxu0 %v512
        %v638 = vpop.f32.mrb[0].mxu0
        %v639 = vadd.f32 %v377, %v638
        %v640 = vpop.f32.mrb[0].mxu0
        %v641 = vpop.f32.mrb[0].mxu0
        %v642 = vadd.f32 %v377, %v641
        %v643 = vpop.f32.mrb[0].mxu0
        %644 = vmatprep.mubr.bf16.mxu0 0
        %645 = vmatmul.mubr.bf16.gmra.mrb[0].mxu0 %v515
        %v646 = vpop.f32.mrb[0].mxu0
        %v647 = vadd.f32 %v377, %v646
        %v648 = vpop.f32.mrb[0].mxu0
        %v649 = vpop.f32.mrb[0].mxu0
        %v650 = vadd.f32 %v377, %v649
        %v651 = vpop.f32.mrb[0].mxu0
        %652 = vmatprep.mubr.bf16.mxu0 0
        %653 = vmatmul.mubr.bf16.gmra.mrb[0].mxu0 %v518
        %v654 = vpop.f32.mrb[0].mxu0
        %v655 = vadd.f32 %v377, %v654
        %v656 = vpop.f32.mrb[0].mxu0
        %v657 = vpop.f32.mrb[0].mxu0
        %v658 = vadd.f32 %v377, %v657
        %v659 = vpop.f32.mrb[0].mxu0
        %660 = vmatprep.mubr.bf16.mxu0 0
        %661 = vmatmul.mubr.bf16.gmra.mrb[0].mxu0 %v521
        %v662 = vpop.f32.mrb[0].mxu0
        %v663 = vadd.f32 %v377, %v662
        %v664 = vpop.f32.mrb[0].mxu0
        %v665 = vpop.f32.mrb[0].mxu0
        %v666 = vadd.f32 %v377, %v665
        %v667 = vpop.f32.mrb[0].mxu0
        %668 = vmatprep.mubr.bf16.mxu0 0
        %669 = vmatmul.mubr.bf16.gmra.mrb[0].mxu0 %v524
        %v670 = vpop.f32.mrb[0].mxu0
        %v671 = vadd.f32 %v377, %v670
        %v672 = vpop.f32.mrb[0].mxu0
        %v673 = vpop.f32.mrb[0].mxu0
        %v674 = vadd.f32 %v377, %v673
        %v675 = vpop.f32.mrb[0].mxu0
        %676 = vmatprep.mubr.bf16.mxu0 0
        %677 = vmatmul.mubr.bf16.gmra.mrb[0].mxu0 %v527
        %v678 = vpop.f32.mrb[0].mxu0
        %v679 = vadd.f32 %v377, %v678
        %v680 = vpop.f32.mrb[0].mxu0
        %v681 = vpop.f32.mrb[0].mxu0
        %v682 = vadd.f32 %v377, %v681
        %v683 = vpop.f32.mrb[0].mxu0
        %684 = vmatprep.mubr.bf16.mxu0 0
        %685 = vmatmul.mubr.bf16.gmra.mrb[0].mxu0 %v530
        %v686 = vpop.f32.mrb[0].mxu0
        %v687 = vadd.f32 %v377, %v686
        %v688 = vpop.f32.mrb[0].mxu0
        %v689 = vpop.f32.mrb[0].mxu0
        %v690 = vadd.f32 %v377, %v689
        %v691 = vpop.f32.mrb[0].mxu0
        %692 = vdwg.mxu0
        %v693 = vmax.f32 %v567, 0.0
        %v694 = vmax.f32 %v570, 0.0
        %v695 = vmax.f32 %v575, 0.0
        %v696 = vmax.f32 %v578, 0.0
        %v697 = vmax.f32 %v583, 0.0
        %v698 = vmax.f32 %v586, 0.0
        %v699 = vmax.f32 %v591, 0.0
        %v700 = vmax.f32 %v594, 0.0
        %v701 = vmax.f32 %v599, 0.0
        %v702 = vmax.f32 %v602, 0.0
        %v703 = vmax.f32 %v607, 0.0
        %v704 = vmax.f32 %v610, 0.0
        %v705 = vmax.f32 %v615, 0.0
        %v706 = vmax.f32 %v618, 0.0
        %v707 = vmax.f32 %v623, 0.0
        %v708 = vmax.f32 %v626, 0.0
        %v709 = vmax.f32 %v631, 0.0
        %v710 = vmax.f32 %v634, 0.0
        %v711 = vmax.f32 %v639, 0.0
        %v712 = vmax.f32 %v642, 0.0
        %v713 = vmax.f32 %v647, 0.0
        %v714 = vmax.f32 %v650, 0.0
        %v715 = vmax.f32 %v655, 0.0
        %v716 = vmax.f32 %v658, 0.0
        %v717 = vmax.f32 %v663, 0.0
        %v718 = vmax.f32 %v666, 0.0
        %v719 = vmax.f32 %v671, 0.0
        %v720 = vmax.f32 %v674, 0.0
        %v721 = vmax.f32 %v679, 0.0
        %v722 = vmax.f32 %v682, 0.0
        %v723 = vmax.f32 %v687, 0.0
        %v724 = vmax.f32 %v690, 0.0
        %v725 = vpack.c.bf16 %v694, %v693
        %v726 = vpack.c.bf16 %v696, %v695
        %v727 = vpack.c.bf16 %v698, %v697
        %v728 = vpack.c.bf16 %v700, %v699
        %v729 = vpack.c.bf16 %v702, %v701
        %v730 = vpack.c.bf16 %v704, %v703
        %v731 = vpack.c.bf16 %v706, %v705
        %v732 = vpack.c.bf16 %v708, %v707
        %v733 = vpack.c.bf16 %v710, %v709
        %v734 = vpack.c.bf16 %v712, %v711
        %v735 = vpack.c.bf16 %v714, %v713
        %v736 = vpack.c.bf16 %v716, %v715
        %v737 = vpack.c.bf16 %v718, %v717
        %v738 = vpack.c.bf16 %v720, %v719
        %v739 = vpack.c.bf16 %v722, %v721
        %v740 = vpack.c.bf16 %v724, %v723
        %s741 = scalar_lea.vmem [#allocation2], 24
        %vm742 = vcmask 130048
        %743 = vst.msk [vmem:[%s741 + $0x8] sm:$0xff] %vm742, %v725
        %744 = vst.msk [vmem:[%s741 + $0x20] sm:$0xff] %vm742, %v726
        %745 = vst.msk [vmem:[%s741 + $0x38] sm:$0xff] %vm742, %v727
        %746 = vst.msk [vmem:[%s741 + $0x50] sm:$0xff] %vm742, %v728
        %747 = vst.msk [vmem:[%s741 + $0x68] sm:$0xff] %vm742, %v729
        %748 = vst.msk [vmem:[%s741 + $0x80] sm:$0xff] %vm742, %v730
        %749 = vst.msk [vmem:[%s741 + $0x98] sm:$0xff] %vm742, %v731
        %750 = vst.msk [vmem:[%s741 + $0xb0] sm:$0xff] %vm742, %v732
        %751 = vst.msk [vmem:[%s741 + $0xc8] sm:$0xff] %vm742, %v733
        %752 = vst.msk [vmem:[%s741 + $0xe0] sm:$0xff] %vm742, %v734
        %753 = vst.msk [vmem:[%s741 + $0xf8] sm:$0xff] %vm742, %v735
        %754 = vst.msk [vmem:[%s741 + $0x110] sm:$0xff] %vm742, %v736
        %755 = vst.msk [vmem:[%s741 + $0x128] sm:$0xff] %vm742, %v737
        %756 = vst.msk [vmem:[%s741 + $0x140] sm:$0xff] %vm742, %v738
        %757 = vst.msk [vmem:[%s741 + $0x158] sm:$0xff] %vm742, %v739
        %758 = vst.msk [vmem:[%s741 + $0x170] sm:$0xff] %vm742, %v740
        %v760 = vshrl.u32 %v725, 16
        %v762 = vrot.slane %v760, 7
        %v763 = vshll.u32 %v725, 16
        %v765 = vor.u32 %v762, %v763
        %v767 = vshrl.u32 %v726, 16
        %v769 = vrot.slane %v767, 7
        %v770 = vshll.u32 %v726, 16
        %v772 = vor.u32 %v769, %v770
        %v774 = vshrl.u32 %v727, 16
        %v776 = vrot.slane %v774, 7
        %v777 = vshll.u32 %v727, 16
        %v779 = vor.u32 %v776, %v777
        %v781 = vshrl.u32 %v728, 16
        %v783 = vrot.slane %v781, 7
        %v784 = vshll.u32 %v728, 16
        %v786 = vor.u32 %v783, %v784
        %v788 = vshrl.u32 %v729, 16
        %v790 = vrot.slane %v788, 7
        %v791 = vshll.u32 %v729, 16
        %v793 = vor.u32 %v790, %v791
        %v795 = vshrl.u32 %v730, 16
        %v797 = vrot.slane %v795, 7
        %v798 = vshll.u32 %v730, 16
        %v800 = vor.u32 %v797, %v798
        %v802 = vshrl.u32 %v731, 16
        %v804 = vrot.slane %v802, 7
        %v805 = vshll.u32 %v731, 16
        %v807 = vor.u32 %v804, %v805
        %v809 = vshrl.u32 %v732, 16
        %v811 = vrot.slane %v809, 7
        %v812 = vshll.u32 %v732, 16
        %v814 = vor.u32 %v811, %v812
        %v816 = vshrl.u32 %v733, 16
        %v818 = vrot.slane %v816, 7
        %v819 = vshll.u32 %v733, 16
        %v821 = vor.u32 %v818, %v819
        %v823 = vshrl.u32 %v734, 16
        %v825 = vrot.slane %v823, 7
        %v826 = vshll.u32 %v734, 16
        %v828 = vor.u32 %v825, %v826
        %v830 = vshrl.u32 %v735, 16
        %v832 = vrot.slane %v830, 7
        %v833 = vshll.u32 %v735, 16
        %v835 = vor.u32 %v832, %v833
        %v837 = vshrl.u32 %v736, 16
        %v839 = vrot.slane %v837, 7
        %v840 = vshll.u32 %v736, 16
        %v842 = vor.u32 %v839, %v840
        %v844 = vshrl.u32 %v737, 16
        %v846 = vrot.slane %v844, 7
        %v847 = vshll.u32 %v737, 16
        %v849 = vor.u32 %v846, %v847
        %v851 = vshrl.u32 %v738, 16
        %v853 = vrot.slane %v851, 7
        %v854 = vshll.u32 %v738, 16
        %v856 = vor.u32 %v853, %v854
        %v858 = vshrl.u32 %v739, 16
        %v860 = vrot.slane %v858, 7
        %v861 = vshll.u32 %v739, 16
        %v863 = vor.u32 %v860, %v861
        %v865 = vshrl.u32 %v740, 16
        %v867 = vrot.slane %v865, 7
        %v868 = vshll.u32 %v740, 16
        %v870 = vor.u32 %v867, %v868
        %vm887 = vcmask 130048
        %vm888 = vsmask.f32 7938
        %vm889 = vmand %vm887, %vm888
        %v890 = vld [vmem:[%s741] sm:$0xff]
        %v891 = vsel %vm889, %v765, %v890
        %892 = vst [vmem:[%s741] sm:$0xff] %v891
        %v893 = vld [vmem:[%s741 + $0x18] sm:$0xff]
        %v894 = vsel %vm889, %v772, %v893
        %895 = vst [vmem:[%s741 + $0x18] sm:$0xff] %v894
        %v896 = vld [vmem:[%s741 + $0x30] sm:$0xff]
        %v897 = vsel %vm889, %v779, %v896
        %898 = vst [vmem:[%s741 + $0x30] sm:$0xff] %v897
        %v899 = vld [vmem:[%s741 + $0x48] sm:$0xff]
        %v900 = vsel %vm889, %v786, %v899
        %901 = vst [vmem:[%s741 + $0x48] sm:$0xff] %v900
        %v902 = vld [vmem:[%s741 + $0x60] sm:$0xff]
        %v903 = vsel %vm889, %v793, %v902
        %904 = vst [vmem:[%s741 + $0x60] sm:$0xff] %v903
        %v905 = vld [vmem:[%s741 + $0x78] sm:$0xff]
        %v906 = vsel %vm889, %v800, %v905
        %907 = vst [vmem:[%s741 + $0x78] sm:$0xff] %v906
        %v908 = vld [vmem:[%s741 + $0x90] sm:$0xff]
        %v909 = vsel %vm889, %v807, %v908
        %910 = vst [vmem:[%s741 + $0x90] sm:$0xff] %v909
        %v911 = vld [vmem:[%s741 + $0xa8] sm:$0xff]
        %v912 = vsel %vm889, %v814, %v911
        %913 = vst [vmem:[%s741 + $0xa8] sm:$0xff] %v912
        %v914 = vld [vmem:[%s741 + $0xc0] sm:$0xff]
        %v915 = vsel %vm889, %v821, %v914
        %916 = vst [vmem:[%s741 + $0xc0] sm:$0xff] %v915
        %v917 = vld [vmem:[%s741 + $0xd8] sm:$0xff]
        %v918 = vsel %vm889, %v828, %v917
        %919 = vst [vmem:[%s741 + $0xd8] sm:$0xff] %v918
        %v920 = vld [vmem:[%s741 + $0xf0] sm:$0xff]
        %v921 = vsel %vm889, %v835, %v920
        %922 = vst [vmem:[%s741 + $0xf0] sm:$0xff] %v921
        %v923 = vld [vmem:[%s741 + $0x108] sm:$0xff]
        %v924 = vsel %vm889, %v842, %v923
        %925 = vst [vmem:[%s741 + $0x108] sm:$0xff] %v924
        %v926 = vld [vmem:[%s741 + $0x120] sm:$0xff]
        %v927 = vsel %vm889, %v849, %v926
        %928 = vst [vmem:[%s741 + $0x120] sm:$0xff] %v927
        %v929 = vld [vmem:[%s741 + $0x138] sm:$0xff]
        %v930 = vsel %vm889, %v856, %v929
        %931 = vst [vmem:[%s741 + $0x138] sm:$0xff] %v930
        %v932 = vld [vmem:[%s741 + $0x150] sm:$0xff]
        %v933 = vsel %vm889, %v863, %v932
        %934 = vst [vmem:[%s741 + $0x150] sm:$0xff] %v933
        %v935 = vld [vmem:[%s741 + $0x168] sm:$0xff]
        %v936 = vsel %vm889, %v870, %v935
        %937 = vst [vmem:[%s741 + $0x168] sm:$0xff] %v936
        %vm938 = vcmask 122880
        %vm939 = vsmask.f32 256
        %vm940 = vmand %vm938, %vm939
        %v941 = vld [vmem:[%s741] sm:$0x1]
        %v942 = vsel %vm940, 0, %v941
        %943 = vst [vmem:[%s741] sm:$0x1] %v942
        %v944 = vld [vmem:[%s741 + $0x18] sm:$0x1]
        %v945 = vsel %vm940, 0, %v944
        %946 = vst [vmem:[%s741 + $0x18] sm:$0x1] %v945
        %v947 = vld [vmem:[%s741 + $0x30] sm:$0x1]
        %v948 = vsel %vm940, 0, %v947
        %949 = vst [vmem:[%s741 + $0x30] sm:$0x1] %v948
        %v950 = vld [vmem:[%s741 + $0x48] sm:$0x1]
        %v951 = vsel %vm940, 0, %v950
        %952 = vst [vmem:[%s741 + $0x48] sm:$0x1] %v951
        %v953 = vld [vmem:[%s741 + $0x60] sm:$0x1]
        %v954 = vsel %vm940, 0, %v953
        %955 = vst [vmem:[%s741 + $0x60] sm:$0x1] %v954
        %v956 = vld [vmem:[%s741 + $0x78] sm:$0x1]
        %v957 = vsel %vm940, 0, %v956
        %958 = vst [vmem:[%s741 + $0x78] sm:$0x1] %v957
        %v959 = vld [vmem:[%s741 + $0x90] sm:$0x1]
        %v960 = vsel %vm940, 0, %v959
        %961 = vst [vmem:[%s741 + $0x90] sm:$0x1] %v960
        %v962 = vld [vmem:[%s741 + $0xa8] sm:$0x1]
        %v963 = vsel %vm940, 0, %v962
        %964 = vst [vmem:[%s741 + $0xa8] sm:$0x1] %v963
        %v965 = vld [vmem:[%s741 + $0xc0] sm:$0x1]
        %v966 = vsel %vm940, 0, %v965
        %967 = vst [vmem:[%s741 + $0xc0] sm:$0x1] %v966
        %v968 = vld [vmem:[%s741 + $0xd8] sm:$0x1]
        %v969 = vsel %vm940, 0, %v968
        %970 = vst [vmem:[%s741 + $0xd8] sm:$0x1] %v969
        %v971 = vld [vmem:[%s741 + $0xf0] sm:$0x1]
        %v972 = vsel %vm940, 0, %v971
        %973 = vst [vmem:[%s741 + $0xf0] sm:$0x1] %v972
        %v974 = vld [vmem:[%s741 + $0x108] sm:$0x1]
        %v975 = vsel %vm940, 0, %v974
        %976 = vst [vmem:[%s741 + $0x108] sm:$0x1] %v975
        %v977 = vld [vmem:[%s741 + $0x120] sm:$0x1]
        %v978 = vsel %vm940, 0, %v977
        %979 = vst [vmem:[%s741 + $0x120] sm:$0x1] %v978
        %v980 = vld [vmem:[%s741 + $0x138] sm:$0x1]
        %v981 = vsel %vm940, 0, %v980
        %982 = vst [vmem:[%s741 + $0x138] sm:$0x1] %v981
        %v983 = vld [vmem:[%s741 + $0x150] sm:$0x1]
        %v984 = vsel %vm940, 0, %v983
        %985 = vst [vmem:[%s741 + $0x150] sm:$0x1] %v984
        %v986 = vld [vmem:[%s741 + $0x168] sm:$0x1]
        %v987 = vsel %vm940, 0, %v986
        %988 = vst [vmem:[%s741 + $0x168] sm:$0x1] %v987
        %v989 = vrot.slane %v763, 1
        %v990 = vor.u32 %v760, %v989
        %v991 = vrot.slane %v770, 1
        %v992 = vor.u32 %v767, %v991
        %v993 = vrot.slane %v777, 1
        %v994 = vor.u32 %v774, %v993
        %v995 = vrot.slane %v784, 1
        %v996 = vor.u32 %v781, %v995
        %v997 = vrot.slane %v791, 1
        %v998 = vor.u32 %v788, %v997
        %v999 = vrot.slane %v798, 1
        %v1000 = vor.u32 %v795, %v999
        %v1001 = vrot.slane %v805, 1
        %v1002 = vor.u32 %v802, %v1001
        %v1003 = vrot.slane %v812, 1
        %v1004 = vor.u32 %v809, %v1003
        %v1005 = vrot.slane %v819, 1
        %v1006 = vor.u32 %v816, %v1005
        %v1007 = vrot.slane %v826, 1
        %v1008 = vor.u32 %v823, %v1007
        %v1009 = vrot.slane %v833, 1
        %v1010 = vor.u32 %v830, %v1009
        %v1011 = vrot.slane %v840, 1
        %v1012 = vor.u32 %v837, %v1011
        %v1013 = vrot.slane %v847, 1
        %v1014 = vor.u32 %v844, %v1013
        %v1015 = vrot.slane %v854, 1
        %v1016 = vor.u32 %v851, %v1015
        %v1017 = vrot.slane %v861, 1
        %v1018 = vor.u32 %v858, %v1017
        %v1019 = vrot.slane %v868, 1
        %v1020 = vor.u32 %v865, %v1019
        %vm1037 = vsmask.f32 7424
        %vm1038 = vmand %vm887, %vm1037
        %v1039 = vld [vmem:[%s741 + $0x10] sm:$0xff]
        %v1040 = vsel %vm1038, %v990, %v1039
        %1041 = vst [vmem:[%s741 + $0x10] sm:$0xff] %v1040
        %v1042 = vld [vmem:[%s741 + $0x28] sm:$0xff]
        %v1043 = vsel %vm1038, %v992, %v1042
        %1044 = vst [vmem:[%s741 + $0x28] sm:$0xff] %v1043
        %v1045 = vld [vmem:[%s741 + $0x40] sm:$0xff]
        %v1046 = vsel %vm1038, %v994, %v1045
        %1047 = vst [vmem:[%s741 + $0x40] sm:$0xff] %v1046
        %v1048 = vld [vmem:[%s741 + $0x58] sm:$0xff]
        %v1049 = vsel %vm1038, %v996, %v1048
        %1050 = vst [vmem:[%s741 + $0x58] sm:$0xff] %v1049
        %v1051 = vld [vmem:[%s741 + $0x70] sm:$0xff]
        %v1052 = vsel %vm1038, %v998, %v1051
        %1053 = vst [vmem:[%s741 + $0x70] sm:$0xff] %v1052
        %v1054 = vld [vmem:[%s741 + $0x88] sm:$0xff]
        %v1055 = vsel %vm1038, %v1000, %v1054
        %1056 = vst [vmem:[%s741 + $0x88] sm:$0xff] %v1055
        %v1057 = vld [vmem:[%s741 + $0xa0] sm:$0xff]
        %v1058 = vsel %vm1038, %v1002, %v1057
        %1059 = vst [vmem:[%s741 + $0xa0] sm:$0xff] %v1058
        %v1060 = vld [vmem:[%s741 + $0xb8] sm:$0xff]
        %v1061 = vsel %vm1038, %v1004, %v1060
        %1062 = vst [vmem:[%s741 + $0xb8] sm:$0xff] %v1061
        %v1063 = vld [vmem:[%s741 + $0xd0] sm:$0xff]
        %v1064 = vsel %vm1038, %v1006, %v1063
        %1065 = vst [vmem:[%s741 + $0xd0] sm:$0xff] %v1064
        %v1066 = vld [vmem:[%s741 + $0xe8] sm:$0xff]
        %v1067 = vsel %vm1038, %v1008, %v1066
        %1068 = vst [vmem:[%s741 + $0xe8] sm:$0xff] %v1067
        %v1069 = vld [vmem:[%s741 + $0x100] sm:$0xff]
        %v1070 = vsel %vm1038, %v1010, %v1069
        %1071 = vst [vmem:[%s741 + $0x100] sm:$0xff] %v1070
        %v1072 = vld [vmem:[%s741 + $0x118] sm:$0xff]
        %v1073 = vsel %vm1038, %v1012, %v1072
        %1074 = vst [vmem:[%s741 + $0x118] sm:$0xff] %v1073
        %v1075 = vld [vmem:[%s741 + $0x130] sm:$0xff]
        %v1076 = vsel %vm1038, %v1014, %v1075
        %1077 = vst [vmem:[%s741 + $0x130] sm:$0xff] %v1076
        %v1078 = vld [vmem:[%s741 + $0x148] sm:$0xff]
        %v1079 = vsel %vm1038, %v1016, %v1078
        %1080 = vst [vmem:[%s741 + $0x148] sm:$0xff] %v1079
        %v1081 = vld [vmem:[%s741 + $0x160] sm:$0xff]
        %v1082 = vsel %vm1038, %v1018, %v1081
        %1083 = vst [vmem:[%s741 + $0x160] sm:$0xff] %v1082
        %v1084 = vld [vmem:[%s741 + $0x178] sm:$0xff]
        %v1085 = vsel %vm1038, %v1020, %v1084
        %1086 = vst [vmem:[%s741 + $0x178] sm:$0xff] %v1085
        %vm1087 = vcmask 130055
        %vm1088 = vsmask.f32 7966
        %vm1089 = vmand %vm1087, %vm1088
        %v1090 = vld [vmem:[%s741 + $0x10] sm:$0x80]
        %v1091 = vsel %vm1089, 0, %v1090
        %1092 = vst [vmem:[%s741 + $0x10] sm:$0x80] %v1091
        %v1093 = vld [vmem:[%s741 + $0x28] sm:$0x80]
        %v1094 = vsel %vm1089, 0, %v1093
        %1095 = vst [vmem:[%s741 + $0x28] sm:$0x80] %v1094
        %v1096 = vld [vmem:[%s741 + $0x40] sm:$0x80]
        %v1097 = vsel %vm1089, 0, %v1096
        %1098 = vst [vmem:[%s741 + $0x40] sm:$0x80] %v1097
        %v1099 = vld [vmem:[%s741 + $0x58] sm:$0x80]
        %v1100 = vsel %vm1089, 0, %v1099
        %1101 = vst [vmem:[%s741 + $0x58] sm:$0x80] %v1100
        %v1102 = vld [vmem:[%s741 + $0x70] sm:$0x80]
        %v1103 = vsel %vm1089, 0, %v1102
        %1104 = vst [vmem:[%s741 + $0x70] sm:$0x80] %v1103
        %v1105 = vld [vmem:[%s741 + $0x88] sm:$0x80]
        %v1106 = vsel %vm1089, 0, %v1105
        %1107 = vst [vmem:[%s741 + $0x88] sm:$0x80] %v1106
        %v1108 = vld [vmem:[%s741 + $0xa0] sm:$0x80]
        %v1109 = vsel %vm1089, 0, %v1108
        %1110 = vst [vmem:[%s741 + $0xa0] sm:$0x80] %v1109
        %v1111 = vld [vmem:[%s741 + $0xb8] sm:$0x80]
        %v1112 = vsel %vm1089, 0, %v1111
        %1113 = vst [vmem:[%s741 + $0xb8] sm:$0x80] %v1112
        %v1114 = vld [vmem:[%s741 + $0xd0] sm:$0x80]
        %v1115 = vsel %vm1089, 0, %v1114
        %1116 = vst [vmem:[%s741 + $0xd0] sm:$0x80] %v1115
        %v1117 = vld [vmem:[%s741 + $0xe8] sm:$0x80]
        %v1118 = vsel %vm1089, 0, %v1117
        %1119 = vst [vmem:[%s741 + $0xe8] sm:$0x80] %v1118
        %v1120 = vld [vmem:[%s741 + $0x100] sm:$0x80]
        %v1121 = vsel %vm1089, 0, %v1120
        %1122 = vst [vmem:[%s741 + $0x100] sm:$0x80] %v1121
        %v1123 = vld [vmem:[%s741 + $0x118] sm:$0x80]
        %v1124 = vsel %vm1089, 0, %v1123
        %1125 = vst [vmem:[%s741 + $0x118] sm:$0x80] %v1124
        %v1126 = vld [vmem:[%s741 + $0x130] sm:$0x80]
        %v1127 = vsel %vm1089, 0, %v1126
        %1128 = vst [vmem:[%s741 + $0x130] sm:$0x80] %v1127
        %v1129 = vld [vmem:[%s741 + $0x148] sm:$0x80]
        %v1130 = vsel %vm1089, 0, %v1129
        %1131 = vst [vmem:[%s741 + $0x148] sm:$0x80] %v1130
        %v1132 = vld [vmem:[%s741 + $0x160] sm:$0x80]
        %v1133 = vsel %vm1089, 0, %v1132
        %1134 = vst [vmem:[%s741 + $0x160] sm:$0x80] %v1133
        %v1135 = vld [vmem:[%s741 + $0x178] sm:$0x80]
        %v1136 = vsel %vm1089, 0, %v1135
        %1137 = vst [vmem:[%s741 + $0x178] sm:$0x80] %v1136
        %v1138 = vld [vmem:[%s3] sm:$0xf]
        %v1139 = vld [vmem:[%s3 + $0x4] sm:$0xf]
        %v1140 = vld [vmem:[%s3 + $0x8] sm:$0xf]
        %v1141 = vld [vmem:[%s3 + $0xc] sm:$0xf]
        %v1142 = vld [vmem:[%s3 + $0x10] sm:$0xf]
        %v1143 = vld [vmem:[%s3 + $0x14] sm:$0xf]
        %v1144 = vld [vmem:[%s3 + $0x18] sm:$0xf]
        %v1145 = vld [vmem:[%s3 + $0x1c] sm:$0xf]
        %v1146 = vld [vmem:[%s3 + $0x20] sm:$0xf]
        %v1147 = vld [vmem:[%s3 + $0x24] sm:$0xf]
        %v1148 = vld [vmem:[%s3 + $0x28] sm:$0xf]
        %v1149 = vld [vmem:[%s3 + $0x2c] sm:$0xf]
        %v1150 = vld [vmem:[%s3 + $0x30] sm:$0xf]
        %v1151 = vld [vmem:[%s3 + $0x34] sm:$0xf]
        %v1152 = vld [vmem:[%s3 + $0x38] sm:$0xf]
        %v1153 = vld [vmem:[%s3 + $0x3c] sm:$0xf]
        %v1154 = vld [vmem:[%s3 + $0x40] sm:$0xf]
        %v1155 = vld [vmem:[%s3 + $0x44] sm:$0xf]
        %v1156 = vld [vmem:[%s3 + $0x48] sm:$0xf]
        %v1157 = vld [vmem:[%s3 + $0x4c] sm:$0xf]
        %v1158 = vld [vmem:[%s3 + $0x50] sm:$0xf]
        %v1159 = vld [vmem:[%s3 + $0x54] sm:$0xf]
        %v1160 = vld [vmem:[%s3 + $0x58] sm:$0xf]
        %v1161 = vld [vmem:[%s3 + $0x5c] sm:$0xf]
        %v1162 = vld [vmem:[%s3 + $0x60] sm:$0xf]
        %v1163 = vld [vmem:[%s3 + $0x64] sm:$0xf]
        %v1164 = vld [vmem:[%s3 + $0x68] sm:$0xf]
        %v1165 = vld [vmem:[%s3 + $0x6c] sm:$0xf]
        %v1166 = vld [vmem:[%s3 + $0x70] sm:$0xf]
        %v1167 = vld [vmem:[%s3 + $0x74] sm:$0xf]
        %v1168 = vld [vmem:[%s3 + $0x78] sm:$0xf]
        %v1169 = vld [vmem:[%s3 + $0x7c] sm:$0xf]
        %v1170 = vld [vmem:[%s3 + $0x80] sm:$0xf]
        %v1171 = vld [vmem:[%s3 + $0x84] sm:$0xf]
        %v1172 = vld [vmem:[%s3 + $0x88] sm:$0xf]
        %v1173 = vld [vmem:[%s3 + $0x8c] sm:$0xf]
        %v1174 = vld [vmem:[%s3 + $0x90] sm:$0xf]
        %v1175 = vld [vmem:[%s3 + $0x94] sm:$0xf]
        %v1176 = vld [vmem:[%s3 + $0x98] sm:$0xf]
        %v1177 = vld [vmem:[%s3 + $0x9c] sm:$0xf]
        %v1178 = vld [vmem:[%s3 + $0xa0] sm:$0xf]
        %v1179 = vld [vmem:[%s3 + $0xa4] sm:$0xf]
        %v1180 = vld [vmem:[%s3 + $0xa8] sm:$0xf]
        %v1181 = vld [vmem:[%s3 + $0xac] sm:$0xf]
        %v1182 = vld [vmem:[%s3 + $0xb0] sm:$0xf]
        %v1183 = vld [vmem:[%s3 + $0xb4] sm:$0xf]
        %v1184 = vld [vmem:[%s3 + $0xb8] sm:$0xf]
        %v1185 = vld [vmem:[%s3 + $0xbc] sm:$0xf]
        %s1186 = scalar_lea.vmem %s3, 192
        %v1187 = vld [vmem:[%s1186] sm:$0xf]
        %v1188 = vld [vmem:[%s1186 + $0x4] sm:$0xf]
        %v1189 = vld [vmem:[%s1186 + $0x8] sm:$0xf]
        %v1190 = vld [vmem:[%s1186 + $0xc] sm:$0xf]
        %v1191 = vld [vmem:[%s1186 + $0x10] sm:$0xf]
        %v1192 = vld [vmem:[%s1186 + $0x14] sm:$0xf]
        %v1193 = vld [vmem:[%s1186 + $0x18] sm:$0xf]
        %v1194 = vld [vmem:[%s1186 + $0x1c] sm:$0xf]
        %v1195 = vld [vmem:[%s1186 + $0x20] sm:$0xf]
        %v1196 = vld [vmem:[%s1186 + $0x24] sm:$0xf]
        %v1197 = vld [vmem:[%s1186 + $0x28] sm:$0xf]
        %v1198 = vld [vmem:[%s1186 + $0x2c] sm:$0xf]
        %v1199 = vld [vmem:[%s1186 + $0x30] sm:$0xf]
        %v1200 = vld [vmem:[%s1186 + $0x34] sm:$0xf]
        %v1201 = vld [vmem:[%s1186 + $0x38] sm:$0xf]
        %v1202 = vld [vmem:[%s1186 + $0x3c] sm:$0xf]
        %v1203 = vld [vmem:[%s1186 + $0x40] sm:$0xf]
        %v1204 = vld [vmem:[%s1186 + $0x44] sm:$0xf]
        %v1205 = vld [vmem:[%s1186 + $0x48] sm:$0xf]
        %v1206 = vld [vmem:[%s1186 + $0x4c] sm:$0xf]
        %v1207 = vld [vmem:[%s1186 + $0x50] sm:$0xf]
        %v1208 = vld [vmem:[%s1186 + $0x54] sm:$0xf]
        %v1209 = vld [vmem:[%s1186 + $0x58] sm:$0xf]
        %v1210 = vld [vmem:[%s1186 + $0x5c] sm:$0xf]
        %v1211 = vld [vmem:[%s1186 + $0x60] sm:$0xf]
        %v1212 = vld [vmem:[%s1186 + $0x64] sm:$0xf]
        %v1213 = vld [vmem:[%s1186 + $0x68] sm:$0xf]
        %v1214 = vld [vmem:[%s1186 + $0x6c] sm:$0xf]
        %v1215 = vld [vmem:[%s1186 + $0x70] sm:$0xf]
        %v1216 = vld [vmem:[%s1186 + $0x74] sm:$0xf]
        %v1217 = vld [vmem:[%s1186 + $0x78] sm:$0xf]
        %v1218 = vld [vmem:[%s1186 + $0x7c] sm:$0xf]
        %v1219 = vld [vmem:[%s1186 + $0x80] sm:$0xf]
        %v1220 = vld [vmem:[%s1186 + $0x84] sm:$0xf]
        %v1221 = vld [vmem:[%s1186 + $0x88] sm:$0xf]
        %v1222 = vld [vmem:[%s1186 + $0x8c] sm:$0xf]
        %v1223 = vld [vmem:[%s1186 + $0x90] sm:$0xf]
        %v1224 = vld [vmem:[%s1186 + $0x94] sm:$0xf]
        %v1225 = vld [vmem:[%s1186 + $0x98] sm:$0xf]
        %v1226 = vld [vmem:[%s1186 + $0x9c] sm:$0xf]
        %v1227 = vld [vmem:[%s1186 + $0xa0] sm:$0xf]
        %v1228 = vld [vmem:[%s1186 + $0xa4] sm:$0xf]
        %v1229 = vld [vmem:[%s1186 + $0xa8] sm:$0xf]
        %v1230 = vld [vmem:[%s1186 + $0xac] sm:$0xf]
        %v1231 = vld [vmem:[%s1186 + $0xb0] sm:$0xf]
        %v1232 = vld [vmem:[%s1186 + $0xb4] sm:$0xf]
        %v1233 = vld [vmem:[%s1186 + $0xb8] sm:$0xf]
        %v1234 = vld [vmem:[%s1186 + $0xbc] sm:$0xf]
        %s1235 = scalar_lea.vmem %s3, 384
        %v1236 = vld [vmem:[%s1235] sm:$0xf]
        %v1237 = vld [vmem:[%s1235 + $0x4] sm:$0xf]
        %v1238 = vld [vmem:[%s1235 + $0x8] sm:$0xf]
        %v1239 = vld [vmem:[%s1235 + $0xc] sm:$0xf]
        %v1240 = vld [vmem:[%s1235 + $0x10] sm:$0xf]
        %v1241 = vld [vmem:[%s1235 + $0x14] sm:$0xf]
        %v1242 = vld [vmem:[%s1235 + $0x18] sm:$0xf]
        %v1243 = vld [vmem:[%s1235 + $0x1c] sm:$0xf]
        %v1244 = vld [vmem:[%s1235 + $0x20] sm:$0xf]
        %v1245 = vld [vmem:[%s1235 + $0x24] sm:$0xf]
        %v1246 = vld [vmem:[%s1235 + $0x28] sm:$0xf]
        %v1247 = vld [vmem:[%s1235 + $0x2c] sm:$0xf]
        %v1248 = vld [vmem:[%s1235 + $0x30] sm:$0xf]
        %v1249 = vld [vmem:[%s1235 + $0x34] sm:$0xf]
        %v1250 = vld [vmem:[%s1235 + $0x38] sm:$0xf]
        %v1251 = vld [vmem:[%s1235 + $0x3c] sm:$0xf]
        %v1252 = vld [vmem:[%s1235 + $0x40] sm:$0xf]
        %v1253 = vld [vmem:[%s1235 + $0x44] sm:$0xf]
        %v1254 = vld [vmem:[%s1235 + $0x48] sm:$0xf]
        %v1255 = vld [vmem:[%s1235 + $0x4c] sm:$0xf]
        %v1256 = vld [vmem:[%s1235 + $0x50] sm:$0xf]
        %v1257 = vld [vmem:[%s1235 + $0x54] sm:$0xf]
        %v1258 = vld [vmem:[%s1235 + $0x58] sm:$0xf]
        %v1259 = vld [vmem:[%s1235 + $0x5c] sm:$0xf]
        %v1260 = vld [vmem:[%s1235 + $0x60] sm:$0xf]
        %v1261 = vld [vmem:[%s1235 + $0x64] sm:$0xf]
        %v1262 = vld [vmem:[%s1235 + $0x68] sm:$0xf]
        %v1263 = vld [vmem:[%s1235 + $0x6c] sm:$0xf]
        %v1264 = vld [vmem:[%s1235 + $0x70] sm:$0xf]
        %v1265 = vld [vmem:[%s1235 + $0x74] sm:$0xf]
        %v1266 = vld [vmem:[%s1235 + $0x78] sm:$0xf]
        %v1267 = vld [vmem:[%s1235 + $0x7c] sm:$0xf]
        %v1268 = vld [vmem:[%s1235 + $0x80] sm:$0xf]
        %v1269 = vld [vmem:[%s1235 + $0x84] sm:$0xf]
        %v1270 = vld [vmem:[%s1235 + $0x88] sm:$0xf]
        %v1271 = vld [vmem:[%s1235 + $0x8c] sm:$0xf]
        %v1272 = vld [vmem:[%s1235 + $0x90] sm:$0xf]
        %v1273 = vld [vmem:[%s1235 + $0x94] sm:$0xf]
        %v1274 = vld [vmem:[%s1235 + $0x98] sm:$0xf]
        %v1275 = vld [vmem:[%s1235 + $0x9c] sm:$0xf]
        %v1276 = vld [vmem:[%s1235 + $0xa0] sm:$0xf]
        %v1277 = vld [vmem:[%s1235 + $0xa4] sm:$0xf]
        %v1278 = vld [vmem:[%s1235 + $0xa8] sm:$0xf]
        %v1279 = vld [vmem:[%s1235 + $0xac] sm:$0xf]
        %v1280 = vld [vmem:[%s1235 + $0xb0] sm:$0xf]
        %v1281 = vld [vmem:[%s1235 + $0xb4] sm:$0xf]
        %v1282 = vld [vmem:[%s1235 + $0xb8] sm:$0xf]
        %v1283 = vld [vmem:[%s1235 + $0xbc] sm:$0xf]
        %v1284 = vld [vmem:[%s4] sm:$0x1]
        %v1285 = vld [vmem:[%s5] sm:$0xf]
        %v1286 = vld [vmem:[%s5 + $0x4] sm:$0xf]
        %v1287 = vld [vmem:[%s6] sm:$0x1]
        %v1288 = vld [vmem:[#allocation2] sm:$0xff]
        %v1289 = vld [vmem:[#allocation2 + $0x8] sm:$0xff]
        %v1290 = vld [vmem:[#allocation2 + $0x10] sm:$0xff]
        %v1291 = vld [vmem:[#allocation2 + $0x18] sm:$0xff]
        %v1292 = vld [vmem:[#allocation2 + $0x20] sm:$0xff]
        %v1293 = vld [vmem:[#allocation2 + $0x28] sm:$0xff]
        %v1294 = vld [vmem:[#allocation2 + $0x30] sm:$0xff]
        %v1295 = vld [vmem:[#allocation2 + $0x38] sm:$0xff]
        %v1296 = vld [vmem:[#allocation2 + $0x40] sm:$0xff]
        %v1297 = vld [vmem:[#allocation2 + $0x48] sm:$0xff]
        %v1298 = vld [vmem:[#allocation2 + $0x50] sm:$0xff]
        %v1299 = vld [vmem:[#allocation2 + $0x58] sm:$0xff]
        %v1300 = vld [vmem:[#allocation2 + $0x60] sm:$0xff]
        %v1301 = vld [vmem:[#allocation2 + $0x68] sm:$0xff]
        %v1302 = vld [vmem:[#allocation2 + $0x70] sm:$0xff]
        %v1303 = vld [vmem:[#allocation2 + $0x78] sm:$0xff]
        %v1304 = vld [vmem:[#allocation2 + $0x80] sm:$0xff]
        %v1305 = vld [vmem:[#allocation2 + $0x88] sm:$0xff]
        %v1306 = vld [vmem:[#allocation2 + $0x90] sm:$0xff]
        %v1307 = vld [vmem:[#allocation2 + $0x98] sm:$0xff]
        %v1308 = vld [vmem:[#allocation2 + $0xa0] sm:$0xff]
        %v1309 = vld [vmem:[#allocation2 + $0xa8] sm:$0xff]
        %v1310 = vld [vmem:[#allocation2 + $0xb0] sm:$0xff]
        %v1311 = vld [vmem:[#allocation2 + $0xb8] sm:$0xff]
        %v1312 = vld [vmem:[#allocation2 + $0xc0] sm:$0xff]
        %v1313 = vld [vmem:[#allocation2 + $0xc8] sm:$0xff]
        %v1314 = vld [vmem:[#allocation2 + $0xd0] sm:$0xff]
        %v1315 = vld [vmem:[#allocation2 + $0xd8] sm:$0xff]
        %v1316 = vld [vmem:[#allocation2 + $0xe0] sm:$0xff]
        %v1317 = vld [vmem:[#allocation2 + $0xe8] sm:$0xff]
        %v1318 = vld [vmem:[#allocation2 + $0xf0] sm:$0xff]
        %v1319 = vld [vmem:[#allocation2 + $0xf8] sm:$0xff]
        %v1320 = vld [vmem:[#allocation2 + $0x100] sm:$0xff]
        %v1321 = vld [vmem:[#allocation2 + $0x108] sm:$0xff]
        %v1322 = vld [vmem:[#allocation2 + $0x110] sm:$0xff]
        %v1323 = vld [vmem:[#allocation2 + $0x118] sm:$0xff]
        %v1324 = vld [vmem:[#allocation2 + $0x120] sm:$0xff]
        %v1325 = vld [vmem:[#allocation2 + $0x128] sm:$0xff]
        %v1326 = vld [vmem:[#allocation2 + $0x130] sm:$0xff]
        %v1327 = vld [vmem:[#allocation2 + $0x138] sm:$0xff]
        %v1328 = vld [vmem:[#allocation2 + $0x140] sm:$0xff]
        %v1329 = vld [vmem:[#allocation2 + $0x148] sm:$0xff]
        %v1330 = vld [vmem:[#allocation2 + $0x150] sm:$0xff]
        %v1331 = vld [vmem:[#allocation2 + $0x158] sm:$0xff]
        %v1332 = vld [vmem:[#allocation2 + $0x160] sm:$0xff]
        %v1333 = vld [vmem:[#allocation2 + $0x168] sm:$0xff]
        %v1334 = vld [vmem:[#allocation2 + $0x170] sm:$0xff]
        %v1335 = vld [vmem:[#allocation2 + $0x178] sm:$0xff]
        %v1384 = vunpack.c.l.b16 %v1138
        %v1385 = vunpack.c.l.b16 %v1139
        %v1386 = vunpack.c.l.b16 %v1140
        %v1387 = vunpack.c.l.b16 %v1141
        %v1388 = vunpack.c.l.b16 %v1142
        %v1389 = vunpack.c.l.b16 %v1143
        %v1390 = vunpack.c.l.b16 %v1144
        %v1391 = vunpack.c.l.b16 %v1145
        %v1392 = vunpack.c.l.b16 %v1146
        %v1393 = vunpack.c.l.b16 %v1147
        %v1394 = vunpack.c.l.b16 %v1148
        %v1395 = vunpack.c.l.b16 %v1149
        %v1396 = vunpack.c.l.b16 %v1150
        %v1397 = vunpack.c.l.b16 %v1151
        %v1398 = vunpack.c.l.b16 %v1152
        %v1399 = vunpack.c.l.b16 %v1153
        %v1400 = vunpack.c.l.b16 %v1154
        %v1401 = vunpack.c.l.b16 %v1155
        %v1402 = vunpack.c.l.b16 %v1156
        %v1403 = vunpack.c.l.b16 %v1157
        %v1404 = vunpack.c.l.b16 %v1158
        %v1405 = vunpack.c.l.b16 %v1159
        %v1406 = vunpack.c.l.b16 %v1160
        %v1407 = vunpack.c.l.b16 %v1161
        %v1408 = vunpack.c.l.b16 %v1162
        %v1409 = vunpack.c.l.b16 %v1163
        %v1410 = vunpack.c.l.b16 %v1164
        %v1411 = vunpack.c.l.b16 %v1165
        %v1412 = vunpack.c.l.b16 %v1166
        %v1413 = vunpack.c.l.b16 %v1167
        %v1414 = vunpack.c.l.b16 %v1168
        %v1415 = vunpack.c.l.b16 %v1169
        %v1416 = vunpack.c.l.b16 %v1170
        %v1417 = vunpack.c.l.b16 %v1171
        %v1418 = vunpack.c.l.b16 %v1172
        %v1419 = vunpack.c.l.b16 %v1173
        %v1420 = vunpack.c.l.b16 %v1174
        %v1421 = vunpack.c.l.b16 %v1175
        %v1422 = vunpack.c.l.b16 %v1176
        %v1423 = vunpack.c.l.b16 %v1177
        %v1424 = vunpack.c.l.b16 %v1178
        %v1425 = vunpack.c.l.b16 %v1179
        %v1426 = vunpack.c.l.b16 %v1180
        %v1427 = vunpack.c.l.b16 %v1181
        %v1428 = vunpack.c.l.b16 %v1182
        %v1429 = vunpack.c.l.b16 %v1183
        %v1430 = vunpack.c.l.b16 %v1184
        %v1431 = vunpack.c.l.b16 %v1185
        %v1432 = vpack.c.b16 %v1385, %v1384
        %v1433 = vpack.c.b16 %v1387, %v1386
        %v1434 = vpack.c.b16 %v1389, %v1388
        %v1435 = vpack.c.b16 %v1391, %v1390
        %v1436 = vpack.c.b16 %v1393, %v1392
        %v1437 = vpack.c.b16 %v1395, %v1394
        %v1438 = vpack.c.b16 %v1397, %v1396
        %v1439 = vpack.c.b16 %v1399, %v1398
        %v1440 = vpack.c.b16 %v1401, %v1400
        %v1441 = vpack.c.b16 %v1403, %v1402
        %v1442 = vpack.c.b16 %v1405, %v1404
        %v1443 = vpack.c.b16 %v1407, %v1406
        %v1444 = vpack.c.b16 %v1409, %v1408
        %v1445 = vpack.c.b16 %v1411, %v1410
        %v1446 = vpack.c.b16 %v1413, %v1412
        %v1447 = vpack.c.b16 %v1415, %v1414
        %v1448 = vpack.c.b16 %v1417, %v1416
        %v1449 = vpack.c.b16 %v1419, %v1418
        %v1450 = vpack.c.b16 %v1421, %v1420
        %v1451 = vpack.c.b16 %v1423, %v1422
        %v1452 = vpack.c.b16 %v1425, %v1424
        %v1453 = vpack.c.b16 %v1427, %v1426
        %v1454 = vpack.c.b16 %v1429, %v1428
        %v1455 = vpack.c.b16 %v1431, %v1430
        %1480 = vmatprep.subr.bf16.mxu0 0
        %1481 = vmatpush1.bf16.msra.mxu0 %v1432
        %1482 = vmatprep.subr.bf16.mxu0 0
        %1483 = vmatpush1.bf16.msra.mxu0 %v1433
        %1484 = vmatprep.subr.bf16.mxu0 0
        %1485 = vmatpush1.bf16.msra.mxu0 %v1434
        %1486 = vmatprep.subr.bf16.mxu0 0
        %1487 = vmatpush1.bf16.msra.mxu0 %v1435
        %1488 = vmatprep.subr.bf16.mxu0 0
        %1489 = vmatpush1.bf16.msra.mxu0 %v1436
        %1490 = vmatprep.subr.bf16.mxu0 0
        %1491 = vmatpush1.bf16.msra.mxu0 %v1437
        %1492 = vmatprep.subr.bf16.mxu0 0
        %1493 = vmatpush1.bf16.msra.mxu0 %v1438
        %1494 = vmatprep.subr.bf16.mxu0 0
        %1495 = vmatpush1.bf16.msra.mxu0 %v1439
        %1496 = vmatprep.subr.bf16.mxu0 0
        %1497 = vmatpush1.bf16.msra.mxu0 %v1440
        %1498 = vmatprep.subr.bf16.mxu0 0
        %1499 = vmatpush1.bf16.msra.mxu0 %v1441
        %1500 = vmatprep.subr.bf16.mxu0 0
        %1501 = vmatpush1.bf16.msra.mxu0 %v1442
        %1502 = vmatprep.subr.bf16.mxu0 0
        %1503 = vmatpush1.bf16.msra.mxu0 %v1443
        %1504 = vmatprep.subr.bf16.mxu0 0
        %1505 = vmatpush1.bf16.msra.mxu0 %v1444
        %1506 = vmatprep.subr.bf16.mxu0 0
        %1507 = vmatpush1.bf16.msra.mxu0 %v1445
        %1508 = vmatprep.subr.bf16.mxu0 0
        %1509 = vmatpush1.bf16.msra.mxu0 %v1446
        %1510 = vmatprep.subr.bf16.mxu0 0
        %1511 = vmatpush1.bf16.msra.mxu0 %v1447
        %1512 = vmatprep.mubr.bf16.mxu0 %v1289
        %1513 = vmatmul.mubr.bf16.gmra.mrb[0].mxu0 %v1288
        %v1514 = vpop.f32.mrb[0].mxu0
        %v1515 = vadd.f32 0.0, %v1514
        %v1516 = vpop.f32.mrb[0].mxu0
        %v1517 = vpop.f32.mrb[0].mxu0
        %v1518 = vadd.f32 0.0, %v1517
        %v1519 = vpop.f32.mrb[0].mxu0
        %1520 = vmatprep.mubr.bf16.mxu0 %v1292
        %1521 = vmatmul.mubr.bf16.gmra.mrb[0].mxu0 %v1291
        %v1522 = vpop.f32.mrb[0].mxu0
        %v1523 = vadd.f32 0.0, %v1522
        %v1524 = vpop.f32.mrb[0].mxu0
        %v1525 = vpop.f32.mrb[0].mxu0
        %v1526 = vadd.f32 0.0, %v1525
        %v1527 = vpop.f32.mrb[0].mxu0
        %1528 = vmatprep.mubr.bf16.mxu0 %v1295
        %1529 = vmatmul.mubr.bf16.gmra.mrb[0].mxu0 %v1294
        %v1530 = vpop.f32.mrb[0].mxu0
        %v1531 = vadd.f32 0.0, %v1530
        %v1532 = vpop.f32.mrb[0].mxu0
        %v1533 = vpop.f32.mrb[0].mxu0
        %v1534 = vadd.f32 0.0, %v1533
        %v1535 = vpop.f32.mrb[0].mxu0
        %1536 = vmatprep.mubr.bf16.mxu0 %v1298
        %1537 = vmatmul.mubr.bf16.gmra.mrb[0].mxu0 %v1297
        %v1538 = vpop.f32.mrb[0].mxu0
        %v1539 = vadd.f32 0.0, %v1538
        %v1540 = vpop.f32.mrb[0].mxu0
        %v1541 = vpop.f32.mrb[0].mxu0
        %v1542 = vadd.f32 0.0, %v1541
        %v1543 = vpop.f32.mrb[0].mxu0
        %1544 = vmatprep.mubr.bf16.mxu0 %v1301
        %1545 = vmatmul.mubr.bf16.gmra.mrb[0].mxu0 %v1300
        %v1546 = vpop.f32.mrb[0].mxu0
        %v1547 = vadd.f32 0.0, %v1546
        %v1548 = vpop.f32.mrb[0].mxu0
        %v1549 = vpop.f32.mrb[0].mxu0
        %v1550 = vadd.f32 0.0, %v1549
        %v1551 = vpop.f32.mrb[0].mxu0
        %1552 = vmatprep.mubr.bf16.mxu0 %v1304
        %1553 = vmatmul.mubr.bf16.gmra.mrb[0].mxu0 %v1303
        %v1554 = vpop.f32.mrb[0].mxu0
        %v1555 = vadd.f32 0.0, %v1554
        %v1556 = vpop.f32.mrb[0].mxu0
        %v1557 = vpop.f32.mrb[0].mxu0
        %v1558 = vadd.f32 0.0, %v1557
        %v1559 = vpop.f32.mrb[0].mxu0
        %1560 = vmatprep.mubr.bf16.mxu0 %v1307
        %1561 = vmatmul.mubr.bf16.gmra.mrb[0].mxu0 %v1306
        %v1562 = vpop.f32.mrb[0].mxu0
        %v1563 = vadd.f32 0.0, %v1562
        %v1564 = vpop.f32.mrb[0].mxu0
        %v1565 = vpop.f32.mrb[0].mxu0
        %v1566 = vadd.f32 0.0, %v1565
        %v1567 = vpop.f32.mrb[0].mxu0
        %1568 = vmatprep.mubr.bf16.mxu0 %v1310
        %1569 = vmatmul.mubr.bf16.gmra.mrb[0].mxu0 %v1309
        %v1570 = vpop.f32.mrb[0].mxu0
        %v1571 = vadd.f32 0.0, %v1570
        %v1572 = vpop.f32.mrb[0].mxu0
        %v1573 = vpop.f32.mrb[0].mxu0
        %v1574 = vadd.f32 0.0, %v1573
        %v1575 = vpop.f32.mrb[0].mxu0
        %1576 = vmatprep.mubr.bf16.mxu0 %v1313
        %1577 = vmatmul.mubr.bf16.gmra.mrb[0].mxu0 %v1312
        %v1578 = vpop.f32.mrb[0].mxu0
        %v1579 = vadd.f32 0.0, %v1578
        %v1580 = vpop.f32.mrb[0].mxu0
        %v1581 = vpop.f32.mrb[0].mxu0
        %v1582 = vadd.f32 0.0, %v1581
        %v1583 = vpop.f32.mrb[0].mxu0
        %1584 = vmatprep.mubr.bf16.mxu0 %v1316
        %1585 = vmatmul.mubr.bf16.gmra.mrb[0].mxu0 %v1315
        %v1586 = vpop.f32.mrb[0].mxu0
        %v1587 = vadd.f32 0.0, %v1586
        %v1588 = vpop.f32.mrb[0].mxu0
        %v1589 = vpop.f32.mrb[0].mxu0
        %v1590 = vadd.f32 0.0, %v1589
        %v1591 = vpop.f32.mrb[0].mxu0
        %1592 = vmatprep.mubr.bf16.mxu0 %v1319
        %1593 = vmatmul.mubr.bf16.gmra.mrb[0].mxu0 %v1318
        %v1594 = vpop.f32.mrb[0].mxu0
        %v1595 = vadd.f32 0.0, %v1594
        %v1596 = vpop.f32.mrb[0].mxu0
        %v1597 = vpop.f32.mrb[0].mxu0
        %v1598 = vadd.f32 0.0, %v1597
        %v1599 = vpop.f32.mrb[0].mxu0
        %1600 = vmatprep.mubr.bf16.mxu0 %v1322
        %1601 = vmatmul.mubr.bf16.gmra.mrb[0].mxu0 %v1321
        %v1602 = vpop.f32.mrb[0].mxu0
        %v1603 = vadd.f32 0.0, %v1602
        %v1604 = vpop.f32.mrb[0].mxu0
        %v1605 = vpop.f32.mrb[0].mxu0
        %v1606 = vadd.f32 0.0, %v1605
        %v1607 = vpop.f32.mrb[0].mxu0
        %1608 = vmatprep.mubr.bf16.mxu0 %v1325
        %1609 = vmatmul.mubr.bf16.gmra.mrb[0].mxu0 %v1324
        %v1610 = vpop.f32.mrb[0].mxu0
        %v1611 = vadd.f32 0.0, %v1610
        %v1612 = vpop.f32.mrb[0].mxu0
        %v1613 = vpop.f32.mrb[0].mxu0
        %v1614 = vadd.f32 0.0, %v1613
        %v1615 = vpop.f32.mrb[0].mxu0
        %1616 = vmatprep.mubr.bf16.mxu0 %v1328
        %1617 = vmatmul.mubr.bf16.gmra.mrb[0].mxu0 %v1327
        %v1618 = vpop.f32.mrb[0].mxu0
        %v1619 = vadd.f32 0.0, %v1618
        %v1620 = vpop.f32.mrb[0].mxu0
        %v1621 = vpop.f32.mrb[0].mxu0
        %v1622 = vadd.f32 0.0, %v1621
        %v1623 = vpop.f32.mrb[0].mxu0
        %1624 = vmatprep.mubr.bf16.mxu0 %v1331
        %1625 = vmatmul.mubr.bf16.gmra.mrb[0].mxu0 %v1330
        %v1626 = vpop.f32.mrb[0].mxu0
        %v1627 = vadd.f32 0.0, %v1626
        %v1628 = vpop.f32.mrb[0].mxu0
        %v1629 = vpop.f32.mrb[0].mxu0
        %v1630 = vadd.f32 0.0, %v1629
        %v1631 = vpop.f32.mrb[0].mxu0
        %1632 = vmatprep.mubr.bf16.mxu0 %v1334
        %1633 = vmatmul.mubr.bf16.gmra.mrb[0].mxu0 %v1333
        %v1634 = vpop.f32.mrb[0].mxu0
        %v1635 = vadd.f32 0.0, %v1634
        %v1636 = vpop.f32.mrb[0].mxu0
        %v1637 = vpop.f32.mrb[0].mxu0
        %v1638 = vadd.f32 0.0, %v1637
        %v1639 = vpop.f32.mrb[0].mxu0
        %1640 = vdwg.mxu0
        %1641 = vmatprep.subr.bf16.mxu0 0
        %1642 = vmatpush1.bf16.msra.mxu0 %v1448
        %1643 = vmatprep.subr.bf16.mxu0 0
        %1644 = vmatpush1.bf16.msra.mxu0 %v1449
        %1645 = vmatprep.subr.bf16.mxu0 0
        %1646 = vmatpush1.bf16.msra.mxu0 %v1450
        %1647 = vmatprep.subr.bf16.mxu0 0
        %1648 = vmatpush1.bf16.msra.mxu0 %v1451
        %1649 = vmatprep.subr.bf16.mxu0 0
        %1650 = vmatpush1.bf16.msra.mxu0 %v1452
        %1651 = vmatprep.subr.bf16.mxu0 0
        %1652 = vmatpush1.bf16.msra.mxu0 %v1453
        %1653 = vmatprep.subr.bf16.mxu0 0
        %1654 = vmatpush1.bf16.msra.mxu0 %v1454
        %1655 = vmatprep.subr.bf16.mxu0 0
        %1656 = vmatpush1.bf16.msra.mxu0 %v1455
        %1657 = vmatprep.subr.bf16.mxu0 0
        %1658 = vmatpush1.bf16.msra.mxu0 0
        %1659 = vmatprep.subr.bf16.mxu0 0
        %1660 = vmatpush1.bf16.msra.mxu0 0
        %1661 = vmatprep.subr.bf16.mxu0 0
        %1662 = vmatpush1.bf16.msra.mxu0 0
        %1663 = vmatprep.subr.bf16.mxu0 0
        %1664 = vmatpush1.bf16.msra.mxu0 0
        %1665 = vmatprep.subr.bf16.mxu0 0
        %1666 = vmatpush1.bf16.msra.mxu0 0
        %1667 = vmatprep.subr.bf16.mxu0 0
        %1668 = vmatpush1.bf16.msra.mxu0 0
        %1669 = vmatprep.subr.bf16.mxu0 0
        %1670 = vmatpush1.bf16.msra.mxu0 0
        %1671 = vmatprep.subr.bf16.mxu0 0
        %1672 = vmatpush1.bf16.msra.mxu0 0
        %1673 = vmatprep.mubr.bf16.mxu0 0
        %1674 = vmatmul.mubr.bf16.gmra.mrb[0].mxu0 %v1290
        %v1675 = vpop.f32.mrb[0].mxu0
        %v1676 = vadd.f32 %v1515, %v1675
        %v1677 = vpop.f32.mrb[0].mxu0
        %v1678 = vpop.f32.mrb[0].mxu0
        %v1679 = vadd.f32 %v1518, %v1678
        %v1680 = vpop.f32.mrb[0].mxu0
        %1681 = vmatprep.mubr.bf16.mxu0 0
        %1682 = vmatmul.mubr.bf16.gmra.mrb[0].mxu0 %v1293
        %v1683 = vpop.f32.mrb[0].mxu0
        %v1684 = vadd.f32 %v1523, %v1683
        %v1685 = vpop.f32.mrb[0].mxu0
        %v1686 = vpop.f32.mrb[0].mxu0
        %v1687 = vadd.f32 %v1526, %v1686
        %v1688 = vpop.f32.mrb[0].mxu0
        %1689 = vmatprep.mubr.bf16.mxu0 0
        %1690 = vmatmul.mubr.bf16.gmra.mrb[0].mxu0 %v1296
        %v1691 = vpop.f32.mrb[0].mxu0
        %v1692 = vadd.f32 %v1531, %v1691
        %v1693 = vpop.f32.mrb[0].mxu0
        %v1694 = vpop.f32.mrb[0].mxu0
        %v1695 = vadd.f32 %v1534, %v1694
        %v1696 = vpop.f32.mrb[0].mxu0
        %1697 = vmatprep.mubr.bf16.mxu0 0
        %1698 = vmatmul.mubr.bf16.gmra.mrb[0].mxu0 %v1299
        %v1699 = vpop.f32.mrb[0].mxu0
        %v1700 = vadd.f32 %v1539, %v1699
        %v1701 = vpop.f32.mrb[0].mxu0
        %v1702 = vpop.f32.mrb[0].mxu0
        %v1703 = vadd.f32 %v1542, %v1702
        %v1704 = vpop.f32.mrb[0].mxu0
        %1705 = vmatprep.mubr.bf16.mxu0 0
        %1706 = vmatmul.mubr.bf16.gmra.mrb[0].mxu0 %v1302
        %v1707 = vpop.f32.mrb[0].mxu0
        %v1708 = vadd.f32 %v1547, %v1707
        %v1709 = vpop.f32.mrb[0].mxu0
        %v1710 = vpop.f32.mrb[0].mxu0
        %v1711 = vadd.f32 %v1550, %v1710
        %v1712 = vpop.f32.mrb[0].mxu0
        %1713 = vmatprep.mubr.bf16.mxu0 0
        %1714 = vmatmul.mubr.bf16.gmra.mrb[0].mxu0 %v1305
        %v1715 = vpop.f32.mrb[0].mxu0
        %v1716 = vadd.f32 %v1555, %v1715
        %v1717 = vpop.f32.mrb[0].mxu0
        %v1718 = vpop.f32.mrb[0].mxu0
        %v1719 = vadd.f32 %v1558, %v1718
        %v1720 = vpop.f32.mrb[0].mxu0
        %1721 = vmatprep.mubr.bf16.mxu0 0
        %1722 = vmatmul.mubr.bf16.gmra.mrb[0].mxu0 %v1308
        %v1723 = vpop.f32.mrb[0].mxu0
        %v1724 = vadd.f32 %v1563, %v1723
        %v1725 = vpop.f32.mrb[0].mxu0
        %v1726 = vpop.f32.mrb[0].mxu0
        %v1727 = vadd.f32 %v1566, %v1726
        %v1728 = vpop.f32.mrb[0].mxu0
        %1729 = vmatprep.mubr.bf16.mxu0 0
        %1730 = vmatmul.mubr.bf16.gmra.mrb[0].mxu0 %v1311
        %v1731 = vpop.f32.mrb[0].mxu0
        %v1732 = vadd.f32 %v1571, %v1731
        %v1733 = vpop.f32.mrb[0].mxu0
        %v1734 = vpop.f32.mrb[0].mxu0
        %v1735 = vadd.f32 %v1574, %v1734
        %v1736 = vpop.f32.mrb[0].mxu0
        %1737 = vmatprep.mubr.bf16.mxu0 0
        %1738 = vmatmul.mubr.bf16.gmra.mrb[0].mxu0 %v1314
        %v1739 = vpop.f32.mrb[0].mxu0
        %v1740 = vadd.f32 %v1579, %v1739
        %v1741 = vpop.f32.mrb[0].mxu0
        %v1742 = vpop.f32.mrb[0].mxu0
        %v1743 = vadd.f32 %v1582, %v1742
        %v1744 = vpop.f32.mrb[0].mxu0
        %1745 = vmatprep.mubr.bf16.mxu0 0
        %1746 = vmatmul.mubr.bf16.gmra.mrb[0].mxu0 %v1317
        %v1747 = vpop.f32.mrb[0].mxu0
        %v1748 = vadd.f32 %v1587, %v1747
        %v1749 = vpop.f32.mrb[0].mxu0
        %v1750 = vpop.f32.mrb[0].mxu0
        %v1751 = vadd.f32 %v1590, %v1750
        %v1752 = vpop.f32.mrb[0].mxu0
        %1753 = vmatprep.mubr.bf16.mxu0 0
        %1754 = vmatmul.mubr.bf16.gmra.mrb[0].mxu0 %v1320
        %v1755 = vpop.f32.mrb[0].mxu0
        %v1756 = vadd.f32 %v1595, %v1755
        %v1757 = vpop.f32.mrb[0].mxu0
        %v1758 = vpop.f32.mrb[0].mxu0
        %v1759 = vadd.f32 %v1598, %v1758
        %v1760 = vpop.f32.mrb[0].mxu0
        %1761 = vmatprep.mubr.bf16.mxu0 0
        %1762 = vmatmul.mubr.bf16.gmra.mrb[0].mxu0 %v1323
        %v1763 = vpop.f32.mrb[0].mxu0
        %v1764 = vadd.f32 %v1603, %v1763
        %v1765 = vpop.f32.mrb[0].mxu0
        %v1766 = vpop.f32.mrb[0].mxu0
        %v1767 = vadd.f32 %v1606, %v1766
        %v1768 = vpop.f32.mrb[0].mxu0
        %1769 = vmatprep.mubr.bf16.mxu0 0
        %1770 = vmatmul.mubr.bf16.gmra.mrb[0].mxu0 %v1326
        %v1771 = vpop.f32.mrb[0].mxu0
        %v1772 = vadd.f32 %v1611, %v1771
        %v1773 = vpop.f32.mrb[0].mxu0
        %v1774 = vpop.f32.mrb[0].mxu0
        %v1775 = vadd.f32 %v1614, %v1774
        %v1776 = vpop.f32.mrb[0].mxu0
        %1777 = vmatprep.mubr.bf16.mxu0 0
        %1778 = vmatmul.mubr.bf16.gmra.mrb[0].mxu0 %v1329
        %v1779 = vpop.f32.mrb[0].mxu0
        %v1780 = vadd.f32 %v1619, %v1779
        %v1781 = vpop.f32.mrb[0].mxu0
        %v1782 = vpop.f32.mrb[0].mxu0
        %v1783 = vadd.f32 %v1622, %v1782
        %v1784 = vpop.f32.mrb[0].mxu0
        %1785 = vmatprep.mubr.bf16.mxu0 0
        %1786 = vmatmul.mubr.bf16.gmra.mrb[0].mxu0 %v1332
        %v1787 = vpop.f32.mrb[0].mxu0
        %v1788 = vadd.f32 %v1627, %v1787
        %v1789 = vpop.f32.mrb[0].mxu0
        %v1790 = vpop.f32.mrb[0].mxu0
        %v1791 = vadd.f32 %v1630, %v1790
        %v1792 = vpop.f32.mrb[0].mxu0
        %1793 = vmatprep.mubr.bf16.mxu0 0
        %1794 = vmatmul.mubr.bf16.gmra.mrb[0].mxu0 %v1335
        %v1795 = vpop.f32.mrb[0].mxu0
        %v1796 = vadd.f32 %v1635, %v1795
        %v1797 = vpop.f32.mrb[0].mxu0
        %v1798 = vpop.f32.mrb[0].mxu0
        %v1799 = vadd.f32 %v1638, %v1798
        %v1800 = vpop.f32.mrb[0].mxu0
        %1801 = vdwg.mxu0
        %1802 = vst.msk [vmem:[#allocation3] sm:$0xff] %vm742, %v1676
        %1803 = vst.msk [vmem:[#allocation3 + $0x8] sm:$0xff] %vm742, %v1679
        %1804 = vst.msk [vmem:[#allocation3 + $0x10] sm:$0xff] %vm742, %v1684
        %1805 = vst.msk [vmem:[#allocation3 + $0x18] sm:$0xff] %vm742, %v1687
        %1806 = vst.msk [vmem:[#allocation3 + $0x20] sm:$0xff] %vm742, %v1692
        %1807 = vst.msk [vmem:[#allocation3 + $0x28] sm:$0xff] %vm742, %v1695
        %1808 = vst.msk [vmem:[#allocation3 + $0x30] sm:$0xff] %vm742, %v1700
        %1809 = vst.msk [vmem:[#allocation3 + $0x38] sm:$0xff] %vm742, %v1703
        %1810 = vst.msk [vmem:[#allocation3 + $0x40] sm:$0xff] %vm742, %v1708
        %1811 = vst.msk [vmem:[#allocation3 + $0x48] sm:$0xff] %vm742, %v1711
        %1812 = vst.msk [vmem:[#allocation3 + $0x50] sm:$0xff] %vm742, %v1716
        %1813 = vst.msk [vmem:[#allocation3 + $0x58] sm:$0xff] %vm742, %v1719
        %1814 = vst.msk [vmem:[#allocation3 + $0x60] sm:$0xff] %vm742, %v1724
        %1815 = vst.msk [vmem:[#allocation3 + $0x68] sm:$0xff] %vm742, %v1727
        %1816 = vst.msk [vmem:[#allocation3 + $0x70] sm:$0xff] %vm742, %v1732
        %1817 = vst.msk [vmem:[#allocation3 + $0x78] sm:$0xff] %vm742, %v1735
        %1818 = vst.msk [vmem:[#allocation3 + $0x80] sm:$0xff] %vm742, %v1740
        %1819 = vst.msk [vmem:[#allocation3 + $0x88] sm:$0xff] %vm742, %v1743
        %1820 = vst.msk [vmem:[#allocation3 + $0x90] sm:$0xff] %vm742, %v1748
        %1821 = vst.msk [vmem:[#allocation3 + $0x98] sm:$0xff] %vm742, %v1751
        %1822 = vst.msk [vmem:[#allocation3 + $0xa0] sm:$0xff] %vm742, %v1756
        %1823 = vst.msk [vmem:[#allocation3 + $0xa8] sm:$0xff] %vm742, %v1759
        %1824 = vst.msk [vmem:[#allocation3 + $0xb0] sm:$0xff] %vm742, %v1764
        %1825 = vst.msk [vmem:[#allocation3 + $0xb8] sm:$0xff] %vm742, %v1767
        %1826 = vst.msk [vmem:[#allocation3 + $0xc0] sm:$0xff] %vm742, %v1772
        %1827 = vst.msk [vmem:[#allocation3 + $0xc8] sm:$0xff] %vm742, %v1775
        %1828 = vst.msk [vmem:[#allocation3 + $0xd0] sm:$0xff] %vm742, %v1780
        %1829 = vst.msk [vmem:[#allocation3 + $0xd8] sm:$0xff] %vm742, %v1783
        %1830 = vst.msk [vmem:[#allocation3 + $0xe0] sm:$0xff] %vm742, %v1788
        %1831 = vst.msk [vmem:[#allocation3 + $0xe8] sm:$0xff] %vm742, %v1791
        %1832 = vst.msk [vmem:[#allocation3 + $0xf0] sm:$0xff] %vm742, %v1796
        %1833 = vst.msk [vmem:[#allocation3 + $0xf8] sm:$0xff] %vm742, %v1799
        %v1834 = vld [vmem:[%s741] sm:$0xff]
        %v1835 = vld [vmem:[%s741 + $0x8] sm:$0xff]
        %v1836 = vld [vmem:[%s741 + $0x10] sm:$0xff]
        %v1837 = vld [vmem:[%s741 + $0x18] sm:$0xff]
        %v1838 = vld [vmem:[%s741 + $0x20] sm:$0xff]
        %v1839 = vld [vmem:[%s741 + $0x28] sm:$0xff]
        %v1840 = vld [vmem:[%s741 + $0x30] sm:$0xff]
        %v1841 = vld [vmem:[%s741 + $0x38] sm:$0xff]
        %v1842 = vld [vmem:[%s741 + $0x40] sm:$0xff]
        %v1843 = vld [vmem:[%s741 + $0x48] sm:$0xff]
        %v1844 = vld [vmem:[%s741 + $0x50] sm:$0xff]
        %v1845 = vld [vmem:[%s741 + $0x58] sm:$0xff]
        %v1846 = vld [vmem:[%s741 + $0x60] sm:$0xff]
        %v1847 = vld [vmem:[%s741 + $0x68] sm:$0xff]
        %v1848 = vld [vmem:[%s741 + $0x70] sm:$0xff]
        %v1849 = vld [vmem:[%s741 + $0x78] sm:$0xff]
        %v1850 = vld [vmem:[%s741 + $0x80] sm:$0xff]
        %v1851 = vld [vmem:[%s741 + $0x88] sm:$0xff]
        %v1852 = vld [vmem:[%s741 + $0x90] sm:$0xff]
        %v1853 = vld [vmem:[%s741 + $0x98] sm:$0xff]
        %v1854 = vld [vmem:[%s741 + $0xa0] sm:$0xff]
        %v1855 = vld [vmem:[%s741 + $0xa8] sm:$0xff]
        %v1856 = vld [vmem:[%s741 + $0xb0] sm:$0xff]
        %v1857 = vld [vmem:[%s741 + $0xb8] sm:$0xff]
        %v1858 = vld [vmem:[%s741 + $0xc0] sm:$0xff]
        %v1859 = vld [vmem:[%s741 + $0xc8] sm:$0xff]
        %v1860 = vld [vmem:[%s741 + $0xd0] sm:$0xff]
        %v1861 = vld [vmem:[%s741 + $0xd8] sm:$0xff]
        %v1862 = vld [vmem:[%s741 + $0xe0] sm:$0xff]
        %v1863 = vld [vmem:[%s741 + $0xe8] sm:$0xff]
        %v1864 = vld [vmem:[%s741 + $0xf0] sm:$0xff]
        %v1865 = vld [vmem:[%s741 + $0xf8] sm:$0xff]
        %v1866 = vld [vmem:[%s741 + $0x100] sm:$0xff]
        %v1867 = vld [vmem:[%s741 + $0x108] sm:$0xff]
        %v1868 = vld [vmem:[%s741 + $0x110] sm:$0xff]
        %v1869 = vld [vmem:[%s741 + $0x118] sm:$0xff]
        %v1870 = vld [vmem:[%s741 + $0x120] sm:$0xff]
        %v1871 = vld [vmem:[%s741 + $0x128] sm:$0xff]
        %v1872 = vld [vmem:[%s741 + $0x130] sm:$0xff]
        %v1873 = vld [vmem:[%s741 + $0x138] sm:$0xff]
        %v1874 = vld [vmem:[%s741 + $0x140] sm:$0xff]
        %v1875 = vld [vmem:[%s741 + $0x148] sm:$0xff]
        %v1876 = vld [vmem:[%s741 + $0x150] sm:$0xff]
        %v1877 = vld [vmem:[%s741 + $0x158] sm:$0xff]
        %v1878 = vld [vmem:[%s741 + $0x160] sm:$0xff]
        %v1879 = vld [vmem:[%s741 + $0x168] sm:$0xff]
        %v1880 = vld [vmem:[%s741 + $0x170] sm:$0xff]
        %v1881 = vld [vmem:[%s741 + $0x178] sm:$0xff]
        %v1882 = vld [vmem:[#allocation3] sm:$0xff]
        %v1883 = vld [vmem:[#allocation3 + $0x8] sm:$0xff]
        %v1884 = vld [vmem:[#allocation3 + $0x10] sm:$0xff]
        %v1885 = vld [vmem:[#allocation3 + $0x18] sm:$0xff]
        %v1886 = vld [vmem:[#allocation3 + $0x20] sm:$0xff]
        %v1887 = vld [vmem:[#allocation3 + $0x28] sm:$0xff]
        %v1888 = vld [vmem:[#allocation3 + $0x30] sm:$0xff]
        %v1889 = vld [vmem:[#allocation3 + $0x38] sm:$0xff]
        %v1890 = vld [vmem:[#allocation3 + $0x40] sm:$0xff]
        %v1891 = vld [vmem:[#allocation3 + $0x48] sm:$0xff]
        %v1892 = vld [vmem:[#allocation3 + $0x50] sm:$0xff]
        %v1893 = vld [vmem:[#allocation3 + $0x58] sm:$0xff]
        %v1894 = vld [vmem:[#allocation3 + $0x60] sm:$0xff]
        %v1895 = vld [vmem:[#allocation3 + $0x68] sm:$0xff]
        %v1896 = vld [vmem:[#allocation3 + $0x70] sm:$0xff]
        %v1897 = vld [vmem:[#allocation3 + $0x78] sm:$0xff]
        %v1898 = vld [vmem:[#allocation3 + $0x80] sm:$0xff]
        %v1899 = vld [vmem:[#allocation3 + $0x88] sm:$0xff]
        %v1900 = vld [vmem:[#allocation3 + $0x90] sm:$0xff]
        %v1901 = vld [vmem:[#allocation3 + $0x98] sm:$0xff]
        %v1902 = vld [vmem:[#allocation3 + $0xa0] sm:$0xff]
        %v1903 = vld [vmem:[#allocation3 + $0xa8] sm:$0xff]
        %v1904 = vld [vmem:[#allocation3 + $0xb0] sm:$0xff]
        %v1905 = vld [vmem:[#allocation3 + $0xb8] sm:$0xff]
        %v1906 = vld [vmem:[#allocation3 + $0xc0] sm:$0xff]
        %v1907 = vld [vmem:[#allocation3 + $0xc8] sm:$0xff]
        %v1908 = vld [vmem:[#allocation3 + $0xd0] sm:$0xff]
        %v1909 = vld [vmem:[#allocation3 + $0xd8] sm:$0xff]
        %v1910 = vld [vmem:[#allocation3 + $0xe0] sm:$0xff]
        %v1911 = vld [vmem:[#allocation3 + $0xe8] sm:$0xff]
        %v1912 = vld [vmem:[#allocation3 + $0xf0] sm:$0xff]
        %v1913 = vld [vmem:[#allocation3 + $0xf8] sm:$0xff]
        %v1962 = vunpack.c.l.b16 %v1187
        %v1963 = vunpack.c.l.b16 %v1188
        %v1964 = vunpack.c.l.b16 %v1189
        %v1965 = vunpack.c.l.b16 %v1190
        %v1966 = vunpack.c.l.b16 %v1191
        %v1967 = vunpack.c.l.b16 %v1192
        %v1968 = vunpack.c.l.b16 %v1193
        %v1969 = vunpack.c.l.b16 %v1194
        %v1970 = vunpack.c.l.b16 %v1195
        %v1971 = vunpack.c.l.b16 %v1196
        %v1972 = vunpack.c.l.b16 %v1197
        %v1973 = vunpack.c.l.b16 %v1198
        %v1974 = vunpack.c.l.b16 %v1199
        %v1975 = vunpack.c.l.b16 %v1200
        %v1976 = vunpack.c.l.b16 %v1201
        %v1977 = vunpack.c.l.b16 %v1202
        %v1978 = vunpack.c.l.b16 %v1203
        %v1979 = vunpack.c.l.b16 %v1204
        %v1980 = vunpack.c.l.b16 %v1205
        %v1981 = vunpack.c.l.b16 %v1206
        %v1982 = vunpack.c.l.b16 %v1207
        %v1983 = vunpack.c.l.b16 %v1208
        %v1984 = vunpack.c.l.b16 %v1209
        %v1985 = vunpack.c.l.b16 %v1210
        %v1986 = vunpack.c.l.b16 %v1211
        %v1987 = vunpack.c.l.b16 %v1212
        %v1988 = vunpack.c.l.b16 %v1213
        %v1989 = vunpack.c.l.b16 %v1214
        %v1990 = vunpack.c.l.b16 %v1215
        %v1991 = vunpack.c.l.b16 %v1216
        %v1992 = vunpack.c.l.b16 %v1217
        %v1993 = vunpack.c.l.b16 %v1218
        %v1994 = vunpack.c.l.b16 %v1219
        %v1995 = vunpack.c.l.b16 %v1220
        %v1996 = vunpack.c.l.b16 %v1221
        %v1997 = vunpack.c.l.b16 %v1222
        %v1998 = vunpack.c.l.b16 %v1223
        %v1999 = vunpack.c.l.b16 %v1224
        %v2000 = vunpack.c.l.b16 %v1225
        %v2001 = vunpack.c.l.b16 %v1226
        %v2002 = vunpack.c.l.b16 %v1227
        %v2003 = vunpack.c.l.b16 %v1228
        %v2004 = vunpack.c.l.b16 %v1229
        %v2005 = vunpack.c.l.b16 %v1230
        %v2006 = vunpack.c.l.b16 %v1231
        %v2007 = vunpack.c.l.b16 %v1232
        %v2008 = vunpack.c.l.b16 %v1233
        %v2009 = vunpack.c.l.b16 %v1234
        %v2010 = vpack.c.b16 %v1963, %v1962
        %v2011 = vpack.c.b16 %v1965, %v1964
        %v2012 = vpack.c.b16 %v1967, %v1966
        %v2013 = vpack.c.b16 %v1969, %v1968
        %v2014 = vpack.c.b16 %v1971, %v1970
        %v2015 = vpack.c.b16 %v1973, %v1972
        %v2016 = vpack.c.b16 %v1975, %v1974
        %v2017 = vpack.c.b16 %v1977, %v1976
        %v2018 = vpack.c.b16 %v1979, %v1978
        %v2019 = vpack.c.b16 %v1981, %v1980
        %v2020 = vpack.c.b16 %v1983, %v1982
        %v2021 = vpack.c.b16 %v1985, %v1984
        %v2022 = vpack.c.b16 %v1987, %v1986
        %v2023 = vpack.c.b16 %v1989, %v1988
        %v2024 = vpack.c.b16 %v1991, %v1990
        %v2025 = vpack.c.b16 %v1993, %v1992
        %v2026 = vpack.c.b16 %v1995, %v1994
        %v2027 = vpack.c.b16 %v1997, %v1996
        %v2028 = vpack.c.b16 %v1999, %v1998
        %v2029 = vpack.c.b16 %v2001, %v2000
        %v2030 = vpack.c.b16 %v2003, %v2002
        %v2031 = vpack.c.b16 %v2005, %v2004
        %v2032 = vpack.c.b16 %v2007, %v2006
        %v2033 = vpack.c.b16 %v2009, %v2008
        %2058 = vmatprep.subr.bf16.mxu0 0
        %2059 = vmatpush1.bf16.msra.mxu0 %v2010
        %2060 = vmatprep.subr.bf16.mxu0 0
        %2061 = vmatpush1.bf16.msra.mxu0 %v2011
        %2062 = vmatprep.subr.bf16.mxu0 0
        %2063 = vmatpush1.bf16.msra.mxu0 %v2012
        %2064 = vmatprep.subr.bf16.mxu0 0
        %2065 = vmatpush1.bf16.msra.mxu0 %v2013
        %2066 = vmatprep.subr.bf16.mxu0 0
        %2067 = vmatpush1.bf16.msra.mxu0 %v2014
        %2068 = vmatprep.subr.bf16.mxu0 0
        %2069 = vmatpush1.bf16.msra.mxu0 %v2015
        %2070 = vmatprep.subr.bf16.mxu0 0
        %2071 = vmatpush1.bf16.msra.mxu0 %v2016
        %2072 = vmatprep.subr.bf16.mxu0 0
        %2073 = vmatpush1.bf16.msra.mxu0 %v2017
        %2074 = vmatprep.subr.bf16.mxu0 0
        %2075 = vmatpush1.bf16.msra.mxu0 %v2018
        %2076 = vmatprep.subr.bf16.mxu0 0
        %2077 = vmatpush1.bf16.msra.mxu0 %v2019
        %2078 = vmatprep.subr.bf16.mxu0 0
        %2079 = vmatpush1.bf16.msra.mxu0 %v2020
        %2080 = vmatprep.subr.bf16.mxu0 0
        %2081 = vmatpush1.bf16.msra.mxu0 %v2021
        %2082 = vmatprep.subr.bf16.mxu0 0
        %2083 = vmatpush1.bf16.msra.mxu0 %v2022
        %2084 = vmatprep.subr.bf16.mxu0 0
        %2085 = vmatpush1.bf16.msra.mxu0 %v2023
        %2086 = vmatprep.subr.bf16.mxu0 0
        %2087 = vmatpush1.bf16.msra.mxu0 %v2024
        %2088 = vmatprep.subr.bf16.mxu0 0
        %2089 = vmatpush1.bf16.msra.mxu0 %v2025
        %2090 = vmatprep.mubr.bf16.mxu0 %v1835
        %2091 = vmatmul.mubr.bf16.gmra.mrb[0].mxu0 %v1834
        %v2092 = vpop.f32.mrb[0].mxu0
        %v2093 = vadd.f32 0.0, %v2092
        %v2094 = vpop.f32.mrb[0].mxu0
        %v2095 = vpop.f32.mrb[0].mxu0
        %v2096 = vadd.f32 0.0, %v2095
        %v2097 = vpop.f32.mrb[0].mxu0
        %2098 = vmatprep.mubr.bf16.mxu0 %v1838
        %2099 = vmatmul.mubr.bf16.gmra.mrb[0].mxu0 %v1837
        %v2100 = vpop.f32.mrb[0].mxu0
        %v2101 = vadd.f32 0.0, %v2100
        %v2102 = vpop.f32.mrb[0].mxu0
        %v2103 = vpop.f32.mrb[0].mxu0
        %v2104 = vadd.f32 0.0, %v2103
        %v2105 = vpop.f32.mrb[0].mxu0
        %2106 = vmatprep.mubr.bf16.mxu0 %v1841
        %2107 = vmatmul.mubr.bf16.gmra.mrb[0].mxu0 %v1840
        %v2108 = vpop.f32.mrb[0].mxu0
        %v2109 = vadd.f32 0.0, %v2108
        %v2110 = vpop.f32.mrb[0].mxu0
        %v2111 = vpop.f32.mrb[0].mxu0
        %v2112 = vadd.f32 0.0, %v2111
        %v2113 = vpop.f32.mrb[0].mxu0
        %2114 = vmatprep.mubr.bf16.mxu0 %v1844
        %2115 = vmatmul.mubr.bf16.gmra.mrb[0].mxu0 %v1843
        %v2116 = vpop.f32.mrb[0].mxu0
        %v2117 = vadd.f32 0.0, %v2116
        %v2118 = vpop.f32.mrb[0].mxu0
        %v2119 = vpop.f32.mrb[0].mxu0
        %v2120 = vadd.f32 0.0, %v2119
        %v2121 = vpop.f32.mrb[0].mxu0
        %2122 = vmatprep.mubr.bf16.mxu0 %v1847
        %2123 = vmatmul.mubr.bf16.gmra.mrb[0].mxu0 %v1846
        %v2124 = vpop.f32.mrb[0].mxu0
        %v2125 = vadd.f32 0.0, %v2124
        %v2126 = vpop.f32.mrb[0].mxu0
        %v2127 = vpop.f32.mrb[0].mxu0
        %v2128 = vadd.f32 0.0, %v2127
        %v2129 = vpop.f32.mrb[0].mxu0
        %2130 = vmatprep.mubr.bf16.mxu0 %v1850
        %2131 = vmatmul.mubr.bf16.gmra.mrb[0].mxu0 %v1849
        %v2132 = vpop.f32.mrb[0].mxu0
        %v2133 = vadd.f32 0.0, %v2132
        %v2134 = vpop.f32.mrb[0].mxu0
        %v2135 = vpop.f32.mrb[0].mxu0
        %v2136 = vadd.f32 0.0, %v2135
        %v2137 = vpop.f32.mrb[0].mxu0
        %2138 = vmatprep.mubr.bf16.mxu0 %v1853
        %2139 = vmatmul.mubr.bf16.gmra.mrb[0].mxu0 %v1852
        %v2140 = vpop.f32.mrb[0].mxu0
        %v2141 = vadd.f32 0.0, %v2140
        %v2142 = vpop.f32.mrb[0].mxu0
        %v2143 = vpop.f32.mrb[0].mxu0
        %v2144 = vadd.f32 0.0, %v2143
        %v2145 = vpop.f32.mrb[0].mxu0
        %2146 = vmatprep.mubr.bf16.mxu0 %v1856
        %2147 = vmatmul.mubr.bf16.gmra.mrb[0].mxu0 %v1855
        %v2148 = vpop.f32.mrb[0].mxu0
        %v2149 = vadd.f32 0.0, %v2148
        %v2150 = vpop.f32.mrb[0].mxu0
        %v2151 = vpop.f32.mrb[0].mxu0
        %v2152 = vadd.f32 0.0, %v2151
        %v2153 = vpop.f32.mrb[0].mxu0
        %2154 = vmatprep.mubr.bf16.mxu0 %v1859
        %2155 = vmatmul.mubr.bf16.gmra.mrb[0].mxu0 %v1858
        %v2156 = vpop.f32.mrb[0].mxu0
        %v2157 = vadd.f32 0.0, %v2156
        %v2158 = vpop.f32.mrb[0].mxu0
        %v2159 = vpop.f32.mrb[0].mxu0
        %v2160 = vadd.f32 0.0, %v2159
        %v2161 = vpop.f32.mrb[0].mxu0
        %2162 = vmatprep.mubr.bf16.mxu0 %v1862
        %2163 = vmatmul.mubr.bf16.gmra.mrb[0].mxu0 %v1861
        %v2164 = vpop.f32.mrb[0].mxu0
        %v2165 = vadd.f32 0.0, %v2164
        %v2166 = vpop.f32.mrb[0].mxu0
        %v2167 = vpop.f32.mrb[0].mxu0
        %v2168 = vadd.f32 0.0, %v2167
        %v2169 = vpop.f32.mrb[0].mxu0
        %2170 = vmatprep.mubr.bf16.mxu0 %v1865
        %2171 = vmatmul.mubr.bf16.gmra.mrb[0].mxu0 %v1864
        %v2172 = vpop.f32.mrb[0].mxu0
        %v2173 = vadd.f32 0.0, %v2172
        %v2174 = vpop.f32.mrb[0].mxu0
        %v2175 = vpop.f32.mrb[0].mxu0
        %v2176 = vadd.f32 0.0, %v2175
        %v2177 = vpop.f32.mrb[0].mxu0
        %2178 = vmatprep.mubr.bf16.mxu0 %v1868
        %2179 = vmatmul.mubr.bf16.gmra.mrb[0].mxu0 %v1867
        %v2180 = vpop.f32.mrb[0].mxu0
        %v2181 = vadd.f32 0.0, %v2180
        %v2182 = vpop.f32.mrb[0].mxu0
        %v2183 = vpop.f32.mrb[0].mxu0
        %v2184 = vadd.f32 0.0, %v2183
        %v2185 = vpop.f32.mrb[0].mxu0
        %2186 = vmatprep.mubr.bf16.mxu0 %v1871
        %2187 = vmatmul.mubr.bf16.gmra.mrb[0].mxu0 %v1870
        %v2188 = vpop.f32.mrb[0].mxu0
        %v2189 = vadd.f32 0.0, %v2188
        %v2190 = vpop.f32.mrb[0].mxu0
        %v2191 = vpop.f32.mrb[0].mxu0
        %v2192 = vadd.f32 0.0, %v2191
        %v2193 = vpop.f32.mrb[0].mxu0
        %2194 = vmatprep.mubr.bf16.mxu0 %v1874
        %2195 = vmatmul.mubr.bf16.gmra.mrb[0].mxu0 %v1873
        %v2196 = vpop.f32.mrb[0].mxu0
        %v2197 = vadd.f32 0.0, %v2196
        %v2198 = vpop.f32.mrb[0].mxu0
        %v2199 = vpop.f32.mrb[0].mxu0
        %v2200 = vadd.f32 0.0, %v2199
        %v2201 = vpop.f32.mrb[0].mxu0
        %2202 = vmatprep.mubr.bf16.mxu0 %v1877
        %2203 = vmatmul.mubr.bf16.gmra.mrb[0].mxu0 %v1876
        %v2204 = vpop.f32.mrb[0].mxu0
        %v2205 = vadd.f32 0.0, %v2204
        %v2206 = vpop.f32.mrb[0].mxu0
        %v2207 = vpop.f32.mrb[0].mxu0
        %v2208 = vadd.f32 0.0, %v2207
        %v2209 = vpop.f32.mrb[0].mxu0
        %2210 = vmatprep.mubr.bf16.mxu0 %v1880
        %2211 = vmatmul.mubr.bf16.gmra.mrb[0].mxu0 %v1879
        %v2212 = vpop.f32.mrb[0].mxu0
        %v2213 = vadd.f32 0.0, %v2212
        %v2214 = vpop.f32.mrb[0].mxu0
        %v2215 = vpop.f32.mrb[0].mxu0
        %v2216 = vadd.f32 0.0, %v2215
        %v2217 = vpop.f32.mrb[0].mxu0
        %2218 = vdwg.mxu0
        %2219 = vmatprep.subr.bf16.mxu0 0
        %2220 = vmatpush1.bf16.msra.mxu0 %v2026
        %2221 = vmatprep.subr.bf16.mxu0 0
        %2222 = vmatpush1.bf16.msra.mxu0 %v2027
        %2223 = vmatprep.subr.bf16.mxu0 0
        %2224 = vmatpush1.bf16.msra.mxu0 %v2028
        %2225 = vmatprep.subr.bf16.mxu0 0
        %2226 = vmatpush1.bf16.msra.mxu0 %v2029
        %2227 = vmatprep.subr.bf16.mxu0 0
        %2228 = vmatpush1.bf16.msra.mxu0 %v2030
        %2229 = vmatprep.subr.bf16.mxu0 0
        %2230 = vmatpush1.bf16.msra.mxu0 %v2031
        %2231 = vmatprep.subr.bf16.mxu0 0
        %2232 = vmatpush1.bf16.msra.mxu0 %v2032
        %2233 = vmatprep.subr.bf16.mxu0 0
        %2234 = vmatpush1.bf16.msra.mxu0 %v2033
        %2235 = vmatprep.subr.bf16.mxu0 0
        %2236 = vmatpush1.bf16.msra.mxu0 0
        %2237 = vmatprep.subr.bf16.mxu0 0
        %2238 = vmatpush1.bf16.msra.mxu0 0
        %2239 = vmatprep.subr.bf16.mxu0 0
        %2240 = vmatpush1.bf16.msra.mxu0 0
        %2241 = vmatprep.subr.bf16.mxu0 0
        %2242 = vmatpush1.bf16.msra.mxu0 0
        %2243 = vmatprep.subr.bf16.mxu0 0
        %2244 = vmatpush1.bf16.msra.mxu0 0
        %2245 = vmatprep.subr.bf16.mxu0 0
        %2246 = vmatpush1.bf16.msra.mxu0 0
        %2247 = vmatprep.subr.bf16.mxu0 0
        %2248 = vmatpush1.bf16.msra.mxu0 0
        %2249 = vmatprep.subr.bf16.mxu0 0
        %2250 = vmatpush1.bf16.msra.mxu0 0
        %2251 = vmatprep.mubr.bf16.mxu0 0
        %2252 = vmatmul.mubr.bf16.gmra.mrb[0].mxu0 %v1836
        %v2253 = vpop.f32.mrb[0].mxu0
        %v2254 = vadd.f32 %v2093, %v2253
        %v2255 = vpop.f32.mrb[0].mxu0
        %v2256 = vpop.f32.mrb[0].mxu0
        %v2257 = vadd.f32 %v2096, %v2256
        %v2258 = vpop.f32.mrb[0].mxu0
        %2259 = vmatprep.mubr.bf16.mxu0 0
        %2260 = vmatmul.mubr.bf16.gmra.mrb[0].mxu0 %v1839
        %v2261 = vpop.f32.mrb[0].mxu0
        %v2262 = vadd.f32 %v2101, %v2261
        %v2263 = vpop.f32.mrb[0].mxu0
        %v2264 = vpop.f32.mrb[0].mxu0
        %v2265 = vadd.f32 %v2104, %v2264
        %v2266 = vpop.f32.mrb[0].mxu0
        %2267 = vmatprep.mubr.bf16.mxu0 0
        %2268 = vmatmul.mubr.bf16.gmra.mrb[0].mxu0 %v1842
        %v2269 = vpop.f32.mrb[0].mxu0
        %v2270 = vadd.f32 %v2109, %v2269
        %v2271 = vpop.f32.mrb[0].mxu0
        %v2272 = vpop.f32.mrb[0].mxu0
        %v2273 = vadd.f32 %v2112, %v2272
        %v2274 = vpop.f32.mrb[0].mxu0
        %2275 = vmatprep.mubr.bf16.mxu0 0
        %2276 = vmatmul.mubr.bf16.gmra.mrb[0].mxu0 %v1845
        %v2277 = vpop.f32.mrb[0].mxu0
        %v2278 = vadd.f32 %v2117, %v2277
        %v2279 = vpop.f32.mrb[0].mxu0
        %v2280 = vpop.f32.mrb[0].mxu0
        %v2281 = vadd.f32 %v2120, %v2280
        %v2282 = vpop.f32.mrb[0].mxu0
        %2283 = vmatprep.mubr.bf16.mxu0 0
        %2284 = vmatmul.mubr.bf16.gmra.mrb[0].mxu0 %v1848
        %v2285 = vpop.f32.mrb[0].mxu0
        %v2286 = vadd.f32 %v2125, %v2285
        %v2287 = vpop.f32.mrb[0].mxu0
        %v2288 = vpop.f32.mrb[0].mxu0
        %v2289 = vadd.f32 %v2128, %v2288
        %v2290 = vpop.f32.mrb[0].mxu0
        %2291 = vmatprep.mubr.bf16.mxu0 0
        %2292 = vmatmul.mubr.bf16.gmra.mrb[0].mxu0 %v1851
        %v2293 = vpop.f32.mrb[0].mxu0
        %v2294 = vadd.f32 %v2133, %v2293
        %v2295 = vpop.f32.mrb[0].mxu0
        %v2296 = vpop.f32.mrb[0].mxu0
        %v2297 = vadd.f32 %v2136, %v2296
        %v2298 = vpop.f32.mrb[0].mxu0
        %2299 = vmatprep.mubr.bf16.mxu0 0
        %2300 = vmatmul.mubr.bf16.gmra.mrb[0].mxu0 %v1854
        %v2301 = vpop.f32.mrb[0].mxu0
        %v2302 = vadd.f32 %v2141, %v2301
        %v2303 = vpop.f32.mrb[0].mxu0
        %v2304 = vpop.f32.mrb[0].mxu0
        %v2305 = vadd.f32 %v2144, %v2304
        %v2306 = vpop.f32.mrb[0].mxu0
        %2307 = vmatprep.mubr.bf16.mxu0 0
        %2308 = vmatmul.mubr.bf16.gmra.mrb[0].mxu0 %v1857
        %v2309 = vpop.f32.mrb[0].mxu0
        %v2310 = vadd.f32 %v2149, %v2309
        %v2311 = vpop.f32.mrb[0].mxu0
        %v2312 = vpop.f32.mrb[0].mxu0
        %v2313 = vadd.f32 %v2152, %v2312
        %v2314 = vpop.f32.mrb[0].mxu0
        %2315 = vmatprep.mubr.bf16.mxu0 0
        %2316 = vmatmul.mubr.bf16.gmra.mrb[0].mxu0 %v1860
        %v2317 = vpop.f32.mrb[0].mxu0
        %v2318 = vadd.f32 %v2157, %v2317
        %v2319 = vpop.f32.mrb[0].mxu0
        %v2320 = vpop.f32.mrb[0].mxu0
        %v2321 = vadd.f32 %v2160, %v2320
        %v2322 = vpop.f32.mrb[0].mxu0
        %2323 = vmatprep.mubr.bf16.mxu0 0
        %2324 = vmatmul.mubr.bf16.gmra.mrb[0].mxu0 %v1863
        %v2325 = vpop.f32.mrb[0].mxu0
        %v2326 = vadd.f32 %v2165, %v2325
        %v2327 = vpop.f32.mrb[0].mxu0
        %v2328 = vpop.f32.mrb[0].mxu0
        %v2329 = vadd.f32 %v2168, %v2328
        %v2330 = vpop.f32.mrb[0].mxu0
        %2331 = vmatprep.mubr.bf16.mxu0 0
        %2332 = vmatmul.mubr.bf16.gmra.mrb[0].mxu0 %v1866
        %v2333 = vpop.f32.mrb[0].mxu0
        %v2334 = vadd.f32 %v2173, %v2333
        %v2335 = vpop.f32.mrb[0].mxu0
        %v2336 = vpop.f32.mrb[0].mxu0
        %v2337 = vadd.f32 %v2176, %v2336
        %v2338 = vpop.f32.mrb[0].mxu0
        %2339 = vmatprep.mubr.bf16.mxu0 0
        %2340 = vmatmul.mubr.bf16.gmra.mrb[0].mxu0 %v1869
        %v2341 = vpop.f32.mrb[0].mxu0
        %v2342 = vadd.f32 %v2181, %v2341
        %v2343 = vpop.f32.mrb[0].mxu0
        %v2344 = vpop.f32.mrb[0].mxu0
        %v2345 = vadd.f32 %v2184, %v2344
        %v2346 = vpop.f32.mrb[0].mxu0
        %2347 = vmatprep.mubr.bf16.mxu0 0
        %2348 = vmatmul.mubr.bf16.gmra.mrb[0].mxu0 %v1872
        %v2349 = vpop.f32.mrb[0].mxu0
        %v2350 = vadd.f32 %v2189, %v2349
        %v2351 = vpop.f32.mrb[0].mxu0
        %v2352 = vpop.f32.mrb[0].mxu0
        %v2353 = vadd.f32 %v2192, %v2352
        %v2354 = vpop.f32.mrb[0].mxu0
        %2355 = vmatprep.mubr.bf16.mxu0 0
        %2356 = vmatmul.mubr.bf16.gmra.mrb[0].mxu0 %v1875
        %v2357 = vpop.f32.mrb[0].mxu0
        %v2358 = vadd.f32 %v2197, %v2357
        %v2359 = vpop.f32.mrb[0].mxu0
        %v2360 = vpop.f32.mrb[0].mxu0
        %v2361 = vadd.f32 %v2200, %v2360
        %v2362 = vpop.f32.mrb[0].mxu0
        %2363 = vmatprep.mubr.bf16.mxu0 0
        %2364 = vmatmul.mubr.bf16.gmra.mrb[0].mxu0 %v1878
        %v2365 = vpop.f32.mrb[0].mxu0
        %v2366 = vadd.f32 %v2205, %v2365
        %v2367 = vpop.f32.mrb[0].mxu0
        %v2368 = vpop.f32.mrb[0].mxu0
        %v2369 = vadd.f32 %v2208, %v2368
        %v2370 = vpop.f32.mrb[0].mxu0
        %2371 = vmatprep.mubr.bf16.mxu0 0
        %2372 = vmatmul.mubr.bf16.gmra.mrb[0].mxu0 %v1881
        %v2373 = vpop.f32.mrb[0].mxu0
        %v2374 = vadd.f32 %v2213, %v2373
        %v2375 = vpop.f32.mrb[0].mxu0
        %v2376 = vpop.f32.mrb[0].mxu0
        %v2377 = vadd.f32 %v2216, %v2376
        %v2378 = vpop.f32.mrb[0].mxu0
        %2379 = vdwg.mxu0
        %v2380 = vadd.f32 %v1882, %v2254
        %v2381 = vadd.f32 %v1883, %v2257
        %v2382 = vadd.f32 %v1884, %v2262
        %v2383 = vadd.f32 %v1885, %v2265
        %v2384 = vadd.f32 %v1886, %v2270
        %v2385 = vadd.f32 %v1887, %v2273
        %v2386 = vadd.f32 %v1888, %v2278
        %v2387 = vadd.f32 %v1889, %v2281
        %v2388 = vadd.f32 %v1890, %v2286
        %v2389 = vadd.f32 %v1891, %v2289
        %v2390 = vadd.f32 %v1892, %v2294
        %v2391 = vadd.f32 %v1893, %v2297
        %v2392 = vadd.f32 %v1894, %v2302
        %v2393 = vadd.f32 %v1895, %v2305
        %v2394 = vadd.f32 %v1896, %v2310
        %v2395 = vadd.f32 %v1897, %v2313
        %v2396 = vadd.f32 %v1898, %v2318
        %v2397 = vadd.f32 %v1899, %v2321
        %v2398 = vadd.f32 %v1900, %v2326
        %v2399 = vadd.f32 %v1901, %v2329
        %v2400 = vadd.f32 %v1902, %v2334
        %v2401 = vadd.f32 %v1903, %v2337
        %v2402 = vadd.f32 %v1904, %v2342
        %v2403 = vadd.f32 %v1905, %v2345
        %v2404 = vadd.f32 %v1906, %v2350
        %v2405 = vadd.f32 %v1907, %v2353
        %v2406 = vadd.f32 %v1908, %v2358
        %v2407 = vadd.f32 %v1909, %v2361
        %v2408 = vadd.f32 %v1910, %v2366
        %v2409 = vadd.f32 %v1911, %v2369
        %v2410 = vadd.f32 %v1912, %v2374
        %v2411 = vadd.f32 %v1913, %v2377
        %2412 = vst.msk [vmem:[#allocation3] sm:$0xff] %vm742, %v2380
        %2413 = vst.msk [vmem:[#allocation3 + $0x8] sm:$0xff] %vm742, %v2381
        %2414 = vst.msk [vmem:[#allocation3 + $0x10] sm:$0xff] %vm742, %v2382
        %2415 = vst.msk [vmem:[#allocation3 + $0x18] sm:$0xff] %vm742, %v2383
        %2416 = vst.msk [vmem:[#allocation3 + $0x20] sm:$0xff] %vm742, %v2384
        %2417 = vst.msk [vmem:[#allocation3 + $0x28] sm:$0xff] %vm742, %v2385
        %2418 = vst.msk [vmem:[#allocation3 + $0x30] sm:$0xff] %vm742, %v2386
        %2419 = vst.msk [vmem:[#allocation3 + $0x38] sm:$0xff] %vm742, %v2387
        %2420 = vst.msk [vmem:[#allocation3 + $0x40] sm:$0xff] %vm742, %v2388
        %2421 = vst.msk [vmem:[#allocation3 + $0x48] sm:$0xff] %vm742, %v2389
        %2422 = vst.msk [vmem:[#allocation3 + $0x50] sm:$0xff] %vm742, %v2390
        %2423 = vst.msk [vmem:[#allocation3 + $0x58] sm:$0xff] %vm742, %v2391
        %2424 = vst.msk [vmem:[#allocation3 + $0x60] sm:$0xff] %vm742, %v2392
        %2425 = vst.msk [vmem:[#allocation3 + $0x68] sm:$0xff] %vm742, %v2393
        %2426 = vst.msk [vmem:[#allocation3 + $0x70] sm:$0xff] %vm742, %v2394
        %2427 = vst.msk [vmem:[#allocation3 + $0x78] sm:$0xff] %vm742, %v2395
        %2428 = vst.msk [vmem:[#allocation3 + $0x80] sm:$0xff] %vm742, %v2396
        %2429 = vst.msk [vmem:[#allocation3 + $0x88] sm:$0xff] %vm742, %v2397
        %2430 = vst.msk [vmem:[#allocation3 + $0x90] sm:$0xff] %vm742, %v2398
        %2431 = vst.msk [vmem:[#allocation3 + $0x98] sm:$0xff] %vm742, %v2399
        %2432 = vst.msk [vmem:[#allocation3 + $0xa0] sm:$0xff] %vm742, %v2400
        %2433 = vst.msk [vmem:[#allocation3 + $0xa8] sm:$0xff] %vm742, %v2401
        %2434 = vst.msk [vmem:[#allocation3 + $0xb0] sm:$0xff] %vm742, %v2402
        %2435 = vst.msk [vmem:[#allocation3 + $0xb8] sm:$0xff] %vm742, %v2403
        %2436 = vst.msk [vmem:[#allocation3 + $0xc0] sm:$0xff] %vm742, %v2404
        %2437 = vst.msk [vmem:[#allocation3 + $0xc8] sm:$0xff] %vm742, %v2405
        %2438 = vst.msk [vmem:[#allocation3 + $0xd0] sm:$0xff] %vm742, %v2406
        %2439 = vst.msk [vmem:[#allocation3 + $0xd8] sm:$0xff] %vm742, %v2407
        %2440 = vst.msk [vmem:[#allocation3 + $0xe0] sm:$0xff] %vm742, %v2408
        %2441 = vst.msk [vmem:[#allocation3 + $0xe8] sm:$0xff] %vm742, %v2409
        %2442 = vst.msk [vmem:[#allocation3 + $0xf0] sm:$0xff] %vm742, %v2410
        %2443 = vst.msk [vmem:[#allocation3 + $0xf8] sm:$0xff] %vm742, %v2411
        %s2444 = scalar_lea.vmem [#allocation2], 48
        %v2445 = vld [vmem:[%s2444] sm:$0xff]
        %v2446 = vld [vmem:[%s2444 + $0x8] sm:$0xff]
        %v2447 = vld [vmem:[%s2444 + $0x10] sm:$0xff]
        %v2448 = vld [vmem:[%s2444 + $0x18] sm:$0xff]
        %v2449 = vld [vmem:[%s2444 + $0x20] sm:$0xff]
        %v2450 = vld [vmem:[%s2444 + $0x28] sm:$0xff]
        %v2451 = vld [vmem:[%s2444 + $0x30] sm:$0xff]
        %v2452 = vld [vmem:[%s2444 + $0x38] sm:$0xff]
        %v2453 = vld [vmem:[%s2444 + $0x40] sm:$0xff]
        %v2454 = vld [vmem:[%s2444 + $0x48] sm:$0xff]
        %v2455 = vld [vmem:[%s2444 + $0x50] sm:$0xff]
        %v2456 = vld [vmem:[%s2444 + $0x58] sm:$0xff]
        %v2457 = vld [vmem:[%s2444 + $0x60] sm:$0xff]
        %v2458 = vld [vmem:[%s2444 + $0x68] sm:$0xff]
        %v2459 = vld [vmem:[%s2444 + $0x70] sm:$0xff]
        %v2460 = vld [vmem:[%s2444 + $0x78] sm:$0xff]
        %v2461 = vld [vmem:[%s2444 + $0x80] sm:$0xff]
        %v2462 = vld [vmem:[%s2444 + $0x88] sm:$0xff]
        %v2463 = vld [vmem:[%s2444 + $0x90] sm:$0xff]
        %v2464 = vld [vmem:[%s2444 + $0x98] sm:$0xff]
        %v2465 = vld [vmem:[%s2444 + $0xa0] sm:$0xff]
        %v2466 = vld [vmem:[%s2444 + $0xa8] sm:$0xff]
        %v2467 = vld [vmem:[%s2444 + $0xb0] sm:$0xff]
        %v2468 = vld [vmem:[%s2444 + $0xb8] sm:$0xff]
        %v2469 = vld [vmem:[%s2444 + $0xc0] sm:$0xff]
        %v2470 = vld [vmem:[%s2444 + $0xc8] sm:$0xff]
        %v2471 = vld [vmem:[%s2444 + $0xd0] sm:$0xff]
        %v2472 = vld [vmem:[%s2444 + $0xd8] sm:$0xff]
        %v2473 = vld [vmem:[%s2444 + $0xe0] sm:$0xff]
        %v2474 = vld [vmem:[%s2444 + $0xe8] sm:$0xff]
        %v2475 = vld [vmem:[%s2444 + $0xf0] sm:$0xff]
        %v2476 = vld [vmem:[%s2444 + $0xf8] sm:$0xff]
        %v2477 = vld [vmem:[%s2444 + $0x100] sm:$0xff]
        %v2478 = vld [vmem:[%s2444 + $0x108] sm:$0xff]
        %v2479 = vld [vmem:[%s2444 + $0x110] sm:$0xff]
        %v2480 = vld [vmem:[%s2444 + $0x118] sm:$0xff]
        %v2481 = vld [vmem:[%s2444 + $0x120] sm:$0xff]
        %v2482 = vld [vmem:[%s2444 + $0x128] sm:$0xff]
        %v2483 = vld [vmem:[%s2444 + $0x130] sm:$0xff]
        %v2484 = vld [vmem:[%s2444 + $0x138] sm:$0xff]
        %v2485 = vld [vmem:[%s2444 + $0x140] sm:$0xff]
        %v2486 = vld [vmem:[%s2444 + $0x148] sm:$0xff]
        %v2487 = vld [vmem:[%s2444 + $0x150] sm:$0xff]
        %v2488 = vld [vmem:[%s2444 + $0x158] sm:$0xff]
        %v2489 = vld [vmem:[%s2444 + $0x160] sm:$0xff]
        %v2490 = vld [vmem:[%s2444 + $0x168] sm:$0xff]
        %v2491 = vld [vmem:[%s2444 + $0x170] sm:$0xff]
        %v2492 = vld [vmem:[%s2444 + $0x178] sm:$0xff]
        %v2493 = vld [vmem:[#allocation3] sm:$0xff]
        %v2494 = vld [vmem:[#allocation3 + $0x8] sm:$0xff]
        %v2495 = vld [vmem:[#allocation3 + $0x10] sm:$0xff]
        %v2496 = vld [vmem:[#allocation3 + $0x18] sm:$0xff]
        %v2497 = vld [vmem:[#allocation3 + $0x20] sm:$0xff]
        %v2498 = vld [vmem:[#allocation3 + $0x28] sm:$0xff]
        %v2499 = vld [vmem:[#allocation3 + $0x30] sm:$0xff]
        %v2500 = vld [vmem:[#allocation3 + $0x38] sm:$0xff]
        %v2501 = vld [vmem:[#allocation3 + $0x40] sm:$0xff]
        %v2502 = vld [vmem:[#allocation3 + $0x48] sm:$0xff]
        %v2503 = vld [vmem:[#allocation3 + $0x50] sm:$0xff]
        %v2504 = vld [vmem:[#allocation3 + $0x58] sm:$0xff]
        %v2505 = vld [vmem:[#allocation3 + $0x60] sm:$0xff]
        %v2506 = vld [vmem:[#allocation3 + $0x68] sm:$0xff]
        %v2507 = vld [vmem:[#allocation3 + $0x70] sm:$0xff]
        %v2508 = vld [vmem:[#allocation3 + $0x78] sm:$0xff]
        %v2509 = vld [vmem:[#allocation3 + $0x80] sm:$0xff]
        %v2510 = vld [vmem:[#allocation3 + $0x88] sm:$0xff]
        %v2511 = vld [vmem:[#allocation3 + $0x90] sm:$0xff]
        %v2512 = vld [vmem:[#allocation3 + $0x98] sm:$0xff]
        %v2513 = vld [vmem:[#allocation3 + $0xa0] sm:$0xff]
        %v2514 = vld [vmem:[#allocation3 + $0xa8] sm:$0xff]
        %v2515 = vld [vmem:[#allocation3 + $0xb0] sm:$0xff]
        %v2516 = vld [vmem:[#allocation3 + $0xb8] sm:$0xff]
        %v2517 = vld [vmem:[#allocation3 + $0xc0] sm:$0xff]
        %v2518 = vld [vmem:[#allocation3 + $0xc8] sm:$0xff]
        %v2519 = vld [vmem:[#allocation3 + $0xd0] sm:$0xff]
        %v2520 = vld [vmem:[#allocation3 + $0xd8] sm:$0xff]
        %v2521 = vld [vmem:[#allocation3 + $0xe0] sm:$0xff]
        %v2522 = vld [vmem:[#allocation3 + $0xe8] sm:$0xff]
        %v2523 = vld [vmem:[#allocation3 + $0xf0] sm:$0xff]
        %v2524 = vld [vmem:[#allocation3 + $0xf8] sm:$0xff]
        %v2573 = vunpack.c.l.b16 %v1236
        %v2574 = vunpack.c.l.b16 %v1237
        %v2575 = vunpack.c.l.b16 %v1238
        %v2576 = vunpack.c.l.b16 %v1239
        %v2577 = vunpack.c.l.b16 %v1240
        %v2578 = vunpack.c.l.b16 %v1241
        %v2579 = vunpack.c.l.b16 %v1242
        %v2580 = vunpack.c.l.b16 %v1243
        %v2581 = vunpack.c.l.b16 %v1244
        %v2582 = vunpack.c.l.b16 %v1245
        %v2583 = vunpack.c.l.b16 %v1246
        %v2584 = vunpack.c.l.b16 %v1247
        %v2585 = vunpack.c.l.b16 %v1248
        %v2586 = vunpack.c.l.b16 %v1249
        %v2587 = vunpack.c.l.b16 %v1250
        %v2588 = vunpack.c.l.b16 %v1251
        %v2589 = vunpack.c.l.b16 %v1252
        %v2590 = vunpack.c.l.b16 %v1253
        %v2591 = vunpack.c.l.b16 %v1254
        %v2592 = vunpack.c.l.b16 %v1255
        %v2593 = vunpack.c.l.b16 %v1256
        %v2594 = vunpack.c.l.b16 %v1257
        %v2595 = vunpack.c.l.b16 %v1258
        %v2596 = vunpack.c.l.b16 %v1259
        %v2597 = vunpack.c.l.b16 %v1260
        %v2598 = vunpack.c.l.b16 %v1261
        %v2599 = vunpack.c.l.b16 %v1262
        %v2600 = vunpack.c.l.b16 %v1263
        %v2601 = vunpack.c.l.b16 %v1264
        %v2602 = vunpack.c.l.b16 %v1265
        %v2603 = vunpack.c.l.b16 %v1266
        %v2604 = vunpack.c.l.b16 %v1267
        %v2605 = vunpack.c.l.b16 %v1268
        %v2606 = vunpack.c.l.b16 %v1269
        %v2607 = vunpack.c.l.b16 %v1270
        %v2608 = vunpack.c.l.b16 %v1271
        %v2609 = vunpack.c.l.b16 %v1272
        %v2610 = vunpack.c.l.b16 %v1273
        %v2611 = vunpack.c.l.b16 %v1274
        %v2612 = vunpack.c.l.b16 %v1275
        %v2613 = vunpack.c.l.b16 %v1276
        %v2614 = vunpack.c.l.b16 %v1277
        %v2615 = vunpack.c.l.b16 %v1278
        %v2616 = vunpack.c.l.b16 %v1279
        %v2617 = vunpack.c.l.b16 %v1280
        %v2618 = vunpack.c.l.b16 %v1281
        %v2619 = vunpack.c.l.b16 %v1282
        %v2620 = vunpack.c.l.b16 %v1283
        %v2621 = vpack.c.b16 %v2574, %v2573
        %v2622 = vpack.c.b16 %v2576, %v2575
        %v2623 = vpack.c.b16 %v2578, %v2577
        %v2624 = vpack.c.b16 %v2580, %v2579
        %v2625 = vpack.c.b16 %v2582, %v2581
        %v2626 = vpack.c.b16 %v2584, %v2583
        %v2627 = vpack.c.b16 %v2586, %v2585
        %v2628 = vpack.c.b16 %v2588, %v2587
        %v2629 = vpack.c.b16 %v2590, %v2589
        %v2630 = vpack.c.b16 %v2592, %v2591
        %v2631 = vpack.c.b16 %v2594, %v2593
        %v2632 = vpack.c.b16 %v2596, %v2595
        %v2633 = vpack.c.b16 %v2598, %v2597
        %v2634 = vpack.c.b16 %v2600, %v2599
        %v2635 = vpack.c.b16 %v2602, %v2601
        %v2636 = vpack.c.b16 %v2604, %v2603
        %v2637 = vpack.c.b16 %v2606, %v2605
        %v2638 = vpack.c.b16 %v2608, %v2607
        %v2639 = vpack.c.b16 %v2610, %v2609
        %v2640 = vpack.c.b16 %v2612, %v2611
        %v2641 = vpack.c.b16 %v2614, %v2613
        %v2642 = vpack.c.b16 %v2616, %v2615
        %v2643 = vpack.c.b16 %v2618, %v2617
        %v2644 = vpack.c.b16 %v2620, %v2619
        %2669 = vmatprep.subr.bf16.mxu0 0
        %2670 = vmatpush1.bf16.msra.mxu0 %v2621
        %2671 = vmatprep.subr.bf16.mxu0 0
        %2672 = vmatpush1.bf16.msra.mxu0 %v2622
        %2673 = vmatprep.subr.bf16.mxu0 0
        %2674 = vmatpush1.bf16.msra.mxu0 %v2623
        %2675 = vmatprep.subr.bf16.mxu0 0
        %2676 = vmatpush1.bf16.msra.mxu0 %v2624
        %2677 = vmatprep.subr.bf16.mxu0 0
        %2678 = vmatpush1.bf16.msra.mxu0 %v2625
        %2679 = vmatprep.subr.bf16.mxu0 0
        %2680 = vmatpush1.bf16.msra.mxu0 %v2626
        %2681 = vmatprep.subr.bf16.mxu0 0
        %2682 = vmatpush1.bf16.msra.mxu0 %v2627
        %2683 = vmatprep.subr.bf16.mxu0 0
        %2684 = vmatpush1.bf16.msra.mxu0 %v2628
        %2685 = vmatprep.subr.bf16.mxu0 0
        %2686 = vmatpush1.bf16.msra.mxu0 %v2629
        %2687 = vmatprep.subr.bf16.mxu0 0
        %2688 = vmatpush1.bf16.msra.mxu0 %v2630
        %2689 = vmatprep.subr.bf16.mxu0 0
        %2690 = vmatpush1.bf16.msra.mxu0 %v2631
        %2691 = vmatprep.subr.bf16.mxu0 0
        %2692 = vmatpush1.bf16.msra.mxu0 %v2632
        %2693 = vmatprep.subr.bf16.mxu0 0
        %2694 = vmatpush1.bf16.msra.mxu0 %v2633
        %2695 = vmatprep.subr.bf16.mxu0 0
        %2696 = vmatpush1.bf16.msra.mxu0 %v2634
        %2697 = vmatprep.subr.bf16.mxu0 0
        %2698 = vmatpush1.bf16.msra.mxu0 %v2635
        %2699 = vmatprep.subr.bf16.mxu0 0
        %2700 = vmatpush1.bf16.msra.mxu0 %v2636
        %2701 = vmatprep.mubr.bf16.mxu0 %v2446
        %2702 = vmatmul.mubr.bf16.gmra.mrb[0].mxu0 %v2445
        %v2703 = vpop.f32.mrb[0].mxu0
        %v2704 = vadd.f32 0.0, %v2703
        %v2705 = vpop.f32.mrb[0].mxu0
        %v2706 = vpop.f32.mrb[0].mxu0
        %v2707 = vadd.f32 0.0, %v2706
        %v2708 = vpop.f32.mrb[0].mxu0
        %2709 = vmatprep.mubr.bf16.mxu0 %v2449
        %2710 = vmatmul.mubr.bf16.gmra.mrb[0].mxu0 %v2448
        %v2711 = vpop.f32.mrb[0].mxu0
        %v2712 = vadd.f32 0.0, %v2711
        %v2713 = vpop.f32.mrb[0].mxu0
        %v2714 = vpop.f32.mrb[0].mxu0
        %v2715 = vadd.f32 0.0, %v2714
        %v2716 = vpop.f32.mrb[0].mxu0
        %2717 = vmatprep.mubr.bf16.mxu0 %v2452
        %2718 = vmatmul.mubr.bf16.gmra.mrb[0].mxu0 %v2451
        %v2719 = vpop.f32.mrb[0].mxu0
        %v2720 = vadd.f32 0.0, %v2719
        %v2721 = vpop.f32.mrb[0].mxu0
        %v2722 = vpop.f32.mrb[0].mxu0
        %v2723 = vadd.f32 0.0, %v2722
        %v2724 = vpop.f32.mrb[0].mxu0
        %2725 = vmatprep.mubr.bf16.mxu0 %v2455
        %2726 = vmatmul.mubr.bf16.gmra.mrb[0].mxu0 %v2454
        %v2727 = vpop.f32.mrb[0].mxu0
        %v2728 = vadd.f32 0.0, %v2727
        %v2729 = vpop.f32.mrb[0].mxu0
        %v2730 = vpop.f32.mrb[0].mxu0
        %v2731 = vadd.f32 0.0, %v2730
        %v2732 = vpop.f32.mrb[0].mxu0
        %2733 = vmatprep.mubr.bf16.mxu0 %v2458
        %2734 = vmatmul.mubr.bf16.gmra.mrb[0].mxu0 %v2457
        %v2735 = vpop.f32.mrb[0].mxu0
        %v2736 = vadd.f32 0.0, %v2735
        %v2737 = vpop.f32.mrb[0].mxu0
        %v2738 = vpop.f32.mrb[0].mxu0
        %v2739 = vadd.f32 0.0, %v2738
        %v2740 = vpop.f32.mrb[0].mxu0
        %2741 = vmatprep.mubr.bf16.mxu0 %v2461
        %2742 = vmatmul.mubr.bf16.gmra.mrb[0].mxu0 %v2460
        %v2743 = vpop.f32.mrb[0].mxu0
        %v2744 = vadd.f32 0.0, %v2743
        %v2745 = vpop.f32.mrb[0].mxu0
        %v2746 = vpop.f32.mrb[0].mxu0
        %v2747 = vadd.f32 0.0, %v2746
        %v2748 = vpop.f32.mrb[0].mxu0
        %2749 = vmatprep.mubr.bf16.mxu0 %v2464
        %2750 = vmatmul.mubr.bf16.gmra.mrb[0].mxu0 %v2463
        %v2751 = vpop.f32.mrb[0].mxu0
        %v2752 = vadd.f32 0.0, %v2751
        %v2753 = vpop.f32.mrb[0].mxu0
        %v2754 = vpop.f32.mrb[0].mxu0
        %v2755 = vadd.f32 0.0, %v2754
        %v2756 = vpop.f32.mrb[0].mxu0
        %2757 = vmatprep.mubr.bf16.mxu0 %v2467
        %2758 = vmatmul.mubr.bf16.gmra.mrb[0].mxu0 %v2466
        %v2759 = vpop.f32.mrb[0].mxu0
        %v2760 = vadd.f32 0.0, %v2759
        %v2761 = vpop.f32.mrb[0].mxu0
        %v2762 = vpop.f32.mrb[0].mxu0
        %v2763 = vadd.f32 0.0, %v2762
        %v2764 = vpop.f32.mrb[0].mxu0
        %2765 = vmatprep.mubr.bf16.mxu0 %v2470
        %2766 = vmatmul.mubr.bf16.gmra.mrb[0].mxu0 %v2469
        %v2767 = vpop.f32.mrb[0].mxu0
        %v2768 = vadd.f32 0.0, %v2767
        %v2769 = vpop.f32.mrb[0].mxu0
        %v2770 = vpop.f32.mrb[0].mxu0
        %v2771 = vadd.f32 0.0, %v2770
        %v2772 = vpop.f32.mrb[0].mxu0
        %2773 = vmatprep.mubr.bf16.mxu0 %v2473
        %2774 = vmatmul.mubr.bf16.gmra.mrb[0].mxu0 %v2472
        %v2775 = vpop.f32.mrb[0].mxu0
        %v2776 = vadd.f32 0.0, %v2775
        %v2777 = vpop.f32.mrb[0].mxu0
        %v2778 = vpop.f32.mrb[0].mxu0
        %v2779 = vadd.f32 0.0, %v2778
        %v2780 = vpop.f32.mrb[0].mxu0
        %2781 = vmatprep.mubr.bf16.mxu0 %v2476
        %2782 = vmatmul.mubr.bf16.gmra.mrb[0].mxu0 %v2475
        %v2783 = vpop.f32.mrb[0].mxu0
        %v2784 = vadd.f32 0.0, %v2783
        %v2785 = vpop.f32.mrb[0].mxu0
        %v2786 = vpop.f32.mrb[0].mxu0
        %v2787 = vadd.f32 0.0, %v2786
        %v2788 = vpop.f32.mrb[0].mxu0
        %2789 = vmatprep.mubr.bf16.mxu0 %v2479
        %2790 = vmatmul.mubr.bf16.gmra.mrb[0].mxu0 %v2478
        %v2791 = vpop.f32.mrb[0].mxu0
        %v2792 = vadd.f32 0.0, %v2791
        %v2793 = vpop.f32.mrb[0].mxu0
        %v2794 = vpop.f32.mrb[0].mxu0
        %v2795 = vadd.f32 0.0, %v2794
        %v2796 = vpop.f32.mrb[0].mxu0
        %2797 = vmatprep.mubr.bf16.mxu0 %v2482
        %2798 = vmatmul.mubr.bf16.gmra.mrb[0].mxu0 %v2481
        %v2799 = vpop.f32.mrb[0].mxu0
        %v2800 = vadd.f32 0.0, %v2799
        %v2801 = vpop.f32.mrb[0].mxu0
        %v2802 = vpop.f32.mrb[0].mxu0
        %v2803 = vadd.f32 0.0, %v2802
        %v2804 = vpop.f32.mrb[0].mxu0
        %2805 = vmatprep.mubr.bf16.mxu0 %v2485
        %2806 = vmatmul.mubr.bf16.gmra.mrb[0].mxu0 %v2484
        %v2807 = vpop.f32.mrb[0].mxu0
        %v2808 = vadd.f32 0.0, %v2807
        %v2809 = vpop.f32.mrb[0].mxu0
        %v2810 = vpop.f32.mrb[0].mxu0
        %v2811 = vadd.f32 0.0, %v2810
        %v2812 = vpop.f32.mrb[0].mxu0
        %2813 = vmatprep.mubr.bf16.mxu0 %v2488
        %2814 = vmatmul.mubr.bf16.gmra.mrb[0].mxu0 %v2487
        %v2815 = vpop.f32.mrb[0].mxu0
        %v2816 = vadd.f32 0.0, %v2815
        %v2817 = vpop.f32.mrb[0].mxu0
        %v2818 = vpop.f32.mrb[0].mxu0
        %v2819 = vadd.f32 0.0, %v2818
        %v2820 = vpop.f32.mrb[0].mxu0
        %2821 = vmatprep.mubr.bf16.mxu0 %v2491
        %2822 = vmatmul.mubr.bf16.gmra.mrb[0].mxu0 %v2490
        %v2823 = vpop.f32.mrb[0].mxu0
        %v2824 = vadd.f32 0.0, %v2823
        %v2825 = vpop.f32.mrb[0].mxu0
        %v2826 = vpop.f32.mrb[0].mxu0
        %v2827 = vadd.f32 0.0, %v2826
        %v2828 = vpop.f32.mrb[0].mxu0
        %2829 = vdwg.mxu0
        %2830 = vmatprep.subr.bf16.mxu0 0
        %2831 = vmatpush1.bf16.msra.mxu0 %v2637
        %2832 = vmatprep.subr.bf16.mxu0 0
        %2833 = vmatpush1.bf16.msra.mxu0 %v2638
        %2834 = vmatprep.subr.bf16.mxu0 0
        %2835 = vmatpush1.bf16.msra.mxu0 %v2639
        %2836 = vmatprep.subr.bf16.mxu0 0
        %2837 = vmatpush1.bf16.msra.mxu0 %v2640
        %2838 = vmatprep.subr.bf16.mxu0 0
        %2839 = vmatpush1.bf16.msra.mxu0 %v2641
        %2840 = vmatprep.subr.bf16.mxu0 0
        %2841 = vmatpush1.bf16.msra.mxu0 %v2642
        %2842 = vmatprep.subr.bf16.mxu0 0
        %2843 = vmatpush1.bf16.msra.mxu0 %v2643
        %2844 = vmatprep.subr.bf16.mxu0 0
        %2845 = vmatpush1.bf16.msra.mxu0 %v2644
        %2846 = vmatprep.subr.bf16.mxu0 0
        %2847 = vmatpush1.bf16.msra.mxu0 0
        %2848 = vmatprep.subr.bf16.mxu0 0
        %2849 = vmatpush1.bf16.msra.mxu0 0
        %2850 = vmatprep.subr.bf16.mxu0 0
        %2851 = vmatpush1.bf16.msra.mxu0 0
        %2852 = vmatprep.subr.bf16.mxu0 0
        %2853 = vmatpush1.bf16.msra.mxu0 0
        %2854 = vmatprep.subr.bf16.mxu0 0
        %2855 = vmatpush1.bf16.msra.mxu0 0
        %2856 = vmatprep.subr.bf16.mxu0 0
        %2857 = vmatpush1.bf16.msra.mxu0 0
        %2858 = vmatprep.subr.bf16.mxu0 0
        %2859 = vmatpush1.bf16.msra.mxu0 0
        %2860 = vmatprep.subr.bf16.mxu0 0
        %2861 = vmatpush1.bf16.msra.mxu0 0
        %2862 = vmatprep.mubr.bf16.mxu0 0
        %2863 = vmatmul.mubr.bf16.gmra.mrb[0].mxu0 %v2447
        %v2864 = vpop.f32.mrb[0].mxu0
        %v2865 = vadd.f32 %v2704, %v2864
        %v2866 = vpop.f32.mrb[0].mxu0
        %v2867 = vpop.f32.mrb[0].mxu0
        %v2868 = vadd.f32 %v2707, %v2867
        %v2869 = vpop.f32.mrb[0].mxu0
        %2870 = vmatprep.mubr.bf16.mxu0 0
        %2871 = vmatmul.mubr.bf16.gmra.mrb[0].mxu0 %v2450
        %v2872 = vpop.f32.mrb[0].mxu0
        %v2873 = vadd.f32 %v2712, %v2872
        %v2874 = vpop.f32.mrb[0].mxu0
        %v2875 = vpop.f32.mrb[0].mxu0
        %v2876 = vadd.f32 %v2715, %v2875
        %v2877 = vpop.f32.mrb[0].mxu0
        %2878 = vmatprep.mubr.bf16.mxu0 0
        %2879 = vmatmul.mubr.bf16.gmra.mrb[0].mxu0 %v2453
        %v2880 = vpop.f32.mrb[0].mxu0
        %v2881 = vadd.f32 %v2720, %v2880
        %v2882 = vpop.f32.mrb[0].mxu0
        %v2883 = vpop.f32.mrb[0].mxu0
        %v2884 = vadd.f32 %v2723, %v2883
        %v2885 = vpop.f32.mrb[0].mxu0
        %2886 = vmatprep.mubr.bf16.mxu0 0
        %2887 = vmatmul.mubr.bf16.gmra.mrb[0].mxu0 %v2456
        %v2888 = vpop.f32.mrb[0].mxu0
        %v2889 = vadd.f32 %v2728, %v2888
        %v2890 = vpop.f32.mrb[0].mxu0
        %v2891 = vpop.f32.mrb[0].mxu0
        %v2892 = vadd.f32 %v2731, %v2891
        %v2893 = vpop.f32.mrb[0].mxu0
        %2894 = vmatprep.mubr.bf16.mxu0 0
        %2895 = vmatmul.mubr.bf16.gmra.mrb[0].mxu0 %v2459
        %v2896 = vpop.f32.mrb[0].mxu0
        %v2897 = vadd.f32 %v2736, %v2896
        %v2898 = vpop.f32.mrb[0].mxu0
        %v2899 = vpop.f32.mrb[0].mxu0
        %v2900 = vadd.f32 %v2739, %v2899
        %v2901 = vpop.f32.mrb[0].mxu0
        %2902 = vmatprep.mubr.bf16.mxu0 0
        %2903 = vmatmul.mubr.bf16.gmra.mrb[0].mxu0 %v2462
        %v2904 = vpop.f32.mrb[0].mxu0
        %v2905 = vadd.f32 %v2744, %v2904
        %v2906 = vpop.f32.mrb[0].mxu0
        %v2907 = vpop.f32.mrb[0].mxu0
        %v2908 = vadd.f32 %v2747, %v2907
        %v2909 = vpop.f32.mrb[0].mxu0
        %2910 = vmatprep.mubr.bf16.mxu0 0
        %2911 = vmatmul.mubr.bf16.gmra.mrb[0].mxu0 %v2465
        %v2912 = vpop.f32.mrb[0].mxu0
        %v2913 = vadd.f32 %v2752, %v2912
        %v2914 = vpop.f32.mrb[0].mxu0
        %v2915 = vpop.f32.mrb[0].mxu0
        %v2916 = vadd.f32 %v2755, %v2915
        %v2917 = vpop.f32.mrb[0].mxu0
        %2918 = vmatprep.mubr.bf16.mxu0 0
        %2919 = vmatmul.mubr.bf16.gmra.mrb[0].mxu0 %v2468
        %v2920 = vpop.f32.mrb[0].mxu0
        %v2921 = vadd.f32 %v2760, %v2920
        %v2922 = vpop.f32.mrb[0].mxu0
        %v2923 = vpop.f32.mrb[0].mxu0
        %v2924 = vadd.f32 %v2763, %v2923
        %v2925 = vpop.f32.mrb[0].mxu0
        %2926 = vmatprep.mubr.bf16.mxu0 0
        %2927 = vmatmul.mubr.bf16.gmra.mrb[0].mxu0 %v2471
        %v2928 = vpop.f32.mrb[0].mxu0
        %v2929 = vadd.f32 %v2768, %v2928
        %v2930 = vpop.f32.mrb[0].mxu0
        %v2931 = vpop.f32.mrb[0].mxu0
        %v2932 = vadd.f32 %v2771, %v2931
        %v2933 = vpop.f32.mrb[0].mxu0
        %2934 = vmatprep.mubr.bf16.mxu0 0
        %2935 = vmatmul.mubr.bf16.gmra.mrb[0].mxu0 %v2474
        %v2936 = vpop.f32.mrb[0].mxu0
        %v2937 = vadd.f32 %v2776, %v2936
        %v2938 = vpop.f32.mrb[0].mxu0
        %v2939 = vpop.f32.mrb[0].mxu0
        %v2940 = vadd.f32 %v2779, %v2939
        %v2941 = vpop.f32.mrb[0].mxu0
        %2942 = vmatprep.mubr.bf16.mxu0 0
        %2943 = vmatmul.mubr.bf16.gmra.mrb[0].mxu0 %v2477
        %v2944 = vpop.f32.mrb[0].mxu0
        %v2945 = vadd.f32 %v2784, %v2944
        %v2946 = vpop.f32.mrb[0].mxu0
        %v2947 = vpop.f32.mrb[0].mxu0
        %v2948 = vadd.f32 %v2787, %v2947
        %v2949 = vpop.f32.mrb[0].mxu0
        %2950 = vmatprep.mubr.bf16.mxu0 0
        %2951 = vmatmul.mubr.bf16.gmra.mrb[0].mxu0 %v2480
        %v2952 = vpop.f32.mrb[0].mxu0
        %v2953 = vadd.f32 %v2792, %v2952
        %v2954 = vpop.f32.mrb[0].mxu0
        %v2955 = vpop.f32.mrb[0].mxu0
        %v2956 = vadd.f32 %v2795, %v2955
        %v2957 = vpop.f32.mrb[0].mxu0
        %2958 = vmatprep.mubr.bf16.mxu0 0
        %2959 = vmatmul.mubr.bf16.gmra.mrb[0].mxu0 %v2483
        %v2960 = vpop.f32.mrb[0].mxu0
        %v2961 = vadd.f32 %v2800, %v2960
        %v2962 = vpop.f32.mrb[0].mxu0
        %v2963 = vpop.f32.mrb[0].mxu0
        %v2964 = vadd.f32 %v2803, %v2963
        %v2965 = vpop.f32.mrb[0].mxu0
        %2966 = vmatprep.mubr.bf16.mxu0 0
        %2967 = vmatmul.mubr.bf16.gmra.mrb[0].mxu0 %v2486
        %v2968 = vpop.f32.mrb[0].mxu0
        %v2969 = vadd.f32 %v2808, %v2968
        %v2970 = vpop.f32.mrb[0].mxu0
        %v2971 = vpop.f32.mrb[0].mxu0
        %v2972 = vadd.f32 %v2811, %v2971
        %v2973 = vpop.f32.mrb[0].mxu0
        %2974 = vmatprep.mubr.bf16.mxu0 0
        %2975 = vmatmul.mubr.bf16.gmra.mrb[0].mxu0 %v2489
        %v2976 = vpop.f32.mrb[0].mxu0
        %v2977 = vadd.f32 %v2816, %v2976
        %v2978 = vpop.f32.mrb[0].mxu0
        %v2979 = vpop.f32.mrb[0].mxu0
        %v2980 = vadd.f32 %v2819, %v2979
        %v2981 = vpop.f32.mrb[0].mxu0
        %2982 = vmatprep.mubr.bf16.mxu0 0
        %2983 = vmatmul.mubr.bf16.gmra.mrb[0].mxu0 %v2492
        %v2984 = vpop.f32.mrb[0].mxu0
        %v2985 = vadd.f32 %v2824, %v2984
        %v2986 = vpop.f32.mrb[0].mxu0
        %v2987 = vpop.f32.mrb[0].mxu0
        %v2988 = vadd.f32 %v2827, %v2987
        %v2989 = vpop.f32.mrb[0].mxu0
        %2990 = vdwg.mxu0
        %v2991 = vadd.f32 %v2493, %v2865
        %v2992 = vadd.f32 %v2494, %v2868
        %v2993 = vadd.f32 %v2495, %v2873
        %v2994 = vadd.f32 %v2496, %v2876
        %v2995 = vadd.f32 %v2497, %v2881
        %v2996 = vadd.f32 %v2498, %v2884
        %v2997 = vadd.f32 %v2499, %v2889
        %v2998 = vadd.f32 %v2500, %v2892
        %v2999 = vadd.f32 %v2501, %v2897
        %v3000 = vadd.f32 %v2502, %v2900
        %v3001 = vadd.f32 %v2503, %v2905
        %v3002 = vadd.f32 %v2504, %v2908
        %v3003 = vadd.f32 %v2505, %v2913
        %v3004 = vadd.f32 %v2506, %v2916
        %v3005 = vadd.f32 %v2507, %v2921
        %v3006 = vadd.f32 %v2508, %v2924
        %v3007 = vadd.f32 %v2509, %v2929
        %v3008 = vadd.f32 %v2510, %v2932
        %v3009 = vadd.f32 %v2511, %v2937
        %v3010 = vadd.f32 %v2512, %v2940
        %v3011 = vadd.f32 %v2513, %v2945
        %v3012 = vadd.f32 %v2514, %v2948
        %v3013 = vadd.f32 %v2515, %v2953
        %v3014 = vadd.f32 %v2516, %v2956
        %v3015 = vadd.f32 %v2517, %v2961
        %v3016 = vadd.f32 %v2518, %v2964
        %v3017 = vadd.f32 %v2519, %v2969
        %v3018 = vadd.f32 %v2520, %v2972
        %v3019 = vadd.f32 %v2521, %v2977
        %v3020 = vadd.f32 %v2522, %v2980
        %v3021 = vadd.f32 %v2523, %v2985
        %v3022 = vadd.f32 %v2524, %v2988
        %3023 = vst.msk [vmem:[#allocation3] sm:$0xff] %vm742, %v2991
        %3024 = vst.msk [vmem:[#allocation3 + $0x8] sm:$0xff] %vm742, %v2992
        %3025 = vst.msk [vmem:[#allocation3 + $0x10] sm:$0xff] %vm742, %v2993
        %3026 = vst.msk [vmem:[#allocation3 + $0x18] sm:$0xff] %vm742, %v2994
        %3027 = vst.msk [vmem:[#allocation3 + $0x20] sm:$0xff] %vm742, %v2995
        %3028 = vst.msk [vmem:[#allocation3 + $0x28] sm:$0xff] %vm742, %v2996
        %3029 = vst.msk [vmem:[#allocation3 + $0x30] sm:$0xff] %vm742, %v2997
        %3030 = vst.msk [vmem:[#allocation3 + $0x38] sm:$0xff] %vm742, %v2998
        %3031 = vst.msk [vmem:[#allocation3 + $0x40] sm:$0xff] %vm742, %v2999
        %3032 = vst.msk [vmem:[#allocation3 + $0x48] sm:$0xff] %vm742, %v3000
        %3033 = vst.msk [vmem:[#allocation3 + $0x50] sm:$0xff] %vm742, %v3001
        %3034 = vst.msk [vmem:[#allocation3 + $0x58] sm:$0xff] %vm742, %v3002
        %3035 = vst.msk [vmem:[#allocation3 + $0x60] sm:$0xff] %vm742, %v3003
        %3036 = vst.msk [vmem:[#allocation3 + $0x68] sm:$0xff] %vm742, %v3004
        %3037 = vst.msk [vmem:[#allocation3 + $0x70] sm:$0xff] %vm742, %v3005
        %3038 = vst.msk [vmem:[#allocation3 + $0x78] sm:$0xff] %vm742, %v3006
        %3039 = vst.msk [vmem:[#allocation3 + $0x80] sm:$0xff] %vm742, %v3007
        %3040 = vst.msk [vmem:[#allocation3 + $0x88] sm:$0xff] %vm742, %v3008
        %3041 = vst.msk [vmem:[#allocation3 + $0x90] sm:$0xff] %vm742, %v3009
        %3042 = vst.msk [vmem:[#allocation3 + $0x98] sm:$0xff] %vm742, %v3010
        %3043 = vst.msk [vmem:[#allocation3 + $0xa0] sm:$0xff] %vm742, %v3011
        %3044 = vst.msk [vmem:[#allocation3 + $0xa8] sm:$0xff] %vm742, %v3012
        %3045 = vst.msk [vmem:[#allocation3 + $0xb0] sm:$0xff] %vm742, %v3013
        %3046 = vst.msk [vmem:[#allocation3 + $0xb8] sm:$0xff] %vm742, %v3014
        %3047 = vst.msk [vmem:[#allocation3 + $0xc0] sm:$0xff] %vm742, %v3015
        %3048 = vst.msk [vmem:[#allocation3 + $0xc8] sm:$0xff] %vm742, %v3016
        %3049 = vst.msk [vmem:[#allocation3 + $0xd0] sm:$0xff] %vm742, %v3017
        %3050 = vst.msk [vmem:[#allocation3 + $0xd8] sm:$0xff] %vm742, %v3018
        %3051 = vst.msk [vmem:[#allocation3 + $0xe0] sm:$0xff] %vm742, %v3019
        %3052 = vst.msk [vmem:[#allocation3 + $0xe8] sm:$0xff] %vm742, %v3020
        %3053 = vst.msk [vmem:[#allocation3 + $0xf0] sm:$0xff] %vm742, %v3021
        %3054 = vst.msk [vmem:[#allocation3 + $0xf8] sm:$0xff] %vm742, %v3022
        %v3055 = vld [vmem:[#allocation3] sm:$0xff]
        %v3056 = vld [vmem:[#allocation3 + $0x8] sm:$0xff]
        %v3057 = vld [vmem:[#allocation3 + $0x10] sm:$0xff]
        %v3058 = vld [vmem:[#allocation3 + $0x18] sm:$0xff]
        %v3059 = vld [vmem:[#allocation3 + $0x20] sm:$0xff]
        %v3060 = vld [vmem:[#allocation3 + $0x28] sm:$0xff]
        %v3061 = vld [vmem:[#allocation3 + $0x30] sm:$0xff]
        %v3062 = vld [vmem:[#allocation3 + $0x38] sm:$0xff]
        %v3063 = vld [vmem:[#allocation3 + $0x40] sm:$0xff]
        %v3064 = vld [vmem:[#allocation3 + $0x48] sm:$0xff]
        %v3065 = vld [vmem:[#allocation3 + $0x50] sm:$0xff]
        %v3066 = vld [vmem:[#allocation3 + $0x58] sm:$0xff]
        %v3067 = vld [vmem:[#allocation3 + $0x60] sm:$0xff]
        %v3068 = vld [vmem:[#allocation3 + $0x68] sm:$0xff]
        %v3069 = vld [vmem:[#allocation3 + $0x70] sm:$0xff]
        %v3070 = vld [vmem:[#allocation3 + $0x78] sm:$0xff]
        %v3071 = vld [vmem:[#allocation3 + $0x80] sm:$0xff]
        %v3072 = vld [vmem:[#allocation3 + $0x88] sm:$0xff]
        %v3073 = vld [vmem:[#allocation3 + $0x90] sm:$0xff]
        %v3074 = vld [vmem:[#allocation3 + $0x98] sm:$0xff]
        %v3075 = vld [vmem:[#allocation3 + $0xa0] sm:$0xff]
        %v3076 = vld [vmem:[#allocation3 + $0xa8] sm:$0xff]
        %v3077 = vld [vmem:[#allocation3 + $0xb0] sm:$0xff]
        %v3078 = vld [vmem:[#allocation3 + $0xb8] sm:$0xff]
        %v3079 = vld [vmem:[#allocation3 + $0xc0] sm:$0xff]
        %v3080 = vld [vmem:[#allocation3 + $0xc8] sm:$0xff]
        %v3081 = vld [vmem:[#allocation3 + $0xd0] sm:$0xff]
        %v3082 = vld [vmem:[#allocation3 + $0xd8] sm:$0xff]
        %v3083 = vld [vmem:[#allocation3 + $0xe0] sm:$0xff]
        %v3084 = vld [vmem:[#allocation3 + $0xe8] sm:$0xff]
        %v3085 = vld [vmem:[#allocation3 + $0xf0] sm:$0xff]
        %v3086 = vld [vmem:[#allocation3 + $0xf8] sm:$0xff]
        %v3088 = vlaneseq
        %v3089 = vshrl.u32 %v3088, 7
        %v3090 = vsub.s32 0, %v3089
        %v3091 = vrot.slane %v1284, %v3090
        %v3093 = vadd.f32 %v3055, %v3091
        %v3094 = vadd.f32 %v3056, %v3091
        %v3095 = vadd.f32 %v3057, %v3091
        %v3096 = vadd.f32 %v3058, %v3091
        %v3097 = vadd.f32 %v3059, %v3091
        %v3098 = vadd.f32 %v3060, %v3091
        %v3099 = vadd.f32 %v3061, %v3091
        %v3100 = vadd.f32 %v3062, %v3091
        %v3101 = vadd.f32 %v3063, %v3091
        %v3102 = vadd.f32 %v3064, %v3091
        %v3103 = vadd.f32 %v3065, %v3091
        %v3104 = vadd.f32 %v3066, %v3091
        %v3105 = vadd.f32 %v3067, %v3091
        %v3106 = vadd.f32 %v3068, %v3091
        %v3107 = vadd.f32 %v3069, %v3091
        %v3108 = vadd.f32 %v3070, %v3091
        %v3109 = vadd.f32 %v3071, %v3091
        %v3110 = vadd.f32 %v3072, %v3091
        %v3111 = vadd.f32 %v3073, %v3091
        %v3112 = vadd.f32 %v3074, %v3091
        %v3113 = vadd.f32 %v3075, %v3091
        %v3114 = vadd.f32 %v3076, %v3091
        %v3115 = vadd.f32 %v3077, %v3091
        %v3116 = vadd.f32 %v3078, %v3091
        %v3117 = vadd.f32 %v3079, %v3091
        %v3118 = vadd.f32 %v3080, %v3091
        %v3119 = vadd.f32 %v3081, %v3091
        %v3120 = vadd.f32 %v3082, %v3091
        %v3121 = vadd.f32 %v3083, %v3091
        %v3122 = vadd.f32 %v3084, %v3091
        %v3123 = vadd.f32 %v3085, %v3091
        %v3124 = vadd.f32 %v3086, %v3091
        %v3125 = vmax.f32 %v3093, 0.0
        %v3126 = vmax.f32 %v3094, 0.0
        %v3127 = vmax.f32 %v3095, 0.0
        %v3128 = vmax.f32 %v3096, 0.0
        %v3129 = vmax.f32 %v3097, 0.0
        %v3130 = vmax.f32 %v3098, 0.0
        %v3131 = vmax.f32 %v3099, 0.0
        %v3132 = vmax.f32 %v3100, 0.0
        %v3133 = vmax.f32 %v3101, 0.0
        %v3134 = vmax.f32 %v3102, 0.0
        %v3135 = vmax.f32 %v3103, 0.0
        %v3136 = vmax.f32 %v3104, 0.0
        %v3137 = vmax.f32 %v3105, 0.0
        %v3138 = vmax.f32 %v3106, 0.0
        %v3139 = vmax.f32 %v3107, 0.0
        %v3140 = vmax.f32 %v3108, 0.0
        %v3141 = vmax.f32 %v3109, 0.0
        %v3142 = vmax.f32 %v3110, 0.0
        %v3143 = vmax.f32 %v3111, 0.0
        %v3144 = vmax.f32 %v3112, 0.0
        %v3145 = vmax.f32 %v3113, 0.0
        %v3146 = vmax.f32 %v3114, 0.0
        %v3147 = vmax.f32 %v3115, 0.0
        %v3148 = vmax.f32 %v3116, 0.0
        %v3149 = vmax.f32 %v3117, 0.0
        %v3150 = vmax.f32 %v3118, 0.0
        %v3151 = vmax.f32 %v3119, 0.0
        %v3152 = vmax.f32 %v3120, 0.0
        %v3153 = vmax.f32 %v3121, 0.0
        %v3154 = vmax.f32 %v3122, 0.0
        %v3155 = vmax.f32 %v3123, 0.0
        %v3156 = vmax.f32 %v3124, 0.0
        %v3157 = vpack.c.bf16 %v3126, %v3125
        %v3158 = vpack.c.bf16 %v3128, %v3127
        %v3159 = vpack.c.bf16 %v3130, %v3129
        %v3160 = vpack.c.bf16 %v3132, %v3131
        %v3161 = vpack.c.bf16 %v3134, %v3133
        %v3162 = vpack.c.bf16 %v3136, %v3135
        %v3163 = vpack.c.bf16 %v3138, %v3137
        %v3164 = vpack.c.bf16 %v3140, %v3139
        %v3165 = vpack.c.bf16 %v3142, %v3141
        %v3166 = vpack.c.bf16 %v3144, %v3143
        %v3167 = vpack.c.bf16 %v3146, %v3145
        %v3168 = vpack.c.bf16 %v3148, %v3147
        %v3169 = vpack.c.bf16 %v3150, %v3149
        %v3170 = vpack.c.bf16 %v3152, %v3151
        %v3171 = vpack.c.bf16 %v3154, %v3153
        %v3172 = vpack.c.bf16 %v3156, %v3155
        %v3173 = vld [vmem:[%s276] sm:$0xf]
        %v3174 = vld [vmem:[%s276 + $0x4] sm:$0xf]
        %v3175 = vld [vmem:[%s276 + $0x8] sm:$0xf]
        %v3176 = vld [vmem:[%s276 + $0xc] sm:$0xf]
        %v3177 = vld [vmem:[%s276 + $0x10] sm:$0xf]
        %v3178 = vld [vmem:[%s276 + $0x14] sm:$0xf]
        %v3179 = vld [vmem:[%s276 + $0x18] sm:$0xf]
        %v3180 = vld [vmem:[%s276 + $0x1c] sm:$0xf]
        %v3181 = vld [vmem:[%s276 + $0x20] sm:$0xf]
        %v3182 = vld [vmem:[%s276 + $0x24] sm:$0xf]
        %v3183 = vld [vmem:[%s276 + $0x28] sm:$0xf]
        %v3184 = vld [vmem:[%s276 + $0x2c] sm:$0xf]
        %v3185 = vld [vmem:[%s276 + $0x30] sm:$0xf]
        %v3186 = vld [vmem:[%s276 + $0x34] sm:$0xf]
        %v3187 = vld [vmem:[%s276 + $0x38] sm:$0xf]
        %v3188 = vld [vmem:[%s276 + $0x3c] sm:$0xf]
        %v3189 = vld [vmem:[%s276 + $0x40] sm:$0xf]
        %v3190 = vld [vmem:[%s276 + $0x44] sm:$0xf]
        %v3191 = vld [vmem:[%s276 + $0x48] sm:$0xf]
        %v3192 = vld [vmem:[%s276 + $0x4c] sm:$0xf]
        %v3193 = vld [vmem:[%s276 + $0x50] sm:$0xf]
        %v3194 = vld [vmem:[%s276 + $0x54] sm:$0xf]
        %v3195 = vld [vmem:[%s276 + $0x58] sm:$0xf]
        %v3196 = vld [vmem:[%s276 + $0x5c] sm:$0xf]
        %v3197 = vld [vmem:[%s276 + $0x60] sm:$0xf]
        %v3198 = vld [vmem:[%s276 + $0x64] sm:$0xf]
        %v3199 = vld [vmem:[%s276 + $0x68] sm:$0xf]
        %v3200 = vld [vmem:[%s276 + $0x6c] sm:$0xf]
        %v3201 = vld [vmem:[%s276 + $0x70] sm:$0xf]
        %v3202 = vld [vmem:[%s276 + $0x74] sm:$0xf]
        %v3203 = vld [vmem:[%s276 + $0x78] sm:$0xf]
        %v3204 = vld [vmem:[%s276 + $0x7c] sm:$0xf]
        %v3205 = vunpack.c.l.bf16 %v3173
        %v3206 = vunpack.c.l.bf16 %v3174
        %v3207 = vunpack.c.l.bf16 %v3175
        %v3208 = vunpack.c.l.bf16 %v3176
        %v3209 = vunpack.c.l.bf16 %v3177
        %v3210 = vunpack.c.l.bf16 %v3178
        %v3211 = vunpack.c.l.bf16 %v3179
        %v3212 = vunpack.c.l.bf16 %v3180
        %v3213 = vunpack.c.l.bf16 %v3181
        %v3214 = vunpack.c.l.bf16 %v3182
        %v3215 = vunpack.c.l.bf16 %v3183
        %v3216 = vunpack.c.l.bf16 %v3184
        %v3217 = vunpack.c.l.bf16 %v3185
        %v3218 = vunpack.c.l.bf16 %v3186
        %v3219 = vunpack.c.l.bf16 %v3187
        %v3220 = vunpack.c.l.bf16 %v3188
        %v3221 = vunpack.c.l.bf16 %v3189
        %v3222 = vunpack.c.l.bf16 %v3190
        %v3223 = vunpack.c.l.bf16 %v3191
        %v3224 = vunpack.c.l.bf16 %v3192
        %v3225 = vunpack.c.l.bf16 %v3193
        %v3226 = vunpack.c.l.bf16 %v3194
        %v3227 = vunpack.c.l.bf16 %v3195
        %v3228 = vunpack.c.l.bf16 %v3196
        %v3229 = vunpack.c.l.bf16 %v3197
        %v3230 = vunpack.c.l.bf16 %v3198
        %v3231 = vunpack.c.l.bf16 %v3199
        %v3232 = vunpack.c.l.bf16 %v3200
        %v3233 = vunpack.c.l.bf16 %v3201
        %v3234 = vunpack.c.l.bf16 %v3202
        %v3235 = vunpack.c.l.bf16 %v3203
        %v3236 = vunpack.c.l.bf16 %v3204
        %v3238 = vlaneseq
        %v3239 = vshrl.u32 %v3238, 7
        %v3240 = vsub.s32 0, %v3239
        %v3241 = vrot.slane %v1287, %v3240
        %v3245 = vunpack.c.l.b16 %v1285
        %v3246 = vunpack.c.l.b16 %v1286
        %v3247 = vpack.c.b16 %v3246, %v3245
        %v3250 = vsel %vm742, %v3157, 0
        %v3253 = vsel %vm742, %v3158, 0
        %v3256 = vsel %vm742, %v3159, 0
        %v3259 = vsel %vm742, %v3160, 0
        %v3262 = vsel %vm742, %v3161, 0
        %v3265 = vsel %vm742, %v3162, 0
        %v3268 = vsel %vm742, %v3163, 0
        %v3271 = vsel %vm742, %v3164, 0
        %v3274 = vsel %vm742, %v3165, 0
        %v3277 = vsel %vm742, %v3166, 0
        %v3280 = vsel %vm742, %v3167, 0
        %v3283 = vsel %vm742, %v3168, 0
        %v3286 = vsel %vm742, %v3169, 0
        %v3289 = vsel %vm742, %v3170, 0
        %v3292 = vsel %vm742, %v3171, 0
        %v3295 = vsel %vm742, %v3172, 0
        %3297 = vmatprep.subr.bf16.mxu0 0
        %3298 = vmatpush1.bf16.msra.mxu0 %v3247
        %3299 = vmatprep.subr.bf16.mxu0 0
        %3300 = vmatpush1.bf16.msra.mxu0 0
        %3301 = vmatprep.subr.bf16.mxu0 0
        %3302 = vmatpush1.bf16.msra.mxu0 0
        %3303 = vmatprep.subr.bf16.mxu0 0
        %3304 = vmatpush1.bf16.msra.mxu0 0
        %3305 = vmatprep.subr.bf16.mxu0 0
        %3306 = vmatpush1.bf16.msra.mxu0 0
        %3307 = vmatprep.subr.bf16.mxu0 0
        %3308 = vmatpush1.bf16.msra.mxu0 0
        %3309 = vmatprep.subr.bf16.mxu0 0
        %3310 = vmatpush1.bf16.msra.mxu0 0
        %3311 = vmatprep.subr.bf16.mxu0 0
        %3312 = vmatpush1.bf16.msra.mxu0 0
        %3313 = vmatprep.subr.bf16.mxu0 0
        %3314 = vmatpush1.bf16.msra.mxu0 0
        %3315 = vmatprep.subr.bf16.mxu0 0
        %3316 = vmatpush1.bf16.msra.mxu0 0
        %3317 = vmatprep.subr.bf16.mxu0 0
        %3318 = vmatpush1.bf16.msra.mxu0 0
        %3319 = vmatprep.subr.bf16.mxu0 0
        %3320 = vmatpush1.bf16.msra.mxu0 0
        %3321 = vmatprep.subr.bf16.mxu0 0
        %3322 = vmatpush1.bf16.msra.mxu0 0
        %3323 = vmatprep.subr.bf16.mxu0 0
        %3324 = vmatpush1.bf16.msra.mxu0 0
        %3325 = vmatprep.subr.bf16.mxu0 0
        %3326 = vmatpush1.bf16.msra.mxu0 0
        %3327 = vmatprep.subr.bf16.mxu0 0
        %3328 = vmatpush1.bf16.msra.mxu0 0
        %3329 = vmatprep.mubr.bf16.mxu0 0
        %3330 = vmatmul.mubr.bf16.gmra.mrb[0].mxu0 %v3250
        %v3331 = vpop.f32.mrb[0].mxu0
        %v3332 = vadd.f32 %v3241, %v3331
        %v3333 = vpop.f32.mrb[0].mxu0
        %v3334 = vpop.f32.mrb[0].mxu0
        %v3335 = vadd.f32 %v3241, %v3334
        %v3336 = vpop.f32.mrb[0].mxu0
        %3337 = vmatprep.mubr.bf16.mxu0 0
        %3338 = vmatmul.mubr.bf16.gmra.mrb[0].mxu0 %v3253
        %v3339 = vpop.f32.mrb[0].mxu0
        %v3340 = vadd.f32 %v3241, %v3339
        %v3341 = vpop.f32.mrb[0].mxu0
        %v3342 = vpop.f32.mrb[0].mxu0
        %v3343 = vadd.f32 %v3241, %v3342
        %v3344 = vpop.f32.mrb[0].mxu0
        %3345 = vmatprep.mubr.bf16.mxu0 0
        %3346 = vmatmul.mubr.bf16.gmra.mrb[0].mxu0 %v3256
        %v3347 = vpop.f32.mrb[0].mxu0
        %v3348 = vadd.f32 %v3241, %v3347
        %v3349 = vpop.f32.mrb[0].mxu0
        %v3350 = vpop.f32.mrb[0].mxu0
        %v3351 = vadd.f32 %v3241, %v3350
        %v3352 = vpop.f32.mrb[0].mxu0
        %3353 = vmatprep.mubr.bf16.mxu0 0
        %3354 = vmatmul.mubr.bf16.gmra.mrb[0].mxu0 %v3259
        %v3355 = vpop.f32.mrb[0].mxu0
        %v3356 = vadd.f32 %v3241, %v3355
        %v3357 = vpop.f32.mrb[0].mxu0
        %v3358 = vpop.f32.mrb[0].mxu0
        %v3359 = vadd.f32 %v3241, %v3358
        %v3360 = vpop.f32.mrb[0].mxu0
        %3361 = vmatprep.mubr.bf16.mxu0 0
        %3362 = vmatmul.mubr.bf16.gmra.mrb[0].mxu0 %v3262
        %v3363 = vpop.f32.mrb[0].mxu0
        %v3364 = vadd.f32 %v3241, %v3363
        %v3365 = vpop.f32.mrb[0].mxu0
        %v3366 = vpop.f32.mrb[0].mxu0
        %v3367 = vadd.f32 %v3241, %v3366
        %v3368 = vpop.f32.mrb[0].mxu0
        %3369 = vmatprep.mubr.bf16.mxu0 0
        %3370 = vmatmul.mubr.bf16.gmra.mrb[0].mxu0 %v3265
        %v3371 = vpop.f32.mrb[0].mxu0
        %v3372 = vadd.f32 %v3241, %v3371
        %v3373 = vpop.f32.mrb[0].mxu0
        %v3374 = vpop.f32.mrb[0].mxu0
        %v3375 = vadd.f32 %v3241, %v3374
        %v3376 = vpop.f32.mrb[0].mxu0
        %3377 = vmatprep.mubr.bf16.mxu0 0
        %3378 = vmatmul.mubr.bf16.gmra.mrb[0].mxu0 %v3268
        %v3379 = vpop.f32.mrb[0].mxu0
        %v3380 = vadd.f32 %v3241, %v3379
        %v3381 = vpop.f32.mrb[0].mxu0
        %v3382 = vpop.f32.mrb[0].mxu0
        %v3383 = vadd.f32 %v3241, %v3382
        %v3384 = vpop.f32.mrb[0].mxu0
        %3385 = vmatprep.mubr.bf16.mxu0 0
        %3386 = vmatmul.mubr.bf16.gmra.mrb[0].mxu0 %v3271
        %v3387 = vpop.f32.mrb[0].mxu0
        %v3388 = vadd.f32 %v3241, %v3387
        %v3389 = vpop.f32.mrb[0].mxu0
        %v3390 = vpop.f32.mrb[0].mxu0
        %v3391 = vadd.f32 %v3241, %v3390
        %v3392 = vpop.f32.mrb[0].mxu0
        %3393 = vmatprep.mubr.bf16.mxu0 0
        %3394 = vmatmul.mubr.bf16.gmra.mrb[0].mxu0 %v3274
        %v3395 = vpop.f32.mrb[0].mxu0
        %v3396 = vadd.f32 %v3241, %v3395
        %v3397 = vpop.f32.mrb[0].mxu0
        %v3398 = vpop.f32.mrb[0].mxu0
        %v3399 = vadd.f32 %v3241, %v3398
        %v3400 = vpop.f32.mrb[0].mxu0
        %3401 = vmatprep.mubr.bf16.mxu0 0
        %3402 = vmatmul.mubr.bf16.gmra.mrb[0].mxu0 %v3277
        %v3403 = vpop.f32.mrb[0].mxu0
        %v3404 = vadd.f32 %v3241, %v3403
        %v3405 = vpop.f32.mrb[0].mxu0
        %v3406 = vpop.f32.mrb[0].mxu0
        %v3407 = vadd.f32 %v3241, %v3406
        %v3408 = vpop.f32.mrb[0].mxu0
        %3409 = vmatprep.mubr.bf16.mxu0 0
        %3410 = vmatmul.mubr.bf16.gmra.mrb[0].mxu0 %v3280
        %v3411 = vpop.f32.mrb[0].mxu0
        %v3412 = vadd.f32 %v3241, %v3411
        %v3413 = vpop.f32.mrb[0].mxu0
        %v3414 = vpop.f32.mrb[0].mxu0
        %v3415 = vadd.f32 %v3241, %v3414
        %v3416 = vpop.f32.mrb[0].mxu0
        %3417 = vmatprep.mubr.bf16.mxu0 0
        %3418 = vmatmul.mubr.bf16.gmra.mrb[0].mxu0 %v3283
        %v3419 = vpop.f32.mrb[0].mxu0
        %v3420 = vadd.f32 %v3241, %v3419
        %v3421 = vpop.f32.mrb[0].mxu0
        %v3422 = vpop.f32.mrb[0].mxu0
        %v3423 = vadd.f32 %v3241, %v3422
        %v3424 = vpop.f32.mrb[0].mxu0
        %3425 = vmatprep.mubr.bf16.mxu0 0
        %3426 = vmatmul.mubr.bf16.gmra.mrb[0].mxu0 %v3286
        %v3427 = vpop.f32.mrb[0].mxu0
        %v3428 = vadd.f32 %v3241, %v3427
        %v3429 = vpop.f32.mrb[0].mxu0
        %v3430 = vpop.f32.mrb[0].mxu0
        %v3431 = vadd.f32 %v3241, %v3430
        %v3432 = vpop.f32.mrb[0].mxu0
        %3433 = vmatprep.mubr.bf16.mxu0 0
        %3434 = vmatmul.mubr.bf16.gmra.mrb[0].mxu0 %v3289
        %v3435 = vpop.f32.mrb[0].mxu0
        %v3436 = vadd.f32 %v3241, %v3435
        %v3437 = vpop.f32.mrb[0].mxu0
        %v3438 = vpop.f32.mrb[0].mxu0
        %v3439 = vadd.f32 %v3241, %v3438
        %v3440 = vpop.f32.mrb[0].mxu0
        %3441 = vmatprep.mubr.bf16.mxu0 0
        %3442 = vmatmul.mubr.bf16.gmra.mrb[0].mxu0 %v3292
        %v3443 = vpop.f32.mrb[0].mxu0
        %v3444 = vadd.f32 %v3241, %v3443
        %v3445 = vpop.f32.mrb[0].mxu0
        %v3446 = vpop.f32.mrb[0].mxu0
        %v3447 = vadd.f32 %v3241, %v3446
        %v3448 = vpop.f32.mrb[0].mxu0
        %3449 = vmatprep.mubr.bf16.mxu0 0
        %3450 = vmatmul.mubr.bf16.gmra.mrb[0].mxu0 %v3295
        %v3451 = vpop.f32.mrb[0].mxu0
        %v3452 = vadd.f32 %v3241, %v3451
        %v3453 = vpop.f32.mrb[0].mxu0
        %v3454 = vpop.f32.mrb[0].mxu0
        %v3455 = vadd.f32 %v3241, %v3454
        %v3456 = vpop.f32.mrb[0].mxu0
        %3457 = vdwg.mxu0
        %v3458 = vadd.f32 %v3332, %v3205
        %v3459 = vadd.f32 %v3335, %v3206
        %v3460 = vadd.f32 %v3340, %v3207
        %v3461 = vadd.f32 %v3343, %v3208
        %v3462 = vadd.f32 %v3348, %v3209
        %v3463 = vadd.f32 %v3351, %v3210
        %v3464 = vadd.f32 %v3356, %v3211
        %v3465 = vadd.f32 %v3359, %v3212
        %v3466 = vadd.f32 %v3364, %v3213
        %v3467 = vadd.f32 %v3367, %v3214
        %v3468 = vadd.f32 %v3372, %v3215
        %v3469 = vadd.f32 %v3375, %v3216
        %v3470 = vadd.f32 %v3380, %v3217
        %v3471 = vadd.f32 %v3383, %v3218
        %v3472 = vadd.f32 %v3388, %v3219
        %v3473 = vadd.f32 %v3391, %v3220
        %v3474 = vadd.f32 %v3396, %v3221
        %v3475 = vadd.f32 %v3399, %v3222
        %v3476 = vadd.f32 %v3404, %v3223
        %v3477 = vadd.f32 %v3407, %v3224
        %v3478 = vadd.f32 %v3412, %v3225
        %v3479 = vadd.f32 %v3415, %v3226
        %v3480 = vadd.f32 %v3420, %v3227
        %v3481 = vadd.f32 %v3423, %v3228
        %v3482 = vadd.f32 %v3428, %v3229
        %v3483 = vadd.f32 %v3431, %v3230
        %v3484 = vadd.f32 %v3436, %v3231
        %v3485 = vadd.f32 %v3439, %v3232
        %v3486 = vadd.f32 %v3444, %v3233
        %v3487 = vadd.f32 %v3447, %v3234
        %v3488 = vadd.f32 %v3452, %v3235
        %v3489 = vadd.f32 %v3455, %v3236
        %v3490 = vmax.f32 %v3458, 0.0
        %v3491 = vmax.f32 %v3459, 0.0
        %v3492 = vmax.f32 %v3460, 0.0
        %v3493 = vmax.f32 %v3461, 0.0
        %v3494 = vmax.f32 %v3462, 0.0
        %v3495 = vmax.f32 %v3463, 0.0
        %v3496 = vmax.f32 %v3464, 0.0
        %v3497 = vmax.f32 %v3465, 0.0
        %v3498 = vmax.f32 %v3466, 0.0
        %v3499 = vmax.f32 %v3467, 0.0
        %v3500 = vmax.f32 %v3468, 0.0
        %v3501 = vmax.f32 %v3469, 0.0
        %v3502 = vmax.f32 %v3470, 0.0
        %v3503 = vmax.f32 %v3471, 0.0
        %v3504 = vmax.f32 %v3472, 0.0
        %v3505 = vmax.f32 %v3473, 0.0
        %v3506 = vmax.f32 %v3474, 0.0
        %v3507 = vmax.f32 %v3475, 0.0
        %v3508 = vmax.f32 %v3476, 0.0
        %v3509 = vmax.f32 %v3477, 0.0
        %v3510 = vmax.f32 %v3478, 0.0
        %v3511 = vmax.f32 %v3479, 0.0
        %v3512 = vmax.f32 %v3480, 0.0
        %v3513 = vmax.f32 %v3481, 0.0
        %v3514 = vmax.f32 %v3482, 0.0
        %v3515 = vmax.f32 %v3483, 0.0
        %v3516 = vmax.f32 %v3484, 0.0
        %v3517 = vmax.f32 %v3485, 0.0
        %v3518 = vmax.f32 %v3486, 0.0
        %v3519 = vmax.f32 %v3487, 0.0
        %v3520 = vmax.f32 %v3488, 0.0
        %v3521 = vmax.f32 %v3489, 0.0
        %3522 = vst.msk [vmem:[%s271] sm:$0xff] %vm483, %v3490
        %3523 = vst.msk [vmem:[%s271 + $0x8] sm:$0xff] %vm483, %v3491
        %3524 = vst.msk [vmem:[%s271 + $0x10] sm:$0xff] %vm483, %v3492
        %3525 = vst.msk [vmem:[%s271 + $0x18] sm:$0xff] %vm483, %v3493
        %3526 = vst.msk [vmem:[%s271 + $0x20] sm:$0xff] %vm483, %v3494
        %3527 = vst.msk [vmem:[%s271 + $0x28] sm:$0xff] %vm483, %v3495
        %3528 = vst.msk [vmem:[%s271 + $0x30] sm:$0xff] %vm483, %v3496
        %3529 = vst.msk [vmem:[%s271 + $0x38] sm:$0xff] %vm483, %v3497
        %3530 = vst.msk [vmem:[%s271 + $0x40] sm:$0xff] %vm483, %v3498
        %3531 = vst.msk [vmem:[%s271 + $0x48] sm:$0xff] %vm483, %v3499
        %3532 = vst.msk [vmem:[%s271 + $0x50] sm:$0xff] %vm483, %v3500
        %3533 = vst.msk [vmem:[%s271 + $0x58] sm:$0xff] %vm483, %v3501
        %3534 = vst.msk [vmem:[%s271 + $0x60] sm:$0xff] %vm483, %v3502
        %3535 = vst.msk [vmem:[%s271 + $0x68] sm:$0xff] %vm483, %v3503
        %3536 = vst.msk [vmem:[%s271 + $0x70] sm:$0xff] %vm483, %v3504
        %3537 = vst.msk [vmem:[%s271 + $0x78] sm:$0xff] %vm483, %v3505
        %3538 = vst.msk [vmem:[%s271 + $0x80] sm:$0xff] %vm483, %v3506
        %3539 = vst.msk [vmem:[%s271 + $0x88] sm:$0xff] %vm483, %v3507
        %3540 = vst.msk [vmem:[%s271 + $0x90] sm:$0xff] %vm483, %v3508
        %3541 = vst.msk [vmem:[%s271 + $0x98] sm:$0xff] %vm483, %v3509
        %3542 = vst.msk [vmem:[%s271 + $0xa0] sm:$0xff] %vm483, %v3510
        %3543 = vst.msk [vmem:[%s271 + $0xa8] sm:$0xff] %vm483, %v3511
        %3544 = vst.msk [vmem:[%s271 + $0xb0] sm:$0xff] %vm483, %v3512
        %3545 = vst.msk [vmem:[%s271 + $0xb8] sm:$0xff] %vm483, %v3513
        %3546 = vst.msk [vmem:[%s271 + $0xc0] sm:$0xff] %vm483, %v3514
        %3547 = vst.msk [vmem:[%s271 + $0xc8] sm:$0xff] %vm483, %v3515
        %3548 = vst.msk [vmem:[%s271 + $0xd0] sm:$0xff] %vm483, %v3516
        %3549 = vst.msk [vmem:[%s271 + $0xd8] sm:$0xff] %vm483, %v3517
        %3550 = vst.msk [vmem:[%s271 + $0xe0] sm:$0xff] %vm483, %v3518
        %3551 = vst.msk [vmem:[%s271 + $0xe8] sm:$0xff] %vm483, %v3519
        %3552 = vst.msk [vmem:[%s271 + $0xf0] sm:$0xff] %vm483, %v3520
        %3553 = vst.msk [vmem:[%s271 + $0xf8] sm:$0xff] %vm483, %v3521
        %s3554 = sand.u32 %s181, 1
        %s3555 = scalar_lea.sflag [#allocation5], %s3554
        %s3556 = sand.u32 %s181, 1
        %s3557 = smul.addr %s3556, 256
        %s3558 = scalar_lea.vmem [#allocation4], %s3557
        // Predicated region
        $region49: #{tpu_custom_call.1} parent=47 // pred_check
          %p3559 = pneg %p191
        $region50: #{tpu_custom_call.1} parent=47 // pred_check_branch
          %3561 = sbr.rel (%p3559) target = $region52
        $region51: #{tpu_custom_call.1} parent=47 // pred_region
          %s3563 = ssub.s32 4096, 4096
          %3564 = vsyncadd %s3555, %s3563
          %s3565 = smul.addr %s21, 32
          %s3566 = smul.addr %s3565, 128
          %s3567 = scalar_lea.hbm %s7, %s3566
          %s3568 = sshll.u32 %s3558, 4
          %s3569 = int_to_ptr.vmem [resolvable:$true] %s3568
          %3574 = dma.vmem_to_hbm [thread:$0]  %s3569, 4096, %s3567, %s3555, 128, 128, 8
        $region52: #{tpu_custom_call.1} parent=47 // pred_fallthru
          _
      $region48: #{tpu_custom_call.1} parent=5 // pred_fallthru
        _
      %p3575 = scmp.le.s32.totalorder 2, %s16
      // Predicated region
      $region53: #{tpu_custom_call.1} parent=5 // pred_check
        %p3576 = pneg %p3575
      $region54: #{tpu_custom_call.1} parent=5 // pred_check_branch
        %3578 = sbr.rel (%p3576) target = $region56
      $region55: #{tpu_custom_call.1} parent=5 // pred_region
        %s3579 = ssub.s32 %s16, 2
        // Predicated region
        $region57: #{tpu_custom_call.1} parent=55 // pred_check
          %p3580 = pneg %p197
        $region58: #{tpu_custom_call.1} parent=55 // pred_check_branch
          %3582 = sbr.rel (%p3580) target = $region60
        $region59: #{tpu_custom_call.1} parent=55 // pred_region
          %s3583 = sand.u32 %s182, 1
          %s3584 = scalar_lea.sflag [#allocation5], %s3583
          %s3585 = sand.u32 %s182, 1
          %s3586 = smul.addr %s3585, 256
          %s3587 = scalar_lea.vmem [#allocation4], %s3586
          %3588 = dma.done %s3584, 4096
        $region60: #{tpu_custom_call.1} parent=55 // pred_fallthru
          _
      $region56: #{tpu_custom_call.1} parent=5 // pred_fallthru
        _
    $region6: #{tpu_custom_call.1} parent=1 // loop_footer
      %s20 = sadd.s32 1, %s16
    $region7: #{tpu_custom_call.1} parent=1 // loop_footer_branch
      %15 = sbr.rel target = $region3
    $region8: #{tpu_custom_call.1} parent=1 // loop_exit
      _
    %3589 = vsyncpa [#allocation5], 1
    %s3590 = scalar_lea.sflag [#allocation5], 1
    %3591 = vsyncpa %s3590, 1

</llo_original>
